<compile_context>
chip_gen: v7x
topology: tpu7x:2x2x1
jax: 0.10.0
libtpu: 0.0.40
codegen_flags: <defaults>
</compile_context>

<pallas_src>
import math
from functools import partial

import jax
import jax.numpy as jnp
import numpy as np
from jax.experimental import pallas as pl
from jax.experimental.pallas import tpu as pltpu


# ----------------------------- shared math helpers ---------------------------

def _layernorm(x, w, b, eps=1e-5):
    mu = jnp.mean(x, axis=-1, keepdims=True)
    var = jnp.mean((x - mu) ** 2, axis=-1, keepdims=True)
    return (x - mu) * jax.lax.rsqrt(var + eps) * w + b


def _apply_rotary(x, cos, sin, rot_dim):
    # flash_attn-style non-interleaved rotary on the first rot_dim dims (reference).
    half = rot_dim // 2
    x1 = x[..., :half]
    x2 = x[..., half:rot_dim]
    rest = x[..., rot_dim:]
    o1 = x1 * cos - x2 * sin
    o2 = x1 * sin + x2 * cos
    return jnp.concatenate([o1, o2, rest], axis=-1)


# ----------------------------- rotary table builders --------------------------

def make_axial_pos(h, w):
    h_pos = jnp.linspace(-1.0, 1.0, h + 1)
    w_pos = jnp.linspace(-1.0, 1.0, w + 1)
    h_pos = (h_pos[:-1] + h_pos[1:]) / 2
    w_pos = (w_pos[:-1] + w_pos[1:]) / 2
    hh, ww = jnp.meshgrid(h_pos, w_pos, indexing="ij")
    return jnp.stack([hh, ww], axis=-1).reshape(h * w, 2)


def _make_theta(head_dim):
    log_min = math.log(math.pi)
    log_max = math.log(10 * math.pi)
    freqs = jnp.exp(jnp.linspace(log_min, log_max, head_dim // 8))
    pos = make_axial_pos(32, 32)
    pos = jnp.concatenate([jnp.zeros((1, 2)), pos], axis=0)     # class token pos 0
    theta_h = pos[:, 0:1] * freqs
    theta_w = pos[:, 1:2] * freqs
    return jnp.concatenate([theta_h, theta_w], axis=-1)         # [1025, head_dim//4]


def make_base_rot_tables(T, head_dim):
    theta = _make_theta(head_dim)[:T]
    return jnp.cos(theta), jnp.sin(theta)                        # [T, head_dim//4]


def make_rot_tables(T, n_heads, head_dim):
    """Full-width bf16 tables for roll-based rotary.

    Per head (width head_dim, rot_dim = head_dim//2, half = rot_dim//2):
      cos   = [ cos(th), cos(th), 1 ]
      sin_a = [ -sin(th), 0,      0 ]   -> multiplies roll(x, -half)  (lane j+half)
      sin_b = [ 0,       sin(th), 0 ]   -> multiplies roll(x, +half)  (lane j-half)
    The zero regions also kill the cross-head wraparound of the global rolls.
    """
    rot_dim = head_dim // 2
    half = rot_dim // 2
    theta = _make_theta(head_dim)[:T]
    cos = jnp.cos(theta)
    sin = jnp.sin(theta)
    ones = jnp.ones((T, head_dim - rot_dim), jnp.float32)
    zh = jnp.zeros((T, half), jnp.float32)
    zr = jnp.zeros((T, head_dim - rot_dim), jnp.float32)
    cos_h = jnp.concatenate([cos, cos, ones], axis=-1)
    sa_h = jnp.concatenate([-sin, zh, zr], axis=-1)
    sb_h = jnp.concatenate([zh, sin, zr], axis=-1)
    tile = lambda a: jnp.tile(a, (1, n_heads)).astype(jnp.bfloat16)
    return tile(cos_h), tile(sa_h), tile(sb_h)                   # each [T, n_heads*head_dim]


# ----------------------------- fused Pallas kernel ----------------------------

def _transformer_kernel(x_ref, cos_ref, sina_ref, sinb_ref,
                        ln1_w_ref, ln1_b_ref, qkv_w_ref, out_w_ref,
                        ln2_w_ref, ln2_b_ref, up_w_ref, down_w_ref,
                        onorm_w_ref, onorm_b_ref, oproj_w_ref,
                        o_ref,
                        x_scr, qhm_scr, khm_scr, vhm_scr, attn_hm_scr,
                        *, n_heads, head_dim, q_tile, ffn_chunk):
    layer = pl.program_id(1)
    n_layers = pl.num_programs(1)

    @pl.when(layer == 0)
    def _():
        x_scr[...] = x_ref[0]                       # load embeddings into resident act

    x = x_scr[...]                                  # [Tp, D] f32
    Tp, D = x_scr.shape
    H, hd = n_heads, head_dim
    half = head_dim // 4                            # rot_dim // 2

    cos = cos_ref[...]                              # [Tp, D] bf16 (promotes to f32)
    sin_a = sina_ref[...]
    sin_b = sinb_ref[...]

    # ------------------------ self-attention ------------------------
    h = _layernorm(x, ln1_w_ref[0], ln1_b_ref[0]).astype(jnp.bfloat16)
    qkv = jnp.dot(h, qkv_w_ref[0], preferred_element_type=jnp.float32)    # [Tp, 3D] f32

    q = qkv[:, 0 * D:1 * D]
    k = qkv[:, 1 * D:2 * D]
    v = qkv[:, 2 * D:3 * D]

    # In-kernel rotate-half rotary: partner lanes from two static lane rolls;
    # the zero regions of sin_a / sin_b mask the cross-head wraparound.
    def rot(t):
        return (t * cos
                + jnp.roll(t, -half, axis=1) * sin_a
                + jnp.roll(t, half, axis=1) * sin_b)

    scale = 1.0 / math.sqrt(head_dim)
    qb = (rot(q) * scale).astype(jnp.bfloat16)      # scale folded into q
    kb = rot(k).astype(jnp.bfloat16)
    vb = v.astype(jnp.bfloat16)

    # head-major bf16 copies so attention runs as one head-batched einsum
    for hi in range(H):
        o0 = hi * hd
        qhm_scr[hi] = qb[:, o0:o0 + hd]
        khm_scr[hi] = kb[:, o0:o0 + hd]
        vhm_scr[hi] = vb[:, o0:o0 + hd]

    # flash-style q-tile loop with causal skip (kv columns > tile end are
    # always masked, so they are never computed).
    n_qt = Tp // q_tile
    for qi in range(n_qt):
        qs = qi * q_tile
        kv_end = qs + q_tile
        qh = qhm_scr[:, qs:qs + q_tile, :]          # [H, TQ, hd]
        kh = khm_scr[:, :kv_end, :]                 # [H, kv, hd]
        vh = vhm_scr[:, :kv_end, :]
        s = jnp.einsum("hqd,hkd->hqk", qh, kh,
                       preferred_element_type=jnp.float32)       # [H, TQ, kv]
        row = qs + jax.lax.broadcasted_iota(jnp.int32, (q_tile, kv_end), 0)
        col = jax.lax.broadcasted_iota(jnp.int32, (q_tile, kv_end), 1)
        s = jnp.where((col <= row)[None], s, -1e30)
        m = jnp.max(s, axis=-1, keepdims=True)
        p = jnp.exp(s - m)
        p = p * pl.reciprocal(jnp.sum(p, axis=-1, keepdims=True), approx=True)
        pv = jnp.einsum("hqk,hkd->hqd", p.astype(jnp.bfloat16), vh,
                        preferred_element_type=jnp.float32)      # [H, TQ, hd]
        attn_hm_scr[:, qs:qs + q_tile, :] = pv.astype(jnp.bfloat16)

    attn = jnp.concatenate([attn_hm_scr[hi] for hi in range(H)], axis=-1)  # [Tp, D] bf16
    x1 = x + jnp.dot(attn, out_w_ref[0], preferred_element_type=jnp.float32)

    # ------------------------ SwiGLU feed-forward (hidden-chunked) ------------------------
    h2 = _layernorm(x1, ln2_w_ref[0], ln2_b_ref[0]).astype(jnp.bfloat16)
    hid = down_w_ref.shape[1]
    x2 = x1
    c0 = 0
    while c0 < hid:                                 # static trace-time loop
        c1 = min(hid, c0 + ffn_chunk)
        u = jnp.dot(h2, up_w_ref[0, :, c0:c1], preferred_element_type=jnp.float32)
        g = jnp.dot(h2, up_w_ref[0, :, hid + c0:hid + c1],
                    preferred_element_type=jnp.float32)
        ff = (u * (g * jax.nn.sigmoid(g))).astype(jnp.bfloat16)
        x2 = x2 + jnp.dot(ff, down_w_ref[0, c0:c1, :], preferred_element_type=jnp.float32)
        c0 = c1

    x_scr[...] = x2                                  # carry activation to next layer

    # ---------------- fused out_norm + out_proj on the last layer ----------------
    @pl.when(layer == n_layers - 1)
    def _():
        hf = _layernorm(x2, onorm_w_ref[...], onorm_b_ref[...]).astype(jnp.bfloat16)
        o_ref[0] = jnp.dot(hf, oproj_w_ref[...], preferred_element_type=jnp.float32)


def _pick_vmem_limit():
    try:
        cap = int(pltpu.get_tpu_info().vmem_capacity_bytes)
    except Exception:
        cap = 128 * 1024 * 1024
    # <= 75% of physical VMEM (48 MiB on v7x, 96 MiB on v5e/v6e), capped.
    return min(cap * 3 // 4, 112 * 1024 * 1024)


def run_transformer(x_emb_pad, cos_t, sina_t, sinb_t, params, head_dim,
                    q_tile, ffn_chunk):
    B, T_pad, D = x_emb_pad.shape
    depth = params["qkv_w"].shape[0]
    H2 = params["up_w"].shape[2]
    Hd = params["down_w"].shape[1]
    V = params["out_proj_w"].shape[1]
    n_heads = D // head_dim
    assert T_pad % q_tile == 0

    kernel = partial(_transformer_kernel, n_heads=n_heads, head_dim=head_dim,
                     q_tile=q_tile, ffn_chunk=ffn_chunk)
    return pl.pallas_call(
        kernel,
        out_shape=jax.ShapeDtypeStruct((B, T_pad, V), jnp.float32),
        grid=(B, depth),
        in_specs=[
            pl.BlockSpec((1, T_pad, D), lambda b, l: (b, 0, 0)),      # x embeddings
            pl.BlockSpec((T_pad, D), lambda b, l: (0, 0)),            # cos (bf16)
            pl.BlockSpec((T_pad, D), lambda b, l: (0, 0)),            # sin_a (bf16)
            pl.BlockSpec((T_pad, D), lambda b, l: (0, 0)),            # sin_b (bf16)
            pl.BlockSpec((1, 1, D), lambda b, l: (l, 0, 0)),          # ln1_w
            pl.BlockSpec((1, 1, D), lambda b, l: (l, 0, 0)),          # ln1_b
            pl.BlockSpec((1, D, 3 * D), lambda b, l: (l, 0, 0)),      # qkv_w (bf16)
            pl.BlockSpec((1, D, D), lambda b, l: (l, 0, 0)),          # out_w (bf16)
            pl.BlockSpec((1, 1, D), lambda b, l: (l, 0, 0)),          # ln2_w
            pl.BlockSpec((1, 1, D), lambda b, l: (l, 0, 0)),          # ln2_b
            pl.BlockSpec((1, D, H2), lambda b, l: (l, 0, 0)),         # up_w (bf16)
            pl.BlockSpec((1, Hd, D), lambda b, l: (l, 0, 0)),         # down_w (bf16)
            pl.BlockSpec((1, D), lambda b, l: (0, 0)),                # out_norm_w
            pl.BlockSpec((1, D), lambda b, l: (0, 0)),                # out_norm_b
            pl.BlockSpec((D, V), lambda b, l: (0, 0)),                # out_proj_w (bf16)
        ],
        out_specs=pl.BlockSpec((1, T_pad, V), lambda b, l: (b, 0, 0)),
        scratch_shapes=[
            pltpu.VMEM((T_pad, D), jnp.float32),                      # resident activation
            pltpu.VMEM((n_heads, T_pad, head_dim), jnp.bfloat16),     # q head-major
            pltpu.VMEM((n_heads, T_pad, head_dim), jnp.bfloat16),     # k head-major
            pltpu.VMEM((n_heads, T_pad, head_dim), jnp.bfloat16),     # v head-major
            pltpu.VMEM((n_heads, T_pad, head_dim), jnp.bfloat16),     # attn out (bf16)
        ],
        compiler_params=pltpu.CompilerParams(
            dimension_semantics=("parallel", "arbitrary"),
            vmem_limit_bytes=_pick_vmem_limit()),
    )(x_emb_pad, cos_t, sina_t, sinb_t,
      params["ln1_w"], params["ln1_b"], params["qkv_w"], params["out_w"],
      params["ln2_w"], params["ln2_b"], params["up_w"], params["down_w"],
      params["out_norm_w"], params["out_norm_b"], params["out_proj_w"])


# ----------------------------- model setup (plain JAX glue) ------------------

def init_params(key, depth, dim, hidden_dim, head_dim):
    ks = jax.random.split(key, 6 + depth)

    def nrm(k, shape, scale=0.02):
        return scale * jax.random.normal(k, shape, jnp.float32)

    qkv_w, out_w, up_w, down_w = [], [], [], []
    for i in range(depth):
        bk = jax.random.split(ks[5 + i], 4)
        qkv_w.append(nrm(bk[0], (dim, 3 * dim)))
        # NOTE: out_w / down_w are zero_init in the PyTorch module; small random
        # values are used here so the kernel compute path is actually exercised.
        out_w.append(nrm(bk[1], (dim, dim)))
        up_w.append(nrm(bk[2], (dim, 2 * hidden_dim)))
        down_w.append(nrm(bk[3], (hidden_dim, dim)))

    return {
        "class_embed": nrm(ks[0], (10, dim)),
        "embed_r": nrm(ks[1], (256, dim)),
        "embed_g": nrm(ks[2], (256, dim)),
        "embed_b": nrm(ks[3], (256, dim)),
        "out_norm_w": jnp.ones((1, dim), jnp.float32),
        "out_norm_b": jnp.zeros((1, dim), jnp.float32),
        "out_proj_w": nrm(ks[4], (dim, 256 * 3)).astype(jnp.bfloat16),
        "ln1_w": jnp.ones((depth, 1, dim), jnp.float32),
        "ln1_b": jnp.zeros((depth, 1, dim), jnp.float32),
        "ln2_w": jnp.ones((depth, 1, dim), jnp.float32),
        "ln2_b": jnp.zeros((depth, 1, dim), jnp.float32),
        "qkv_w": jnp.stack(qkv_w).astype(jnp.bfloat16),    # [depth, D, 3D]
        "out_w": jnp.stack(out_w).astype(jnp.bfloat16),    # [depth, D, D]
        "up_w": jnp.stack(up_w).astype(jnp.bfloat16),      # [depth, D, 2H]
        "down_w": jnp.stack(down_w).astype(jnp.bfloat16),  # [depth, H, D]
    }


def transformer_forward(params, x_tokens, y_labels, head_dim,
                        q_tile=128, ffn_chunk=512):
    B, S, _ = x_tokens.shape
    dim = params["class_embed"].shape[1]
    n_heads = dim // head_dim
    T = S + 1

    # Embedding gathers (glue, plain JAX). Dropout(p=0.0) is identity.
    x_emb = (params["embed_r"][x_tokens[..., 0]]
             + params["embed_g"][x_tokens[..., 1]]
             + params["embed_b"][x_tokens[..., 2]])
    y_emb = params["class_embed"][y_labels]
    h = jnp.concatenate([y_emb[:, None, :], x_emb], axis=1)    # [B, T, D] f32

    # pad the token axis to a multiple of the q tile (padded rows are masked
    # out of attention for real rows and sliced off at the end).
    T_pad = ((T + q_tile - 1) // q_tile) * q_tile
    h_pad = jnp.pad(h, ((0, 0), (0, T_pad - T), (0, 0)))

    cos_t, sina_t, sinb_t = make_rot_tables(T, n_heads, head_dim)
    pad_rows = ((0, T_pad - T), (0, 0))
    cos_t = jnp.pad(cos_t, pad_rows)
    sina_t = jnp.pad(sina_t, pad_rows)
    sinb_t = jnp.pad(sinb_t, pad_rows)

    logits = run_transformer(h_pad, cos_t, sina_t, sinb_t, params, head_dim,
                             q_tile, ffn_chunk)
    return logits[:, :T].reshape(B, T, 3, 256)


# ----------------------------- pure-JAX reference ----------------------------

def _ref_block(x, cos, sin, p, n_heads, head_dim, rot_dim):
    B, T, D = x.shape
    h = _layernorm(x, p["ln1_w"], p["ln1_b"])
    qkv = h @ p["qkv_w"].astype(jnp.float32)
    scale = 1.0 / math.sqrt(head_dim)
    causal = jnp.tril(jnp.ones((T, T), bool))
    outs = []
    for hi in range(n_heads):
        o0 = hi * head_dim
        q = _apply_rotary(qkv[..., o0:o0 + head_dim], cos, sin, rot_dim)
        k = _apply_rotary(qkv[..., D + o0:D + o0 + head_dim], cos, sin, rot_dim)
        v = qkv[..., 2 * D + o0:2 * D + o0 + head_dim]
        s = jnp.einsum("bqd,bkd->bqk", q, k) * scale
        s = jnp.where(causal, s, -1e30)
        a = jax.nn.softmax(s, axis=-1)
        outs.append(jnp.einsum("bqk,bkd->bqd", a, v))
    attn = jnp.concatenate(outs, axis=-1)
    x1 = x + attn @ p["out_w"].astype(jnp.float32)
    h2 = _layernorm(x1, p["ln2_w"], p["ln2_b"])
    u = h2 @ p["up_w"].astype(jnp.float32)
    hid = u.shape[-1] // 2
    ff = u[..., :hid] * jax.nn.silu(u[..., hid:])
    return x1 + ff @ p["down_w"].astype(jnp.float32)


def reference_forward(params, x_tokens, y_labels, head_dim):
    B, S, _ = x_tokens.shape
    dim = params["class_embed"].shape[1]
    n_heads = dim // head_dim
    rot_dim = head_dim // 2
    T = S + 1

    x_emb = (params["embed_r"][x_tokens[..., 0]]
             + params["embed_g"][x_tokens[..., 1]]
             + params["embed_b"][x_tokens[..., 2]])
    y_emb = params["class_embed"][y_labels]
    h = jnp.concatenate([y_emb[:, None, :], x_emb], axis=1)

    cos, sin = make_base_rot_tables(T, head_dim)
    depth = params["qkv_w"].shape[0]
    for i in range(depth):
        p = {k: params[k][i] for k in ("ln1_w", "ln1_b", "qkv_w", "out_w",
                                       "ln2_w", "ln2_b", "up_w", "down_w")}
        h = _ref_block(h, cos, sin, p, n_heads, head_dim, rot_dim)
    h = _layernorm(h, params["out_norm_w"], params["out_norm_b"])
    logits = h @ params["out_proj_w"].astype(jnp.float32)
    return logits.reshape(B, T, 3, 256)


# ----------------------------------- main -------------------------------------

if __name__ == "__main__":
    depth, dim, hidden_dim, head_dim = 2, 32, 64, 16   # n_heads = 2
    B, S = 2, 8                                        # seq with class token: T = 9

    key = jax.random.PRNGKey(0)
    kp, kx, ky = jax.random.split(key, 3)
    params = init_params(kp, depth, dim, hidden_dim, head_dim)
    x_tokens = jax.random.randint(kx, (B, S, 3), 0, 256, dtype=jnp.int32)
    y_labels = jax.random.randint(ky, (B,), 0, 10, dtype=jnp.int32)

    # small q_tile / ffn_chunk so the multi-tile causal-skip and chunked-FFN
    # paths are actually exercised at these toy shapes (defaults: 128 / 512).
    out = transformer_forward(params, x_tokens, y_labels, head_dim,
                              q_tile=8, ffn_chunk=32)
    out = jax.block_until_ready(out)
    assert out.shape == (B, S + 1, 3, 256)

    ref = reference_forward(params, x_tokens, y_labels, head_dim)
    np.testing.assert_allclose(np.asarray(out), np.asarray(ref),
                               rtol=2e-2, atol=2e-2)
    print("KERNEL_OK")
</pallas_src>

<mosaic_0001>
module attributes {stable_mosaic.version = 11 : i64} {
  func.func @_transformer_kernel(%arg0: i32, %arg1: i32, %arg2: memref<1x16x32xf32, #tpu.memory_space<vmem>>, %arg3: memref<16x32xbf16, #tpu.memory_space<vmem>>, %arg4: memref<16x32xbf16, #tpu.memory_space<vmem>>, %arg5: memref<16x32xbf16, #tpu.memory_space<vmem>>, %arg6: memref<1x1x32xf32, #tpu.memory_space<vmem>>, %arg7: memref<1x1x32xf32, #tpu.memory_space<vmem>>, %arg8: memref<1x32x96xbf16, #tpu.memory_space<vmem>>, %arg9: memref<1x32x32xbf16, #tpu.memory_space<vmem>>, %arg10: memref<1x1x32xf32, #tpu.memory_space<vmem>>, %arg11: memref<1x1x32xf32, #tpu.memory_space<vmem>>, %arg12: memref<1x32x128xbf16, #tpu.memory_space<vmem>>, %arg13: memref<1x64x32xbf16, #tpu.memory_space<vmem>>, %arg14: memref<1x32xf32, #tpu.memory_space<vmem>>, %arg15: memref<1x32xf32, #tpu.memory_space<vmem>>, %arg16: memref<32x768xbf16, #tpu.memory_space<vmem>>, %arg17: memref<1x16x768xf32, #tpu.memory_space<vmem>>, %arg18: memref<16x32xf32, #tpu.memory_space<vmem>>, %arg19: memref<2x16x16xbf16, #tpu.memory_space<vmem>>, %arg20: memref<2x16x16xbf16, #tpu.memory_space<vmem>>, %arg21: memref<2x16x16xbf16, #tpu.memory_space<vmem>>, %arg22: memref<2x16x16xbf16, #tpu.memory_space<vmem>>) attributes {dimension_semantics = [#tpu.dimension_semantics<parallel>, #tpu.dimension_semantics<arbitrary>], iteration_bounds = array<i64: 2, 2>, scalar_prefetch = 0 : i64, scratch_operands = 5 : i64, tpu.core_type = #tpu.core_type<tc>, window_params = [{transform_indices = @transform_0, window_bounds = array<i64: 1, 16, 32>}, {pipeline_mode = #tpu.pipeline_mode<synchronous>, transform_indices = @transform_1, window_bounds = array<i64: 16, 32>}, {pipeline_mode = #tpu.pipeline_mode<synchronous>, transform_indices = @transform_2, window_bounds = array<i64: 16, 32>}, {pipeline_mode = #tpu.pipeline_mode<synchronous>, transform_indices = @transform_3, window_bounds = array<i64: 16, 32>}, {transform_indices = @transform_4, window_bounds = array<i64: 1, 1, 32>}, {transform_indices = @transform_5, window_bounds = array<i64: 1, 1, 32>}, {transform_indices = @transform_6, window_bounds = array<i64: 1, 32, 96>}, {transform_indices = @transform_7, window_bounds = array<i64: 1, 32, 32>}, {transform_indices = @transform_8, window_bounds = array<i64: 1, 1, 32>}, {transform_indices = @transform_9, window_bounds = array<i64: 1, 1, 32>}, {transform_indices = @transform_10, window_bounds = array<i64: 1, 32, 128>}, {transform_indices = @transform_11, window_bounds = array<i64: 1, 64, 32>}, {pipeline_mode = #tpu.pipeline_mode<synchronous>, transform_indices = @transform_12, window_bounds = array<i64: 1, 32>}, {pipeline_mode = #tpu.pipeline_mode<synchronous>, transform_indices = @transform_13, window_bounds = array<i64: 1, 32>}, {pipeline_mode = #tpu.pipeline_mode<synchronous>, transform_indices = @transform_14, window_bounds = array<i64: 32, 768>}, {transform_indices = @transform_15, window_bounds = array<i64: 1, 16, 768>}]} {
    %c0_i32 = arith.constant 0 : i32
    %0 = arith.cmpi eq, %arg1, %c0_i32 : i32
    %1 = arith.extui %0 : i1 to i32
    %c0_i32_0 = arith.constant 0 : i32
    %2 = arith.cmpi ne, %1, %c0_i32_0 : i32
    scf.if %2 {
      %c0_121 = arith.constant 0 : index
      %c0_122 = arith.constant 0 : index
      %c0_123 = arith.constant 0 : index
      %229 = vector.load %arg2[%c0_121, %c0_122, %c0_123] : memref<1x16x32xf32, #tpu.memory_space<vmem>>, vector<1x16x32xf32>
      %230 = vector.shape_cast %229 : vector<1x16x32xf32> to vector<16x32xf32>
      %c0_124 = arith.constant 0 : index
      %c0_125 = arith.constant 0 : index
      %231 = vector.load %arg18[%c0_124, %c0_125] : memref<16x32xf32, #tpu.memory_space<vmem>>, vector<16x32xf32>
      tpu.vector_store %arg18[%c0_124, %c0_125], %230 {strides = array<i32>} : memref<16x32xf32, #tpu.memory_space<vmem>>, vector<16x32xf32>,
    } else {
    }
    %c0 = arith.constant 0 : index
    %c0_1 = arith.constant 0 : index
    %3 = vector.load %arg18[%c0, %c0_1] : memref<16x32xf32, #tpu.memory_space<vmem>>, vector<16x32xf32>
    %c0_2 = arith.constant 0 : index
    %c0_3 = arith.constant 0 : index
    %4 = vector.load %arg3[%c0_2, %c0_3] : memref<16x32xbf16, #tpu.memory_space<vmem>>, vector<16x32xbf16>
    %c0_4 = arith.constant 0 : index
    %c0_5 = arith.constant 0 : index
    %5 = vector.load %arg4[%c0_4, %c0_5] : memref<16x32xbf16, #tpu.memory_space<vmem>>, vector<16x32xbf16>
    %c0_6 = arith.constant 0 : index
    %c0_7 = arith.constant 0 : index
    %6 = vector.load %arg5[%c0_6, %c0_7] : memref<16x32xbf16, #tpu.memory_space<vmem>>, vector<16x32xbf16>
    %c0_8 = arith.constant 0 : index
    %c0_9 = arith.constant 0 : index
    %c0_10 = arith.constant 0 : index
    %7 = vector.load %arg6[%c0_8, %c0_9, %c0_10] : memref<1x1x32xf32, #tpu.memory_space<vmem>>, vector<1x1x32xf32>
    %8 = vector.shape_cast %7 : vector<1x1x32xf32> to vector<1x32xf32>
    %c0_11 = arith.constant 0 : index
    %c0_12 = arith.constant 0 : index
    %c0_13 = arith.constant 0 : index
    %9 = vector.load %arg7[%c0_11, %c0_12, %c0_13] : memref<1x1x32xf32, #tpu.memory_space<vmem>>, vector<1x1x32xf32>
    %10 = vector.shape_cast %9 : vector<1x1x32xf32> to vector<1x32xf32>
    %cst = arith.constant dense<0.000000e+00> : vector<16xf32>
    %11 = vector.multi_reduction <add>, %3, %cst [1] : vector<16x32xf32> to vector<16xf32>
    %12 = vector.shape_cast %11 : vector<16xf32> to vector<16x1xf32>
    %cst_14 = arith.constant 3.200000e+01 : f32
    %13 = vector.broadcast %cst_14 : f32 to vector<16x1xf32>
    %14 = arith.divf %12, %13 : vector<16x1xf32>
    %15 = vector.broadcast %14 : vector<16x1xf32> to vector<16x32xf32>
    %16 = arith.subf %3, %15 : vector<16x32xf32>
    %17 = arith.mulf %16, %16 : vector<16x32xf32>
    %cst_15 = arith.constant dense<0.000000e+00> : vector<16xf32>
    %18 = vector.multi_reduction <add>, %17, %cst_15 [1] : vector<16x32xf32> to vector<16xf32>
    %19 = vector.shape_cast %18 : vector<16xf32> to vector<16x1xf32>
    %cst_16 = arith.constant 3.200000e+01 : f32
    %20 = vector.broadcast %cst_16 : f32 to vector<16x1xf32>
    %21 = arith.divf %19, %20 : vector<16x1xf32>
    %22 = vector.broadcast %14 : vector<16x1xf32> to vector<16x32xf32>
    %23 = arith.subf %3, %22 : vector<16x32xf32>
    %cst_17 = arith.constant 9.99999974E-6 : f32
    %24 = vector.broadcast %cst_17 : f32 to vector<16x1xf32>
    %25 = arith.addf %21, %24 : vector<16x1xf32>
    %26 = math.rsqrt %25 : vector<16x1xf32>
    %27 = vector.broadcast %26 : vector<16x1xf32> to vector<16x32xf32>
    %28 = arith.mulf %23, %27 : vector<16x32xf32>
    %29 = vector.broadcast %8 : vector<1x32xf32> to vector<16x32xf32>
    %30 = arith.mulf %28, %29 : vector<16x32xf32>
    %31 = vector.broadcast %10 : vector<1x32xf32> to vector<16x32xf32>
    %32 = arith.addf %30, %31 : vector<16x32xf32>
    %33 = arith.truncf %32 : vector<16x32xf32> to vector<16x32xbf16>
    %c0_18 = arith.constant 0 : index
    %c0_19 = arith.constant 0 : index
    %c0_20 = arith.constant 0 : index
    %34 = vector.load %arg8[%c0_18, %c0_19, %c0_20] : memref<1x32x96xbf16, #tpu.memory_space<vmem>>, vector<1x32x96xbf16>
    %35 = vector.shape_cast %34 : vector<1x32x96xbf16> to vector<32x96xbf16>
    %cst_21 = arith.constant dense<0.000000e+00> : vector<16x96xf32>
    %36 = tpu.matmul %33, %35, %cst_21 {dimension_numbers = #tpu.dot_dimension_numbers<[1], [0], [0], [1], [0, 0, 1, 1], [], []>} : vector<16x32xbf16>, vector<32x96xbf16>, vector<16x96xf32> -> vector<16x96xf32>
    %37 = vector.extract_strided_slice %36 {offsets = [0, 0], sizes = [16, 32], strides = [1, 1]} : vector<16x96xf32> to vector<16x32xf32>
    %38 = vector.extract_strided_slice %36 {offsets = [0, 32], sizes = [16, 32], strides = [1, 1]} : vector<16x96xf32> to vector<16x32xf32>
    %39 = vector.extract_strided_slice %36 {offsets = [0, 64], sizes = [16, 32], strides = [1, 1]} : vector<16x96xf32> to vector<16x32xf32>
    %40 = arith.extf %4 : vector<16x32xbf16> to vector<16x32xf32>
    %41 = arith.mulf %37, %40 : vector<16x32xf32>
    %42 = vector.extract_strided_slice %37 {offsets = [0, 4], sizes = [16, 28], strides = [1, 1]} : vector<16x32xf32> to vector<16x28xf32>
    %43 = vector.extract_strided_slice %37 {offsets = [0, 0], sizes = [16, 4], strides = [1, 1]} : vector<16x32xf32> to vector<16x4xf32>
    %44 = tpu.concatenate %42, %43 in 1 : vector<16x28xf32>, vector<16x4xf32> -> vector<16x32xf32>
    %45 = arith.extf %5 : vector<16x32xbf16> to vector<16x32xf32>
    %46 = arith.mulf %44, %45 : vector<16x32xf32>
    %47 = arith.addf %41, %46 : vector<16x32xf32>
    %48 = vector.extract_strided_slice %37 {offsets = [0, 28], sizes = [16, 4], strides = [1, 1]} : vector<16x32xf32> to vector<16x4xf32>
    %49 = vector.extract_strided_slice %37 {offsets = [0, 0], sizes = [16, 28], strides = [1, 1]} : vector<16x32xf32> to vector<16x28xf32>
    %50 = tpu.concatenate %48, %49 in 1 : vector<16x4xf32>, vector<16x28xf32> -> vector<16x32xf32>
    %51 = arith.extf %6 : vector<16x32xbf16> to vector<16x32xf32>
    %52 = arith.mulf %50, %51 : vector<16x32xf32>
    %53 = arith.addf %47, %52 : vector<16x32xf32>
    %cst_22 = arith.constant 2.500000e-01 : f32
    %54 = vector.broadcast %cst_22 : f32 to vector<16x32xf32>
    %55 = arith.mulf %53, %54 : vector<16x32xf32>
    %56 = arith.truncf %55 : vector<16x32xf32> to vector<16x32xbf16>
    %57 = arith.extf %4 : vector<16x32xbf16> to vector<16x32xf32>
    %58 = arith.mulf %38, %57 : vector<16x32xf32>
    %59 = vector.extract_strided_slice %38 {offsets = [0, 4], sizes = [16, 28], strides = [1, 1]} : vector<16x32xf32> to vector<16x28xf32>
    %60 = vector.extract_strided_slice %38 {offsets = [0, 0], sizes = [16, 4], strides = [1, 1]} : vector<16x32xf32> to vector<16x4xf32>
    %61 = tpu.concatenate %59, %60 in 1 : vector<16x28xf32>, vector<16x4xf32> -> vector<16x32xf32>
    %62 = arith.extf %5 : vector<16x32xbf16> to vector<16x32xf32>
    %63 = arith.mulf %61, %62 : vector<16x32xf32>
    %64 = arith.addf %58, %63 : vector<16x32xf32>
    %65 = vector.extract_strided_slice %38 {offsets = [0, 28], sizes = [16, 4], strides = [1, 1]} : vector<16x32xf32> to vector<16x4xf32>
    %66 = vector.extract_strided_slice %38 {offsets = [0, 0], sizes = [16, 28], strides = [1, 1]} : vector<16x32xf32> to vector<16x28xf32>
    %67 = tpu.concatenate %65, %66 in 1 : vector<16x4xf32>, vector<16x28xf32> -> vector<16x32xf32>
    %68 = arith.extf %6 : vector<16x32xbf16> to vector<16x32xf32>
    %69 = arith.mulf %67, %68 : vector<16x32xf32>
    %70 = arith.addf %64, %69 : vector<16x32xf32>
    %71 = arith.truncf %70 : vector<16x32xf32> to vector<16x32xbf16>
    %72 = arith.truncf %39 : vector<16x32xf32> to vector<16x32xbf16>
    %73 = vector.extract_strided_slice %56 {offsets = [0, 0], sizes = [16, 16], strides = [1, 1]} : vector<16x32xbf16> to vector<16x16xbf16>
    %c0_23 = arith.constant 0 : index
    %c0_24 = arith.constant 0 : index
    %c0_25 = arith.constant 0 : index
    %74 = vector.load %arg19[%c0_23, %c0_24, %c0_25] : memref<2x16x16xbf16, #tpu.memory_space<vmem>>, vector<1x16x16xbf16>
    %75 = vector.shape_cast %74 : vector<1x16x16xbf16> to vector<16x16xbf16>
    %76 = vector.shape_cast %73 : vector<16x16xbf16> to vector<1x16x16xbf16>
    tpu.vector_store %arg19[%c0_23, %c0_24, %c0_25], %76 {strides = array<i32>} : memref<2x16x16xbf16, #tpu.memory_space<vmem>>, vector<1x16x16xbf16>,
    %77 = vector.extract_strided_slice %71 {offsets = [0, 0], sizes = [16, 16], strides = [1, 1]} : vector<16x32xbf16> to vector<16x16xbf16>
    %c0_26 = arith.constant 0 : index
    %c0_27 = arith.constant 0 : index
    %c0_28 = arith.constant 0 : index
    %78 = vector.load %arg20[%c0_26, %c0_27, %c0_28] : memref<2x16x16xbf16, #tpu.memory_space<vmem>>, vector<1x16x16xbf16>
    %79 = vector.shape_cast %78 : vector<1x16x16xbf16> to vector<16x16xbf16>
    %80 = vector.shape_cast %77 : vector<16x16xbf16> to vector<1x16x16xbf16>
    tpu.vector_store %arg20[%c0_26, %c0_27, %c0_28], %80 {strides = array<i32>} : memref<2x16x16xbf16, #tpu.memory_space<vmem>>, vector<1x16x16xbf16>,
    %81 = vector.extract_strided_slice %72 {offsets = [0, 0], sizes = [16, 16], strides = [1, 1]} : vector<16x32xbf16> to vector<16x16xbf16>
    %c0_29 = arith.constant 0 : index
    %c0_30 = arith.constant 0 : index
    %c0_31 = arith.constant 0 : index
    %82 = vector.load %arg21[%c0_29, %c0_30, %c0_31] : memref<2x16x16xbf16, #tpu.memory_space<vmem>>, vector<1x16x16xbf16>
    %83 = vector.shape_cast %82 : vector<1x16x16xbf16> to vector<16x16xbf16>
    %84 = vector.shape_cast %81 : vector<16x16xbf16> to vector<1x16x16xbf16>
    tpu.vector_store %arg21[%c0_29, %c0_30, %c0_31], %84 {strides = array<i32>} : memref<2x16x16xbf16, #tpu.memory_space<vmem>>, vector<1x16x16xbf16>,
    %85 = vector.extract_strided_slice %56 {offsets = [0, 16], sizes = [16, 16], strides = [1, 1]} : vector<16x32xbf16> to vector<16x16xbf16>
    %c1 = arith.constant 1 : index
    %c0_32 = arith.constant 0 : index
    %c0_33 = arith.constant 0 : index
    %86 = vector.load %arg19[%c1, %c0_32, %c0_33] : memref<2x16x16xbf16, #tpu.memory_space<vmem>>, vector<1x16x16xbf16>
    %87 = vector.shape_cast %86 : vector<1x16x16xbf16> to vector<16x16xbf16>
    %88 = vector.shape_cast %85 : vector<16x16xbf16> to vector<1x16x16xbf16>
    tpu.vector_store %arg19[%c1, %c0_32, %c0_33], %88 {strides = array<i32>} : memref<2x16x16xbf16, #tpu.memory_space<vmem>>, vector<1x16x16xbf16>,
    %89 = vector.extract_strided_slice %71 {offsets = [0, 16], sizes = [16, 16], strides = [1, 1]} : vector<16x32xbf16> to vector<16x16xbf16>
    %c1_34 = arith.constant 1 : index
    %c0_35 = arith.constant 0 : index
    %c0_36 = arith.constant 0 : index
    %90 = vector.load %arg20[%c1_34, %c0_35, %c0_36] : memref<2x16x16xbf16, #tpu.memory_space<vmem>>, vector<1x16x16xbf16>
    %91 = vector.shape_cast %90 : vector<1x16x16xbf16> to vector<16x16xbf16>
    %92 = vector.shape_cast %89 : vector<16x16xbf16> to vector<1x16x16xbf16>
    tpu.vector_store %arg20[%c1_34, %c0_35, %c0_36], %92 {strides = array<i32>} : memref<2x16x16xbf16, #tpu.memory_space<vmem>>, vector<1x16x16xbf16>,
    %93 = vector.extract_strided_slice %72 {offsets = [0, 16], sizes = [16, 16], strides = [1, 1]} : vector<16x32xbf16> to vector<16x16xbf16>
    %c1_37 = arith.constant 1 : index
    %c0_38 = arith.constant 0 : index
    %c0_39 = arith.constant 0 : index
    %94 = vector.load %arg21[%c1_37, %c0_38, %c0_39] : memref<2x16x16xbf16, #tpu.memory_space<vmem>>, vector<1x16x16xbf16>
    %95 = vector.shape_cast %94 : vector<1x16x16xbf16> to vector<16x16xbf16>
    %96 = vector.shape_cast %93 : vector<16x16xbf16> to vector<1x16x16xbf16>
    tpu.vector_store %arg21[%c1_37, %c0_38, %c0_39], %96 {strides = array<i32>} : memref<2x16x16xbf16, #tpu.memory_space<vmem>>, vector<1x16x16xbf16>,
    %c0_40 = arith.constant 0 : index
    %c0_41 = arith.constant 0 : index
    %c0_42 = arith.constant 0 : index
    %97 = vector.load %arg19[%c0_40, %c0_41, %c0_42] : memref<2x16x16xbf16, #tpu.memory_space<vmem>>, vector<2x8x16xbf16>
    %c0_43 = arith.constant 0 : index
    %c0_44 = arith.constant 0 : index
    %c0_45 = arith.constant 0 : index
    %98 = vector.load %arg20[%c0_43, %c0_44, %c0_45] : memref<2x16x16xbf16, #tpu.memory_space<vmem>>, vector<2x8x16xbf16>
    %c0_46 = arith.constant 0 : index
    %c0_47 = arith.constant 0 : index
    %c0_48 = arith.constant 0 : index
    %99 = vector.load %arg21[%c0_46, %c0_47, %c0_48] : memref<2x16x16xbf16, #tpu.memory_space<vmem>>, vector<2x8x16xbf16>
    "tpu.trace_start"() <{level = 10 : i32, message = "hqd,hkd->hqk"}> : () -> ()
    %cst_49 = arith.constant dense<0.000000e+00> : vector<2x8x8xf32>
    %100 = tpu.matmul %97, %98, %cst_49 {dimension_numbers = #tpu.dot_dimension_numbers<[2], [2], [1], [1], [0, 0, 0, 1, 1, 1], [0], [0]>} : vector<2x8x16xbf16>, vector<2x8x16xbf16>, vector<2x8x8xf32> -> vector<2x8x8xf32>
    "tpu.trace_stop"() : () -> ()
    %101 = tpu.iota {dimensions = array<i32: 0>} : vector<8x8xi32>
    %c0_i32_50 = arith.constant 0 : i32
    %102 = vector.broadcast %c0_i32_50 : i32 to vector<8x8xi32>
    %103 = arith.addi %102, %101 : vector<8x8xi32>
    %104 = tpu.iota {dimensions = array<i32: 1>} : vector<8x8xi32>
    %105 = arith.cmpi sle, %104, %103 : vector<8x8xi32>
    %106 = vector.shape_cast %105 : vector<8x8xi1> to vector<1x8x8xi1>
    %cst_51 = arith.constant -1.000000e+30 : f32
    %107 = vector.shape_cast %106 : vector<1x8x8xi1> to vector<1x8x8xi1>
    %108 = vector.broadcast %107 : vector<1x8x8xi1> to vector<2x8x8xi1>
    %109 = vector.broadcast %cst_51 : f32 to vector<2x8x8xf32>
    %110 = arith.select %108, %100, %109 : vector<2x8x8xi1>, vector<2x8x8xf32>
    %cst_52 = arith.constant dense<0xFF800000> : vector<2x8xf32>
    %111 = vector.multi_reduction <maximumf>, %110, %cst_52 [2] : vector<2x8x8xf32> to vector<2x8xf32>
    %112 = vector.shape_cast %111 : vector<2x8xf32> to vector<2x8x1xf32>
    %113 = vector.broadcast %112 : vector<2x8x1xf32> to vector<2x8x8xf32>
    %114 = arith.subf %110, %113 : vector<2x8x8xf32>
    %115 = math.exp %114 : vector<2x8x8xf32>
    %cst_53 = arith.constant dense<0.000000e+00> : vector<2x8xf32>
    %116 = vector.multi_reduction <add>, %115, %cst_53 [2] : vector<2x8x8xf32> to vector<2x8xf32>
    %117 = vector.shape_cast %116 : vector<2x8xf32> to vector<2x8x1xf32>
    %118 = tpu.reciprocal %117 {approx = true} : vector<2x8x1xf32> -> vector<2x8x1xf32>
    %119 = vector.broadcast %118 : vector<2x8x1xf32> to vector<2x8x8xf32>
    %120 = arith.mulf %115, %119 : vector<2x8x8xf32>
    %121 = arith.truncf %120 : vector<2x8x8xf32> to vector<2x8x8xbf16>
    "tpu.trace_start"() <{level = 10 : i32, message = "hqk,hkd->hqd"}> : () -> ()
    %cst_54 = arith.constant dense<0.000000e+00> : vector<2x8x16xf32>
    %122 = tpu.matmul %121, %99, %cst_54 {dimension_numbers = #tpu.dot_dimension_numbers<[2], [1], [1], [2], [0, 0, 0, 1, 1, 2], [0], [0]>} : vector<2x8x8xbf16>, vector<2x8x16xbf16>, vector<2x8x16xf32> -> vector<2x8x16xf32>
    "tpu.trace_stop"() : () -> ()
    %123 = arith.truncf %122 : vector<2x8x16xf32> to vector<2x8x16xbf16>
    %c0_55 = arith.constant 0 : index
    %c0_56 = arith.constant 0 : index
    %c0_57 = arith.constant 0 : index
    %124 = vector.load %arg22[%c0_55, %c0_56, %c0_57] : memref<2x16x16xbf16, #tpu.memory_space<vmem>>, vector<2x8x16xbf16>
    tpu.vector_store %arg22[%c0_55, %c0_56, %c0_57], %123 {strides = array<i32>} : memref<2x16x16xbf16, #tpu.memory_space<vmem>>, vector<2x8x16xbf16>,
    %c0_58 = arith.constant 0 : index
    %c8 = arith.constant 8 : index
    %c0_59 = arith.constant 0 : index
    %125 = vector.load %arg19[%c0_58, %c8, %c0_59] : memref<2x16x16xbf16, #tpu.memory_space<vmem>>, vector<2x8x16xbf16>
    %c0_60 = arith.constant 0 : index
    %c0_61 = arith.constant 0 : index
    %c0_62 = arith.constant 0 : index
    %126 = vector.load %arg20[%c0_60, %c0_61, %c0_62] : memref<2x16x16xbf16, #tpu.memory_space<vmem>>, vector<2x16x16xbf16>
    %c0_63 = arith.constant 0 : index
    %c0_64 = arith.constant 0 : index
    %c0_65 = arith.constant 0 : index
    %127 = vector.load %arg21[%c0_63, %c0_64, %c0_65] : memref<2x16x16xbf16, #tpu.memory_space<vmem>>, vector<2x16x16xbf16>
    "tpu.trace_start"() <{level = 10 : i32, message = "hqd,hkd->hqk"}> : () -> ()
    %cst_66 = arith.constant dense<0.000000e+00> : vector<2x8x16xf32>
    %128 = tpu.matmul %125, %126, %cst_66 {dimension_numbers = #tpu.dot_dimension_numbers<[2], [2], [1], [1], [0, 0, 0, 1, 1, 1], [0], [0]>} : vector<2x8x16xbf16>, vector<2x16x16xbf16>, vector<2x8x16xf32> -> vector<2x8x16xf32>
    "tpu.trace_stop"() : () -> ()
    %129 = tpu.iota {dimensions = array<i32: 0>} : vector<8x16xi32>
    %c8_i32 = arith.constant 8 : i32
    %130 = vector.broadcast %c8_i32 : i32 to vector<8x16xi32>
    %131 = arith.addi %130, %129 : vector<8x16xi32>
    %132 = tpu.iota {dimensions = array<i32: 1>} : vector<8x16xi32>
    %133 = arith.cmpi sle, %132, %131 : vector<8x16xi32>
    %134 = vector.shape_cast %133 : vector<8x16xi1> to vector<1x8x16xi1>
    %cst_67 = arith.constant -1.000000e+30 : f32
    %135 = vector.shape_cast %134 : vector<1x8x16xi1> to vector<1x8x16xi1>
    %136 = vector.broadcast %135 : vector<1x8x16xi1> to vector<2x8x16xi1>
    %137 = vector.broadcast %cst_67 : f32 to vector<2x8x16xf32>
    %138 = arith.select %136, %128, %137 : vector<2x8x16xi1>, vector<2x8x16xf32>
    %cst_68 = arith.constant dense<0xFF800000> : vector<2x8xf32>
    %139 = vector.multi_reduction <maximumf>, %138, %cst_68 [2] : vector<2x8x16xf32> to vector<2x8xf32>
    %140 = vector.shape_cast %139 : vector<2x8xf32> to vector<2x8x1xf32>
    %141 = vector.broadcast %140 : vector<2x8x1xf32> to vector<2x8x16xf32>
    %142 = arith.subf %138, %141 : vector<2x8x16xf32>
    %143 = math.exp %142 : vector<2x8x16xf32>
    %cst_69 = arith.constant dense<0.000000e+00> : vector<2x8xf32>
    %144 = vector.multi_reduction <add>, %143, %cst_69 [2] : vector<2x8x16xf32> to vector<2x8xf32>
    %145 = vector.shape_cast %144 : vector<2x8xf32> to vector<2x8x1xf32>
    %146 = tpu.reciprocal %145 {approx = true} : vector<2x8x1xf32> -> vector<2x8x1xf32>
    %147 = vector.broadcast %146 : vector<2x8x1xf32> to vector<2x8x16xf32>
    %148 = arith.mulf %143, %147 : vector<2x8x16xf32>
    %149 = arith.truncf %148 : vector<2x8x16xf32> to vector<2x8x16xbf16>
    "tpu.trace_start"() <{level = 10 : i32, message = "hqk,hkd->hqd"}> : () -> ()
    %cst_70 = arith.constant dense<0.000000e+00> : vector<2x8x16xf32>
    %150 = tpu.matmul %149, %127, %cst_70 {dimension_numbers = #tpu.dot_dimension_numbers<[2], [1], [1], [2], [0, 0, 0, 1, 1, 2], [0], [0]>} : vector<2x8x16xbf16>, vector<2x16x16xbf16>, vector<2x8x16xf32> -> vector<2x8x16xf32>
    "tpu.trace_stop"() : () -> ()
    %151 = arith.truncf %150 : vector<2x8x16xf32> to vector<2x8x16xbf16>
    %c0_71 = arith.constant 0 : index
    %c8_72 = arith.constant 8 : index
    %c0_73 = arith.constant 0 : index
    %152 = vector.load %arg22[%c0_71, %c8_72, %c0_73] : memref<2x16x16xbf16, #tpu.memory_space<vmem>>, vector<2x8x16xbf16>
    tpu.vector_store %arg22[%c0_71, %c8_72, %c0_73], %151 {strides = array<i32>} : memref<2x16x16xbf16, #tpu.memory_space<vmem>>, vector<2x8x16xbf16>,
    %c0_74 = arith.constant 0 : index
    %c0_75 = arith.constant 0 : index
    %c0_76 = arith.constant 0 : index
    %153 = vector.load %arg22[%c0_74, %c0_75, %c0_76] : memref<2x16x16xbf16, #tpu.memory_space<vmem>>, vector<1x16x16xbf16>
    %154 = vector.shape_cast %153 : vector<1x16x16xbf16> to vector<16x16xbf16>
    %c1_77 = arith.constant 1 : index
    %c0_78 = arith.constant 0 : index
    %c0_79 = arith.constant 0 : index
    %155 = vector.load %arg22[%c1_77, %c0_78, %c0_79] : memref<2x16x16xbf16, #tpu.memory_space<vmem>>, vector<1x16x16xbf16>
    %156 = vector.shape_cast %155 : vector<1x16x16xbf16> to vector<16x16xbf16>
    %157 = tpu.concatenate %154, %156 in 1 : vector<16x16xbf16>, vector<16x16xbf16> -> vector<16x32xbf16>
    %c0_80 = arith.constant 0 : index
    %c0_81 = arith.constant 0 : index
    %c0_82 = arith.constant 0 : index
    %158 = vector.load %arg9[%c0_80, %c0_81, %c0_82] : memref<1x32x32xbf16, #tpu.memory_space<vmem>>, vector<1x32x32xbf16>
    %159 = vector.shape_cast %158 : vector<1x32x32xbf16> to vector<32x32xbf16>
    %cst_83 = arith.constant dense<0.000000e+00> : vector<16x32xf32>
    %160 = tpu.matmul %157, %159, %cst_83 {dimension_numbers = #tpu.dot_dimension_numbers<[1], [0], [0], [1], [0, 0, 1, 1], [], []>} : vector<16x32xbf16>, vector<32x32xbf16>, vector<16x32xf32> -> vector<16x32xf32>
    %161 = arith.addf %3, %160 : vector<16x32xf32>
    %c0_84 = arith.constant 0 : index
    %c0_85 = arith.constant 0 : index
    %c0_86 = arith.constant 0 : index
    %162 = vector.load %arg10[%c0_84, %c0_85, %c0_86] : memref<1x1x32xf32, #tpu.memory_space<vmem>>, vector<1x1x32xf32>
    %163 = vector.shape_cast %162 : vector<1x1x32xf32> to vector<1x32xf32>
    %c0_87 = arith.constant 0 : index
    %c0_88 = arith.constant 0 : index
    %c0_89 = arith.constant 0 : index
    %164 = vector.load %arg11[%c0_87, %c0_88, %c0_89] : memref<1x1x32xf32, #tpu.memory_space<vmem>>, vector<1x1x32xf32>
    %165 = vector.shape_cast %164 : vector<1x1x32xf32> to vector<1x32xf32>
    %cst_90 = arith.constant dense<0.000000e+00> : vector<16xf32>
    %166 = vector.multi_reduction <add>, %161, %cst_90 [1] : vector<16x32xf32> to vector<16xf32>
    %167 = vector.shape_cast %166 : vector<16xf32> to vector<16x1xf32>
    %cst_91 = arith.constant 3.200000e+01 : f32
    %168 = vector.broadcast %cst_91 : f32 to vector<16x1xf32>
    %169 = arith.divf %167, %168 : vector<16x1xf32>
    %170 = vector.broadcast %169 : vector<16x1xf32> to vector<16x32xf32>
    %171 = arith.subf %161, %170 : vector<16x32xf32>
    %172 = arith.mulf %171, %171 : vector<16x32xf32>
    %cst_92 = arith.constant dense<0.000000e+00> : vector<16xf32>
    %173 = vector.multi_reduction <add>, %172, %cst_92 [1] : vector<16x32xf32> to vector<16xf32>
    %174 = vector.shape_cast %173 : vector<16xf32> to vector<16x1xf32>
    %cst_93 = arith.constant 3.200000e+01 : f32
    %175 = vector.broadcast %cst_93 : f32 to vector<16x1xf32>
    %176 = arith.divf %174, %175 : vector<16x1xf32>
    %177 = vector.broadcast %169 : vector<16x1xf32> to vector<16x32xf32>
    %178 = arith.subf %161, %177 : vector<16x32xf32>
    %cst_94 = arith.constant 9.99999974E-6 : f32
    %179 = vector.broadcast %cst_94 : f32 to vector<16x1xf32>
    %180 = arith.addf %176, %179 : vector<16x1xf32>
    %181 = math.rsqrt %180 : vector<16x1xf32>
    %182 = vector.broadcast %181 : vector<16x1xf32> to vector<16x32xf32>
    %183 = arith.mulf %178, %182 : vector<16x32xf32>
    %184 = vector.broadcast %163 : vector<1x32xf32> to vector<16x32xf32>
    %185 = arith.mulf %183, %184 : vector<16x32xf32>
    %186 = vector.broadcast %165 : vector<1x32xf32> to vector<16x32xf32>
    %187 = arith.addf %185, %186 : vector<16x32xf32>
    %188 = arith.truncf %187 : vector<16x32xf32> to vector<16x32xbf16>
    %c0_95 = arith.constant 0 : index
    %c0_96 = arith.constant 0 : index
    %c0_97 = arith.constant 0 : index
    %189 = vector.load %arg12[%c0_95, %c0_96, %c0_97] : memref<1x32x128xbf16, #tpu.memory_space<vmem>>, vector<1x32x32xbf16>
    %190 = vector.shape_cast %189 : vector<1x32x32xbf16> to vector<32x32xbf16>
    %cst_98 = arith.constant dense<0.000000e+00> : vector<16x32xf32>
    %191 = tpu.matmul %188, %190, %cst_98 {dimension_numbers = #tpu.dot_dimension_numbers<[1], [0], [0], [1], [0, 0, 1, 1], [], []>} : vector<16x32xbf16>, vector<32x32xbf16>, vector<16x32xf32> -> vector<16x32xf32>
    %c0_99 = arith.constant 0 : index
    %c0_100 = arith.constant 0 : index
    %c64 = arith.constant 64 : index
    %192 = vector.load %arg12[%c0_99, %c0_100, %c64] : memref<1x32x128xbf16, #tpu.memory_space<vmem>>, vector<1x32x32xbf16>
    %193 = vector.shape_cast %192 : vector<1x32x32xbf16> to vector<32x32xbf16>
    %cst_101 = arith.constant dense<0.000000e+00> : vector<16x32xf32>
    %194 = tpu.matmul %188, %193, %cst_101 {dimension_numbers = #tpu.dot_dimension_numbers<[1], [0], [0], [1], [0, 0, 1, 1], [], []>} : vector<16x32xbf16>, vector<32x32xbf16>, vector<16x32xf32> -> vector<16x32xf32>
    %195 = arith.negf %194 : vector<16x32xf32>
    %196 = math.exp %195 : vector<16x32xf32>
    %cst_102 = arith.constant 1.000000e+00 : f32
    %197 = vector.broadcast %cst_102 : f32 to vector<16x32xf32>
    %198 = arith.addf %197, %196 : vector<16x32xf32>
    %199 = arith.divf %197, %198 : vector<16x32xf32>
    %200 = arith.mulf %194, %199 : vector<16x32xf32>
    %201 = arith.mulf %191, %200 : vector<16x32xf32>
    %202 = arith.truncf %201 : vector<16x32xf32> to vector<16x32xbf16>
    %c0_103 = arith.constant 0 : index
    %c0_104 = arith.constant 0 : index
    %c0_105 = arith.constant 0 : index
    %203 = vector.load %arg13[%c0_103, %c0_104, %c0_105] : memref<1x64x32xbf16, #tpu.memory_space<vmem>>, vector<1x32x32xbf16>
    %204 = vector.shape_cast %203 : vector<1x32x32xbf16> to vector<32x32xbf16>
    %cst_106 = arith.constant dense<0.000000e+00> : vector<16x32xf32>
    %205 = tpu.matmul %202, %204, %cst_106 {dimension_numbers = #tpu.dot_dimension_numbers<[1], [0], [0], [1], [0, 0, 1, 1], [], []>} : vector<16x32xbf16>, vector<32x32xbf16>, vector<16x32xf32> -> vector<16x32xf32>
    %206 = arith.addf %161, %205 : vector<16x32xf32>
    %c0_107 = arith.constant 0 : index
    %c0_108 = arith.constant 0 : index
    %c32 = arith.constant 32 : index
    %207 = vector.load %arg12[%c0_107, %c0_108, %c32] : memref<1x32x128xbf16, #tpu.memory_space<vmem>>, vector<1x32x32xbf16>
    %208 = vector.shape_cast %207 : vector<1x32x32xbf16> to vector<32x32xbf16>
    %cst_109 = arith.constant dense<0.000000e+00> : vector<16x32xf32>
    %209 = tpu.matmul %188, %208, %cst_109 {dimension_numbers = #tpu.dot_dimension_numbers<[1], [0], [0], [1], [0, 0, 1, 1], [], []>} : vector<16x32xbf16>, vector<32x32xbf16>, vector<16x32xf32> -> vector<16x32xf32>
    %c0_110 = arith.constant 0 : index
    %c0_111 = arith.constant 0 : index
    %c96 = arith.constant 96 : index
    %210 = vector.load %arg12[%c0_110, %c0_111, %c96] : memref<1x32x128xbf16, #tpu.memory_space<vmem>>, vector<1x32x32xbf16>
    %211 = vector.shape_cast %210 : vector<1x32x32xbf16> to vector<32x32xbf16>
    %cst_112 = arith.constant dense<0.000000e+00> : vector<16x32xf32>
    %212 = tpu.matmul %188, %211, %cst_112 {dimension_numbers = #tpu.dot_dimension_numbers<[1], [0], [0], [1], [0, 0, 1, 1], [], []>} : vector<16x32xbf16>, vector<32x32xbf16>, vector<16x32xf32> -> vector<16x32xf32>
    %213 = arith.negf %212 : vector<16x32xf32>
    %214 = math.exp %213 : vector<16x32xf32>
    %cst_113 = arith.constant 1.000000e+00 : f32
    %215 = vector.broadcast %cst_113 : f32 to vector<16x32xf32>
    %216 = arith.addf %215, %214 : vector<16x32xf32>
    %217 = arith.divf %215, %216 : vector<16x32xf32>
    %218 = arith.mulf %212, %217 : vector<16x32xf32>
    %219 = arith.mulf %209, %218 : vector<16x32xf32>
    %220 = arith.truncf %219 : vector<16x32xf32> to vector<16x32xbf16>
    %c0_114 = arith.constant 0 : index
    %c32_115 = arith.constant 32 : index
    %c0_116 = arith.constant 0 : index
    %221 = vector.load %arg13[%c0_114, %c32_115, %c0_116] : memref<1x64x32xbf16, #tpu.memory_space<vmem>>, vector<1x32x32xbf16>
    %222 = vector.shape_cast %221 : vector<1x32x32xbf16> to vector<32x32xbf16>
    %cst_117 = arith.constant dense<0.000000e+00> : vector<16x32xf32>
    %223 = tpu.matmul %220, %222, %cst_117 {dimension_numbers = #tpu.dot_dimension_numbers<[1], [0], [0], [1], [0, 0, 1, 1], [], []>} : vector<16x32xbf16>, vector<32x32xbf16>, vector<16x32xf32> -> vector<16x32xf32>
    %224 = arith.addf %206, %223 : vector<16x32xf32>
    %c0_118 = arith.constant 0 : index
    %c0_119 = arith.constant 0 : index
    %225 = vector.load %arg18[%c0_118, %c0_119] : memref<16x32xf32, #tpu.memory_space<vmem>>, vector<16x32xf32>
    tpu.vector_store %arg18[%c0_118, %c0_119], %224 {strides = array<i32>} : memref<16x32xf32, #tpu.memory_space<vmem>>, vector<16x32xf32>,
    %c1_i32 = arith.constant 1 : i32
    %226 = arith.cmpi eq, %arg1, %c1_i32 : i32
    %227 = arith.extui %226 : i1 to i32
    %c0_i32_120 = arith.constant 0 : i32
    %228 = arith.cmpi ne, %227, %c0_i32_120 : i32
    scf.if %228 {
      %c0_121 = arith.constant 0 : index
      %c0_122 = arith.constant 0 : index
      %229 = vector.load %arg14[%c0_121, %c0_122] : memref<1x32xf32, #tpu.memory_space<vmem>>, vector<1x32xf32>
      %c0_123 = arith.constant 0 : index
      %c0_124 = arith.constant 0 : index
      %230 = vector.load %arg15[%c0_123, %c0_124] : memref<1x32xf32, #tpu.memory_space<vmem>>, vector<1x32xf32>
      %cst_125 = arith.constant dense<0.000000e+00> : vector<16xf32>
      %231 = vector.multi_reduction <add>, %224, %cst_125 [1] : vector<16x32xf32> to vector<16xf32>
      %232 = vector.shape_cast %231 : vector<16xf32> to vector<16x1xf32>
      %cst_126 = arith.constant 3.200000e+01 : f32
      %233 = vector.broadcast %cst_126 : f32 to vector<16x1xf32>
      %234 = arith.divf %232, %233 : vector<16x1xf32>
      %235 = vector.broadcast %234 : vector<16x1xf32> to vector<16x32xf32>
      %236 = arith.subf %224, %235 : vector<16x32xf32>
      %237 = arith.mulf %236, %236 : vector<16x32xf32>
      %cst_127 = arith.constant dense<0.000000e+00> : vector<16xf32>
      %238 = vector.multi_reduction <add>, %237, %cst_127 [1] : vector<16x32xf32> to vector<16xf32>
      %239 = vector.shape_cast %238 : vector<16xf32> to vector<16x1xf32>
      %cst_128 = arith.constant 3.200000e+01 : f32
      %240 = vector.broadcast %cst_128 : f32 to vector<16x1xf32>
      %241 = arith.divf %239, %240 : vector<16x1xf32>
      %242 = vector.broadcast %234 : vector<16x1xf32> to vector<16x32xf32>
      %243 = arith.subf %224, %242 : vector<16x32xf32>
      %cst_129 = arith.constant 9.99999974E-6 : f32
      %244 = vector.broadcast %cst_129 : f32 to vector<16x1xf32>
      %245 = arith.addf %241, %244 : vector<16x1xf32>
      %246 = math.rsqrt %245 : vector<16x1xf32>
      %247 = vector.broadcast %246 : vector<16x1xf32> to vector<16x32xf32>
      %248 = arith.mulf %243, %247 : vector<16x32xf32>
      %249 = vector.broadcast %229 : vector<1x32xf32> to vector<16x32xf32>
      %250 = arith.mulf %248, %249 : vector<16x32xf32>
      %251 = vector.broadcast %230 : vector<1x32xf32> to vector<16x32xf32>
      %252 = arith.addf %250, %251 : vector<16x32xf32>
      %253 = arith.truncf %252 : vector<16x32xf32> to vector<16x32xbf16>
      %c0_130 = arith.constant 0 : index
      %c0_131 = arith.constant 0 : index
      %254 = vector.load %arg16[%c0_130, %c0_131] : memref<32x768xbf16, #tpu.memory_space<vmem>>, vector<32x768xbf16>
      %cst_132 = arith.constant dense<0.000000e+00> : vector<16x768xf32>
      %255 = tpu.matmul %253, %254, %cst_132 {dimension_numbers = #tpu.dot_dimension_numbers<[1], [0], [0], [1], [0, 0, 1, 1], [], []>} : vector<16x32xbf16>, vector<32x768xbf16>, vector<16x768xf32> -> vector<16x768xf32>
      %c0_133 = arith.constant 0 : index
      %c0_134 = arith.constant 0 : index
      %c0_135 = arith.constant 0 : index
      %256 = vector.load %arg17[%c0_133, %c0_134, %c0_135] : memref<1x16x768xf32, #tpu.memory_space<vmem>>, vector<1x16x768xf32>
      %257 = vector.shape_cast %256 : vector<1x16x768xf32> to vector<16x768xf32>
      %258 = vector.shape_cast %255 : vector<16x768xf32> to vector<1x16x768xf32>
      tpu.vector_store %arg17[%c0_133, %c0_134, %c0_135], %258 {strides = array<i32>} : memref<1x16x768xf32, #tpu.memory_space<vmem>>, vector<1x16x768xf32>,
    } else {
    }
    return
  }
  func.func @transform_0(%arg0: i32, %arg1: i32) -> (i32, i32, i32) {
    %c0_i32 = arith.constant 0 : i32
    %c0_i32_0 = arith.constant 0 : i32
    %c0_i32_1 = arith.constant 0 : i32
    return %arg0, %c0_i32, %c0_i32_0 : i32, i32, i32
  }
  func.func @transform_1(%arg0: i32, %arg1: i32) -> (i32, i32) {
    %c0_i32 = arith.constant 0 : i32
    %c0_i32_0 = arith.constant 0 : i32
    %c0_i32_1 = arith.constant 0 : i32
    return %c0_i32, %c0_i32_0 : i32, i32
  }
  func.func @transform_2(%arg0: i32, %arg1: i32) -> (i32, i32) {
    %c0_i32 = arith.constant 0 : i32
    %c0_i32_0 = arith.constant 0 : i32
    %c0_i32_1 = arith.constant 0 : i32
    return %c0_i32, %c0_i32_0 : i32, i32
  }
  func.func @transform_3(%arg0: i32, %arg1: i32) -> (i32, i32) {
    %c0_i32 = arith.constant 0 : i32
    %c0_i32_0 = arith.constant 0 : i32
    %c0_i32_1 = arith.constant 0 : i32
    return %c0_i32, %c0_i32_0 : i32, i32
  }
  func.func @transform_4(%arg0: i32, %arg1: i32) -> (i32, i32, i32) {
    %c0_i32 = arith.constant 0 : i32
    %c0_i32_0 = arith.constant 0 : i32
    %c0_i32_1 = arith.constant 0 : i32
    return %arg1, %c0_i32, %c0_i32_0 : i32, i32, i32
  }
  func.func @transform_5(%arg0: i32, %arg1: i32) -> (i32, i32, i32) {
    %c0_i32 = arith.constant 0 : i32
    %c0_i32_0 = arith.constant 0 : i32
    %c0_i32_1 = arith.constant 0 : i32
    return %arg1, %c0_i32, %c0_i32_0 : i32, i32, i32
  }
  func.func @transform_6(%arg0: i32, %arg1: i32) -> (i32, i32, i32) {
    %c0_i32 = arith.constant 0 : i32
    %c0_i32_0 = arith.constant 0 : i32
    %c0_i32_1 = arith.constant 0 : i32
    return %arg1, %c0_i32, %c0_i32_0 : i32, i32, i32
  }
  func.func @transform_7(%arg0: i32, %arg1: i32) -> (i32, i32, i32) {
    %c0_i32 = arith.constant 0 : i32
    %c0_i32_0 = arith.constant 0 : i32
    %c0_i32_1 = arith.constant 0 : i32
    return %arg1, %c0_i32, %c0_i32_0 : i32, i32, i32
  }
  func.func @transform_8(%arg0: i32, %arg1: i32) -> (i32, i32, i32) {
    %c0_i32 = arith.constant 0 : i32
    %c0_i32_0 = arith.constant 0 : i32
    %c0_i32_1 = arith.constant 0 : i32
    return %arg1, %c0_i32, %c0_i32_0 : i32, i32, i32
  }
  func.func @transform_9(%arg0: i32, %arg1: i32) -> (i32, i32, i32) {
    %c0_i32 = arith.constant 0 : i32
    %c0_i32_0 = arith.constant 0 : i32
    %c0_i32_1 = arith.constant 0 : i32
    return %arg1, %c0_i32, %c0_i32_0 : i32, i32, i32
  }
  func.func @transform_10(%arg0: i32, %arg1: i32) -> (i32, i32, i32) {
    %c0_i32 = arith.constant 0 : i32
    %c0_i32_0 = arith.constant 0 : i32
    %c0_i32_1 = arith.constant 0 : i32
    return %arg1, %c0_i32, %c0_i32_0 : i32, i32, i32
  }
  func.func @transform_11(%arg0: i32, %arg1: i32) -> (i32, i32, i32) {
    %c0_i32 = arith.constant 0 : i32
    %c0_i32_0 = arith.constant 0 : i32
    %c0_i32_1 = arith.constant 0 : i32
    return %arg1, %c0_i32, %c0_i32_0 : i32, i32, i32
  }
  func.func @transform_12(%arg0: i32, %arg1: i32) -> (i32, i32) {
    %c0_i32 = arith.constant 0 : i32
    %c0_i32_0 = arith.constant 0 : i32
    %c0_i32_1 = arith.constant 0 : i32
    return %c0_i32, %c0_i32_0 : i32, i32
  }
  func.func @transform_13(%arg0: i32, %arg1: i32) -> (i32, i32) {
    %c0_i32 = arith.constant 0 : i32
    %c0_i32_0 = arith.constant 0 : i32
    %c0_i32_1 = arith.constant 0 : i32
    return %c0_i32, %c0_i32_0 : i32, i32
  }
  func.func @transform_14(%arg0: i32, %arg1: i32) -> (i32, i32) {
    %c0_i32 = arith.constant 0 : i32
    %c0_i32_0 = arith.constant 0 : i32
    %c0_i32_1 = arith.constant 0 : i32
    return %c0_i32, %c0_i32_0 : i32, i32
  }
  func.func @transform_15(%arg0: i32, %arg1: i32) -> (i32, i32, i32) {
    %c0_i32 = arith.constant 0 : i32
    %c0_i32_0 = arith.constant 0 : i32
    %c0_i32_1 = arith.constant 0 : i32
    return %arg0, %c0_i32, %c0_i32_0 : i32, i32, i32
  }
}

</mosaic_0001>

<llo_original>
// kernel: tpu_custom_call.1
$region0: #{tpu_custom_call.1}
  #allocation0 [shape = 'u32[]', space=smem, size = 0x4, offset = 0x4, fixed_abs, tag = 'smem constant byte address 0x4 - core index']
  #allocation1 [shape = 'u32[144,128]{1,0:T(1,128)}', space=vmem, size = 0x12000, scoped, tag = 'internal scratch']
  #allocation2 [shape = 'f32[16,32]{1,0:T(8,128)}', space=vmem, size = 0x2000, scoped, tag = 'scratch operand']
  #allocation3 [shape = 'bf16[2,16,16]{2,1,0:T(16,128)(2,1)}', space=vmem, size = 0x2000, scoped, tag = 'scratch operand']
  #allocation4 [shape = 'bf16[2,16,16]{2,1,0:T(16,128)(2,1)}', space=vmem, size = 0x2000, scoped, tag = 'scratch operand']
  #allocation5 [shape = 'bf16[2,16,16]{2,1,0:T(16,128)(2,1)}', space=vmem, size = 0x2000, scoped, tag = 'scratch operand']
  #allocation6 [shape = 'bf16[2,16,16]{2,1,0:T(16,128)(2,1)}', space=vmem, size = 0x2000, scoped, tag = 'scratch operand']
  %s0 = inlined_call_operand.hbm [shape: f32[2,16,32], index: 0, kind: input, shape index: {}]
  %s1 = inlined_call_operand.hbm [shape: bf16[16,32], index: 1, kind: input, shape index: {}]
  %s2 = inlined_call_operand.hbm [shape: bf16[16,32], index: 2, kind: input, shape index: {}]
  %s3 = inlined_call_operand.hbm [shape: bf16[16,32], index: 3, kind: input, shape index: {}]
  %s4 = inlined_call_operand.hbm [shape: f32[2,1,32], index: 4, kind: input, shape index: {}]
  %s5 = inlined_call_operand.hbm [shape: f32[2,1,32], index: 5, kind: input, shape index: {}]
  %s6 = inlined_call_operand.hbm [shape: bf16[2,32,96], index: 6, kind: input, shape index: {}]
  %s7 = inlined_call_operand.hbm [shape: bf16[2,32,32], index: 7, kind: input, shape index: {}]
  %s8 = inlined_call_operand.hbm [shape: f32[2,1,32], index: 8, kind: input, shape index: {}]
  %s9 = inlined_call_operand.hbm [shape: f32[2,1,32], index: 9, kind: input, shape index: {}]
  %s10 = inlined_call_operand.hbm [shape: bf16[2,32,128], index: 10, kind: input, shape index: {}]
  %s11 = inlined_call_operand.hbm [shape: bf16[2,64,32], index: 11, kind: input, shape index: {}]
  %s12 = inlined_call_operand.hbm [shape: f32[1,32], index: 12, kind: input, shape index: {}]
  %s13 = inlined_call_operand.hbm [shape: f32[1,32], index: 13, kind: input, shape index: {}]
  %s14 = inlined_call_operand.hbm [shape: bf16[32,768], index: 14, kind: input, shape index: {}]
  %s15 = inlined_call_operand.hbm [shape: f32[2,16,768], index: 15, kind: output, shape index: {}]
  %s16 = sld [smem:[#allocation0]]
  $region161: #{tpu_custom_call.1} parent=0
    _
  %s18 = ssub.s32 1, %s16
  %s19 = scalar_select 0, %s18, %s16
  $region1: #{tpu_custom_call.1} parent=0
    #allocation7 [shape = 'u8[16384]{0}', space=vmem, size = 0x4000, scoped, tag = 'input window, operand 0']
    #allocation8 [shape = 's32[2]{0}', space=sflag, size = 0x8, scoped, tag = 'scoped memory for tpu_custom_call.1']
    #allocation9 [shape = 's32[2]{0}', space=sflag, size = 0x8, scoped, tag = 'scoped memory for tpu_custom_call.1']
    #allocation10 [shape = 'u8[4096]{0}', space=vmem, size = 0x1000, scoped, tag = 'input window, operand 1, single buffered']
    #allocation11 [shape = 's32[1]{0}', space=sflag, size = 0x4, scoped, tag = 'scoped memory for tpu_custom_call.1']
    #allocation12 [shape = 'u8[4096]{0}', space=vmem, size = 0x1000, scoped, tag = 'input window, operand 2, single buffered']
    #allocation13 [shape = 'u8[4096]{0}', space=vmem, size = 0x1000, scoped, tag = 'input window, operand 3, single buffered']
    #allocation14 [shape = 's32[1]{0}', space=sflag, size = 0x4, scoped, tag = 'scoped memory for tpu_custom_call.1']
    #allocation15 [shape = 'u8[1024]{0}', space=vmem, size = 0x400, scoped, tag = 'input window, operand 4']
    #allocation16 [shape = 'u8[1024]{0}', space=vmem, size = 0x400, scoped, tag = 'input window, operand 5']
    #allocation17 [shape = 'u8[16384]{0}', space=vmem, size = 0x4000, scoped, tag = 'input window, operand 6']
    #allocation18 [shape = 'u8[16384]{0}', space=vmem, size = 0x4000, scoped, tag = 'input window, operand 7']
    #allocation19 [shape = 'u8[1024]{0}', space=vmem, size = 0x400, scoped, tag = 'input window, operand 8']
    #allocation20 [shape = 'u8[1024]{0}', space=vmem, size = 0x400, scoped, tag = 'input window, operand 9']
    #allocation21 [shape = 'u8[16384]{0}', space=vmem, size = 0x4000, scoped, tag = 'input window, operand 10']
    #allocation22 [shape = 'u8[32768]{0}', space=vmem, size = 0x8000, scoped, tag = 'input window, operand 11']
    #allocation23 [shape = 'u8[512]{0}', space=vmem, size = 0x400, scoped, tag = 'input window, operand 12, single buffered']
    #allocation24 [shape = 'u8[512]{0}', space=vmem, size = 0x400, scoped, tag = 'input window, operand 13, single buffered']
    #allocation25 [shape = 'u8[49152]{0}', space=vmem, size = 0xc000, scoped, tag = 'input window, operand 14, single buffered']
    #allocation26 [shape = 's32[1]{0}', space=sflag, size = 0x4, scoped, tag = 'scoped memory for tpu_custom_call.1']
    #allocation27 [shape = 'u8[98304]{0}', space=vmem, size = 0x18000, scoped, tag = 'output window, operand 0']
    %20 = vsyncpa [#allocation8], 0
    %s21 = scalar_lea.sflag [#allocation8], 1
    %22 = vsyncpa %s21, 0
    %23 = vsyncpa [#allocation11], 0
    %24 = vsyncpa [#allocation14], 0
    %25 = vsyncpa [#allocation26], 0
    %26 = vsyncpa [#allocation9], 0
    %s27 = scalar_lea.sflag [#allocation9], 1
    %28 = vsyncpa %s27, 0
    loop: start=0, step=1, limit=6
    $region2: #{tpu_custom_call.1} parent=1 // loop_pre_header
      _
    $region3: #{tpu_custom_call.1} parent=1 // loop_header
      %s30 = sphi 0, %s34
      %p31 = scmp.ge.s32.totalorder %s30, 6
      %s37 = sphi 0, %s49
      %s38 = sphi 0, %s45
      %s39 = sphi 0, %s37
      %s40 = sphi 0, %s38
      %s41 = sphi 0, %s39
      %s42 = sphi 0, %s40
      %s52 = sphi 0, %s54
      %s55 = sphi 0, %s52
      %s56 = sphi 0, %s55
      %s72 = sphi 0, %s56
      %s76 = sphi 0, %s76
      %s78 = sphi 0, %s76
      %s79 = sphi 0, %s78
      %s93 = sphi 0, %s79
      %s97 = sphi 0, %s97
      %s99 = sphi 0, %s97
      %s100 = sphi 0, %s99
      %s114 = sphi 0, %s100
      %s118 = sphi 0, %s118
      %s120 = sphi 0, %s118
      %s121 = sphi 0, %s120
      %s135 = sphi 0, %s121
      %s141 = sphi 0, %s143
      %s144 = sphi 0, %s141
      %s145 = sphi 0, %s144
      %s161 = sphi 0, %s145
      %s167 = sphi 0, %s169
      %s170 = sphi 0, %s167
      %s171 = sphi 0, %s170
      %s187 = sphi 0, %s171
      %s193 = sphi 0, %s195
      %s196 = sphi 0, %s193
      %s197 = sphi 0, %s196
      %s213 = sphi 0, %s197
      %s219 = sphi 0, %s221
      %s222 = sphi 0, %s219
      %s223 = sphi 0, %s222
      %s239 = sphi 0, %s223
      %s245 = sphi 0, %s247
      %s248 = sphi 0, %s245
      %s249 = sphi 0, %s248
      %s265 = sphi 0, %s249
      %s271 = sphi 0, %s273
      %s274 = sphi 0, %s271
      %s275 = sphi 0, %s274
      %s291 = sphi 0, %s275
      %s297 = sphi 0, %s299
      %s300 = sphi 0, %s297
      %s301 = sphi 0, %s300
      %s317 = sphi 0, %s301
      %s323 = sphi 0, %s325
      %s326 = sphi 0, %s323
      %s327 = sphi 0, %s326
      %s343 = sphi 0, %s327
      %s347 = sphi 0, %s347
      %s349 = sphi 0, %s347
      %s350 = sphi 0, %s349
      %s364 = sphi 0, %s350
      %s368 = sphi 0, %s368
      %s370 = sphi 0, %s368
      %s371 = sphi 0, %s370
      %s385 = sphi 0, %s371
      %s389 = sphi 0, %s389
      %s391 = sphi 0, %s389
      %s392 = sphi 0, %s391
      %s406 = sphi 0, %s392
      %s412 = sphi 0, %s414
      %s415 = sphi 0, %s412
      %s416 = sphi 0, %s415
      %s432 = sphi 0, %s416
    $region4: #{tpu_custom_call.1} parent=1 // loop_header_branch
      %33 = sbr.rel (%p31) target = $region8
    $region5: #{tpu_custom_call.1} parent=1 // loop_body
      %s35 = ssub.s32 %s30, 1
      %s36 = ssub.s32 %s30, 2
      %s43 = sadd.s32 1, %s38
      %p44 = scmp.ge.s32.totalorder %s43, 2
      %s45 = scalar_select %p44, 0, %s43
      %s46 = sadd.s32 1, %s37
      %s47 = scalar_select %p44, %s46, %s37
      %p48 = scmp.ge.s32.totalorder %s47, 2
      %s49 = scalar_select %p48, 0, %s47
      %s50 = ssub.s32 %s37, %s49
      %p51 = scmp.eq.s32.totalorder %s50, 0
      %s53 = sadd.s32 %s52, 1
      %s54 = scalar_select %p51, %s52, %s53
      %p57 = pneg %p51
      %p58 = scmp.eq.s32.totalorder %s30, 3
      %p59 = por %p57, %p58
      %p60 = scmp.ne.s32.totalorder %s52, %s55
      %p61 = scmp.eq.s32.totalorder %s30, 0
      %p62 = por %p60, %p61
      %p63 = scmp.ne.s32.totalorder %s52, %s55
      %p64 = scmp.eq.s32.totalorder %s35, 3
      %p65 = por %p63, %p64
      %p66 = scmp.ne.s32.totalorder %s55, %s56
      %p67 = scmp.eq.s32.totalorder %s35, 0
      %p68 = por %p66, %p67
      %p69 = scmp.ne.s32.totalorder %s55, %s56
      %p70 = scmp.eq.s32.totalorder %s36, 3
      %p71 = por %p69, %p70
      %p73 = scmp.ne.s32.totalorder %s56, %s72
      %p74 = scmp.eq.s32.totalorder %s36, 0
      %p75 = por %p73, %p74
      %s77 = sadd.s32 %s76, 1
      %p80 = scmp.eq.s32.totalorder %s30, 3
      %p81 = scmp.ne.s32.totalorder %s76, %s78
      %p82 = scmp.eq.s32.totalorder %s30, 0
      %p83 = por %p81, %p82
      %p84 = scmp.ne.s32.totalorder %s76, %s78
      %p85 = scmp.eq.s32.totalorder %s35, 3
      %p86 = por %p84, %p85
      %p87 = scmp.ne.s32.totalorder %s78, %s79
      %p88 = scmp.eq.s32.totalorder %s35, 0
      %p89 = por %p87, %p88
      %p90 = scmp.ne.s32.totalorder %s78, %s79
      %p91 = scmp.eq.s32.totalorder %s36, 3
      %p92 = por %p90, %p91
      %p94 = scmp.ne.s32.totalorder %s79, %s93
      %p95 = scmp.eq.s32.totalorder %s36, 0
      %p96 = por %p94, %p95
      %s98 = sadd.s32 %s97, 1
      %p101 = scmp.eq.s32.totalorder %s30, 3
      %p102 = scmp.ne.s32.totalorder %s97, %s99
      %p103 = scmp.eq.s32.totalorder %s30, 0
      %p104 = por %p102, %p103
      %p105 = scmp.ne.s32.totalorder %s97, %s99
      %p106 = scmp.eq.s32.totalorder %s35, 3
      %p107 = por %p105, %p106
      %p108 = scmp.ne.s32.totalorder %s99, %s100
      %p109 = scmp.eq.s32.totalorder %s35, 0
      %p110 = por %p108, %p109
      %p111 = scmp.ne.s32.totalorder %s99, %s100
      %p112 = scmp.eq.s32.totalorder %s36, 3
      %p113 = por %p111, %p112
      %p115 = scmp.ne.s32.totalorder %s100, %s114
      %p116 = scmp.eq.s32.totalorder %s36, 0
      %p117 = por %p115, %p116
      %s119 = sadd.s32 %s118, 1
      %p122 = scmp.eq.s32.totalorder %s30, 3
      %p123 = scmp.ne.s32.totalorder %s118, %s120
      %p124 = scmp.eq.s32.totalorder %s30, 0
      %p125 = por %p123, %p124
      %p126 = scmp.ne.s32.totalorder %s118, %s120
      %p127 = scmp.eq.s32.totalorder %s35, 3
      %p128 = por %p126, %p127
      %p129 = scmp.ne.s32.totalorder %s120, %s121
      %p130 = scmp.eq.s32.totalorder %s35, 0
      %p131 = por %p129, %p130
      %p132 = scmp.ne.s32.totalorder %s120, %s121
      %p133 = scmp.eq.s32.totalorder %s36, 3
      %p134 = por %p132, %p133
      %p136 = scmp.ne.s32.totalorder %s121, %s135
      %p137 = scmp.eq.s32.totalorder %s36, 0
      %p138 = por %p136, %p137
      %s139 = ssub.s32 %s38, %s45
      %p140 = scmp.eq.s32.totalorder %s139, 0
      %s142 = sadd.s32 %s141, 1
      %s143 = scalar_select %p140, %s141, %s142
      %p146 = pneg %p140
      %p147 = scmp.eq.s32.totalorder %s30, 3
      %p148 = por %p146, %p147
      %p149 = scmp.ne.s32.totalorder %s141, %s144
      %p150 = scmp.eq.s32.totalorder %s30, 0
      %p151 = por %p149, %p150
      %p152 = scmp.ne.s32.totalorder %s141, %s144
      %p153 = scmp.eq.s32.totalorder %s35, 3
      %p154 = por %p152, %p153
      %p155 = scmp.ne.s32.totalorder %s144, %s145
      %p156 = scmp.eq.s32.totalorder %s35, 0
      %p157 = por %p155, %p156
      %p158 = scmp.ne.s32.totalorder %s144, %s145
      %p159 = scmp.eq.s32.totalorder %s36, 3
      %p160 = por %p158, %p159
      %p162 = scmp.ne.s32.totalorder %s145, %s161
      %p163 = scmp.eq.s32.totalorder %s36, 0
      %p164 = por %p162, %p163
      %s165 = ssub.s32 %s38, %s45
      %p166 = scmp.eq.s32.totalorder %s165, 0
      %s168 = sadd.s32 %s167, 1
      %s169 = scalar_select %p166, %s167, %s168
      %p172 = pneg %p166
      %p173 = scmp.eq.s32.totalorder %s30, 3
      %p174 = por %p172, %p173
      %p175 = scmp.ne.s32.totalorder %s167, %s170
      %p176 = scmp.eq.s32.totalorder %s30, 0
      %p177 = por %p175, %p176
      %p178 = scmp.ne.s32.totalorder %s167, %s170
      %p179 = scmp.eq.s32.totalorder %s35, 3
      %p180 = por %p178, %p179
      %p181 = scmp.ne.s32.totalorder %s170, %s171
      %p182 = scmp.eq.s32.totalorder %s35, 0
      %p183 = por %p181, %p182
      %p184 = scmp.ne.s32.totalorder %s170, %s171
      %p185 = scmp.eq.s32.totalorder %s36, 3
      %p186 = por %p184, %p185
      %p188 = scmp.ne.s32.totalorder %s171, %s187
      %p189 = scmp.eq.s32.totalorder %s36, 0
      %p190 = por %p188, %p189
      %s191 = ssub.s32 %s38, %s45
      %p192 = scmp.eq.s32.totalorder %s191, 0
      %s194 = sadd.s32 %s193, 1
      %s195 = scalar_select %p192, %s193, %s194
      %p198 = pneg %p192
      %p199 = scmp.eq.s32.totalorder %s30, 3
      %p200 = por %p198, %p199
      %p201 = scmp.ne.s32.totalorder %s193, %s196
      %p202 = scmp.eq.s32.totalorder %s30, 0
      %p203 = por %p201, %p202
      %p204 = scmp.ne.s32.totalorder %s193, %s196
      %p205 = scmp.eq.s32.totalorder %s35, 3
      %p206 = por %p204, %p205
      %p207 = scmp.ne.s32.totalorder %s196, %s197
      %p208 = scmp.eq.s32.totalorder %s35, 0
      %p209 = por %p207, %p208
      %p210 = scmp.ne.s32.totalorder %s196, %s197
      %p211 = scmp.eq.s32.totalorder %s36, 3
      %p212 = por %p210, %p211
      %p214 = scmp.ne.s32.totalorder %s197, %s213
      %p215 = scmp.eq.s32.totalorder %s36, 0
      %p216 = por %p214, %p215
      %s217 = ssub.s32 %s38, %s45
      %p218 = scmp.eq.s32.totalorder %s217, 0
      %s220 = sadd.s32 %s219, 1
      %s221 = scalar_select %p218, %s219, %s220
      %p224 = pneg %p218
      %p225 = scmp.eq.s32.totalorder %s30, 3
      %p226 = por %p224, %p225
      %p227 = scmp.ne.s32.totalorder %s219, %s222
      %p228 = scmp.eq.s32.totalorder %s30, 0
      %p229 = por %p227, %p228
      %p230 = scmp.ne.s32.totalorder %s219, %s222
      %p231 = scmp.eq.s32.totalorder %s35, 3
      %p232 = por %p230, %p231
      %p233 = scmp.ne.s32.totalorder %s222, %s223
      %p234 = scmp.eq.s32.totalorder %s35, 0
      %p235 = por %p233, %p234
      %p236 = scmp.ne.s32.totalorder %s222, %s223
      %p237 = scmp.eq.s32.totalorder %s36, 3
      %p238 = por %p236, %p237
      %p240 = scmp.ne.s32.totalorder %s223, %s239
      %p241 = scmp.eq.s32.totalorder %s36, 0
      %p242 = por %p240, %p241
      %s243 = ssub.s32 %s38, %s45
      %p244 = scmp.eq.s32.totalorder %s243, 0
      %s246 = sadd.s32 %s245, 1
      %s247 = scalar_select %p244, %s245, %s246
      %p250 = pneg %p244
      %p251 = scmp.eq.s32.totalorder %s30, 3
      %p252 = por %p250, %p251
      %p253 = scmp.ne.s32.totalorder %s245, %s248
      %p254 = scmp.eq.s32.totalorder %s30, 0
      %p255 = por %p253, %p254
      %p256 = scmp.ne.s32.totalorder %s245, %s248
      %p257 = scmp.eq.s32.totalorder %s35, 3
      %p258 = por %p256, %p257
      %p259 = scmp.ne.s32.totalorder %s248, %s249
      %p260 = scmp.eq.s32.totalorder %s35, 0
      %p261 = por %p259, %p260
      %p262 = scmp.ne.s32.totalorder %s248, %s249
      %p263 = scmp.eq.s32.totalorder %s36, 3
      %p264 = por %p262, %p263
      %p266 = scmp.ne.s32.totalorder %s249, %s265
      %p267 = scmp.eq.s32.totalorder %s36, 0
      %p268 = por %p266, %p267
      %s269 = ssub.s32 %s38, %s45
      %p270 = scmp.eq.s32.totalorder %s269, 0
      %s272 = sadd.s32 %s271, 1
      %s273 = scalar_select %p270, %s271, %s272
      %p276 = pneg %p270
      %p277 = scmp.eq.s32.totalorder %s30, 3
      %p278 = por %p276, %p277
      %p279 = scmp.ne.s32.totalorder %s271, %s274
      %p280 = scmp.eq.s32.totalorder %s30, 0
      %p281 = por %p279, %p280
      %p282 = scmp.ne.s32.totalorder %s271, %s274
      %p283 = scmp.eq.s32.totalorder %s35, 3
      %p284 = por %p282, %p283
      %p285 = scmp.ne.s32.totalorder %s274, %s275
      %p286 = scmp.eq.s32.totalorder %s35, 0
      %p287 = por %p285, %p286
      %p288 = scmp.ne.s32.totalorder %s274, %s275
      %p289 = scmp.eq.s32.totalorder %s36, 3
      %p290 = por %p288, %p289
      %p292 = scmp.ne.s32.totalorder %s275, %s291
      %p293 = scmp.eq.s32.totalorder %s36, 0
      %p294 = por %p292, %p293
      %s295 = ssub.s32 %s38, %s45
      %p296 = scmp.eq.s32.totalorder %s295, 0
      %s298 = sadd.s32 %s297, 1
      %s299 = scalar_select %p296, %s297, %s298
      %p302 = pneg %p296
      %p303 = scmp.eq.s32.totalorder %s30, 3
      %p304 = por %p302, %p303
      %p305 = scmp.ne.s32.totalorder %s297, %s300
      %p306 = scmp.eq.s32.totalorder %s30, 0
      %p307 = por %p305, %p306
      %p308 = scmp.ne.s32.totalorder %s297, %s300
      %p309 = scmp.eq.s32.totalorder %s35, 3
      %p310 = por %p308, %p309
      %p311 = scmp.ne.s32.totalorder %s300, %s301
      %p312 = scmp.eq.s32.totalorder %s35, 0
      %p313 = por %p311, %p312
      %p314 = scmp.ne.s32.totalorder %s300, %s301
      %p315 = scmp.eq.s32.totalorder %s36, 3
      %p316 = por %p314, %p315
      %p318 = scmp.ne.s32.totalorder %s301, %s317
      %p319 = scmp.eq.s32.totalorder %s36, 0
      %p320 = por %p318, %p319
      %s321 = ssub.s32 %s38, %s45
      %p322 = scmp.eq.s32.totalorder %s321, 0
      %s324 = sadd.s32 %s323, 1
      %s325 = scalar_select %p322, %s323, %s324
      %p328 = pneg %p322
      %p329 = scmp.eq.s32.totalorder %s30, 3
      %p330 = por %p328, %p329
      %p331 = scmp.ne.s32.totalorder %s323, %s326
      %p332 = scmp.eq.s32.totalorder %s30, 0
      %p333 = por %p331, %p332
      %p334 = scmp.ne.s32.totalorder %s323, %s326
      %p335 = scmp.eq.s32.totalorder %s35, 3
      %p336 = por %p334, %p335
      %p337 = scmp.ne.s32.totalorder %s326, %s327
      %p338 = scmp.eq.s32.totalorder %s35, 0
      %p339 = por %p337, %p338
      %p340 = scmp.ne.s32.totalorder %s326, %s327
      %p341 = scmp.eq.s32.totalorder %s36, 3
      %p342 = por %p340, %p341
      %p344 = scmp.ne.s32.totalorder %s327, %s343
      %p345 = scmp.eq.s32.totalorder %s36, 0
      %p346 = por %p344, %p345
      %s348 = sadd.s32 %s347, 1
      %p351 = scmp.eq.s32.totalorder %s30, 3
      %p352 = scmp.ne.s32.totalorder %s347, %s349
      %p353 = scmp.eq.s32.totalorder %s30, 0
      %p354 = por %p352, %p353
      %p355 = scmp.ne.s32.totalorder %s347, %s349
      %p356 = scmp.eq.s32.totalorder %s35, 3
      %p357 = por %p355, %p356
      %p358 = scmp.ne.s32.totalorder %s349, %s350
      %p359 = scmp.eq.s32.totalorder %s35, 0
      %p360 = por %p358, %p359
      %p361 = scmp.ne.s32.totalorder %s349, %s350
      %p362 = scmp.eq.s32.totalorder %s36, 3
      %p363 = por %p361, %p362
      %p365 = scmp.ne.s32.totalorder %s350, %s364
      %p366 = scmp.eq.s32.totalorder %s36, 0
      %p367 = por %p365, %p366
      %s369 = sadd.s32 %s368, 1
      %p372 = scmp.eq.s32.totalorder %s30, 3
      %p373 = scmp.ne.s32.totalorder %s368, %s370
      %p374 = scmp.eq.s32.totalorder %s30, 0
      %p375 = por %p373, %p374
      %p376 = scmp.ne.s32.totalorder %s368, %s370
      %p377 = scmp.eq.s32.totalorder %s35, 3
      %p378 = por %p376, %p377
      %p379 = scmp.ne.s32.totalorder %s370, %s371
      %p380 = scmp.eq.s32.totalorder %s35, 0
      %p381 = por %p379, %p380
      %p382 = scmp.ne.s32.totalorder %s370, %s371
      %p383 = scmp.eq.s32.totalorder %s36, 3
      %p384 = por %p382, %p383
      %p386 = scmp.ne.s32.totalorder %s371, %s385
      %p387 = scmp.eq.s32.totalorder %s36, 0
      %p388 = por %p386, %p387
      %s390 = sadd.s32 %s389, 1
      %p393 = scmp.eq.s32.totalorder %s30, 3
      %p394 = scmp.ne.s32.totalorder %s389, %s391
      %p395 = scmp.eq.s32.totalorder %s30, 0
      %p396 = por %p394, %p395
      %p397 = scmp.ne.s32.totalorder %s389, %s391
      %p398 = scmp.eq.s32.totalorder %s35, 3
      %p399 = por %p397, %p398
      %p400 = scmp.ne.s32.totalorder %s391, %s392
      %p401 = scmp.eq.s32.totalorder %s35, 0
      %p402 = por %p400, %p401
      %p403 = scmp.ne.s32.totalorder %s391, %s392
      %p404 = scmp.eq.s32.totalorder %s36, 3
      %p405 = por %p403, %p404
      %p407 = scmp.ne.s32.totalorder %s392, %s406
      %p408 = scmp.eq.s32.totalorder %s36, 0
      %p409 = por %p407, %p408
      %s410 = ssub.s32 %s37, %s49
      %p411 = scmp.eq.s32.totalorder %s410, 0
      %s413 = sadd.s32 %s412, 1
      %s414 = scalar_select %p411, %s412, %s413
      %p417 = pneg %p411
      %p418 = scmp.eq.s32.totalorder %s30, 3
      %p419 = por %p417, %p418
      %p420 = scmp.ne.s32.totalorder %s412, %s415
      %p421 = scmp.eq.s32.totalorder %s30, 0
      %p422 = por %p420, %p421
      %p423 = scmp.ne.s32.totalorder %s412, %s415
      %p424 = scmp.eq.s32.totalorder %s35, 3
      %p425 = por %p423, %p424
      %p426 = scmp.ne.s32.totalorder %s415, %s416
      %p427 = scmp.eq.s32.totalorder %s35, 0
      %p428 = por %p426, %p427
      %p429 = scmp.ne.s32.totalorder %s415, %s416
      %p430 = scmp.eq.s32.totalorder %s36, 3
      %p431 = por %p429, %p430
      %p433 = scmp.ne.s32.totalorder %s416, %s432
      %p434 = scmp.eq.s32.totalorder %s36, 0
      %p435 = por %p433, %p434
      %p436 = scmp.le.s32.totalorder 1, %s30
      %p437 = scmp.lt.s32.totalorder %s30, 5
      %p438 = pnand %p436, %p437
      %p439 = pneg %p438
      // Predicated region
      $region9: #{tpu_custom_call.1} parent=5 // pred_check
        _
      $region10: #{tpu_custom_call.1} parent=5 // pred_check_branch
        %441 = sbr.rel (%p438) target = $region12
      $region11: #{tpu_custom_call.1} parent=5 // pred_region
        %s442 = ssub.s32 %s30, 1
        // Predicated region
        $region13: #{tpu_custom_call.1} parent=11 // pred_check
          %p443 = pneg %p89
        $region14: #{tpu_custom_call.1} parent=11 // pred_check_branch
          %445 = sbr.rel (%p443) target = $region16
        $region15: #{tpu_custom_call.1} parent=11 // pred_region
          %s447 = ssub.s32 128, 128
          %448 = vsyncadd [#allocation11], %s447
          %s449 = sshll.u32 [#allocation10], 4
          %s450 = int_to_ptr.vmem [resolvable:$true] %s449
          %455 = dma.hbm_to_vmem [thread:$0]  %s1, 128, %s450, [#allocation11], 64, 64, 4
        $region16: #{tpu_custom_call.1} parent=11 // pred_fallthru
          _
        // Predicated region
        $region17: #{tpu_custom_call.1} parent=11 // pred_check
          %p456 = pneg %p110
        $region18: #{tpu_custom_call.1} parent=11 // pred_check_branch
          %458 = sbr.rel (%p456) target = $region20
        $region19: #{tpu_custom_call.1} parent=11 // pred_region
          %s460 = ssub.s32 128, 128
          %461 = vsyncadd [#allocation11], %s460
          %s462 = sshll.u32 [#allocation12], 4
          %s463 = int_to_ptr.vmem [resolvable:$true] %s462
          %468 = dma.hbm_to_vmem [thread:$0]  %s2, 128, %s463, [#allocation11], 64, 64, 4
        $region20: #{tpu_custom_call.1} parent=11 // pred_fallthru
          _
        // Predicated region
        $region21: #{tpu_custom_call.1} parent=11 // pred_check
          %p469 = pneg %p131
        $region22: #{tpu_custom_call.1} parent=11 // pred_check_branch
          %471 = sbr.rel (%p469) target = $region24
        $region23: #{tpu_custom_call.1} parent=11 // pred_region
          %s473 = ssub.s32 128, 128
          %474 = vsyncadd [#allocation14], %s473
          %s475 = sshll.u32 [#allocation13], 4
          %s476 = int_to_ptr.vmem [resolvable:$true] %s475
          %481 = dma.hbm_to_vmem [thread:$0]  %s3, 128, %s476, [#allocation14], 64, 64, 4
        $region24: #{tpu_custom_call.1} parent=11 // pred_fallthru
          _
        // Predicated region
        $region25: #{tpu_custom_call.1} parent=11 // pred_check
          %p482 = pneg %p360
        $region26: #{tpu_custom_call.1} parent=11 // pred_check_branch
          %484 = sbr.rel (%p482) target = $region28
        $region27: #{tpu_custom_call.1} parent=11 // pred_region
          %s486 = ssub.s32 16, 16
          %487 = vsyncadd [#allocation11], %s486
          %s489 = sshll.u32 [#allocation23], 4
          %s490 = int_to_ptr.vmem [resolvable:$true] %s489
          %492 = dma.hbm_to_vmem [thread:$0]  %s12, 16, %s490, [#allocation11]
        $region28: #{tpu_custom_call.1} parent=11 // pred_fallthru
          _
        // Predicated region
        $region29: #{tpu_custom_call.1} parent=11 // pred_check
          %p493 = pneg %p381
        $region30: #{tpu_custom_call.1} parent=11 // pred_check_branch
          %495 = sbr.rel (%p493) target = $region32
        $region31: #{tpu_custom_call.1} parent=11 // pred_region
          %s497 = ssub.s32 16, 16
          %498 = vsyncadd [#allocation14], %s497
          %s500 = sshll.u32 [#allocation24], 4
          %s501 = int_to_ptr.vmem [resolvable:$true] %s500
          %503 = dma.hbm_to_vmem [thread:$0]  %s13, 16, %s501, [#allocation14]
        $region32: #{tpu_custom_call.1} parent=11 // pred_fallthru
          _
        // Predicated region
        $region33: #{tpu_custom_call.1} parent=11 // pred_check
          %p504 = pneg %p402
        $region34: #{tpu_custom_call.1} parent=11 // pred_check_branch
          %506 = sbr.rel (%p504) target = $region36
        $region35: #{tpu_custom_call.1} parent=11 // pred_region
          %s508 = ssub.s32 1536, 1536
          %509 = vsyncadd [#allocation26], %s508
          %s510 = sshll.u32 [#allocation25], 4
          %s511 = int_to_ptr.vmem [resolvable:$true] %s510
          %516 = dma.hbm_to_vmem [thread:$0]  %s14, 1536, %s511, [#allocation26], 384, 384, 24
        $region36: #{tpu_custom_call.1} parent=11 // pred_fallthru
          _
      $region12: #{tpu_custom_call.1} parent=5 // pred_fallthru
        _
      %p517 = scmp.lt.s32.totalorder %s30, 4
      // Predicated region
      $region37: #{tpu_custom_call.1} parent=5 // pred_check
        %p518 = pneg %p517
      $region38: #{tpu_custom_call.1} parent=5 // pred_check_branch
        %520 = sbr.rel (%p518) target = $region40
      $region39: #{tpu_custom_call.1} parent=5 // pred_region
        // Predicated region
        $region41: #{tpu_custom_call.1} parent=39 // pred_check
          %p521 = pneg %p62
        $region42: #{tpu_custom_call.1} parent=39 // pred_check_branch
          %523 = sbr.rel (%p521) target = $region44
        $region43: #{tpu_custom_call.1} parent=39 // pred_region
          %s524 = sand.u32 %s30, 1
          %s525 = scalar_lea.sflag [#allocation8], %s524
          %s526 = sand.u32 %s52, 1
          %s527 = smul.addr %s526, 16
          %s528 = scalar_lea.vmem [#allocation7], %s527
          %s530 = ssub.s32 256, 256
          %531 = vsyncadd %s525, %s530
          %s532 = smul.addr %s37, 2
          %s533 = smul.addr %s532, 128
          %s534 = scalar_lea.hbm %s0, %s533
          %s535 = sshll.u32 %s528, 4
          %s536 = int_to_ptr.vmem [resolvable:$true] %s535
          %541 = dma.hbm_to_vmem [thread:$0]  %s534, 256, %s536, %s525, 128, 128, 8
        $region44: #{tpu_custom_call.1} parent=39 // pred_fallthru
          _
        // Predicated region
        $region45: #{tpu_custom_call.1} parent=39 // pred_check
          %p542 = pneg %p151
        $region46: #{tpu_custom_call.1} parent=39 // pred_check_branch
          %544 = sbr.rel (%p542) target = $region48
        $region47: #{tpu_custom_call.1} parent=39 // pred_region
          %s545 = sand.u32 %s30, 1
          %s546 = scalar_lea.sflag [#allocation8], %s545
          %s547 = sand.u32 %s141, 1
          %s548 = scalar_lea.vmem [#allocation15], %s547
          %s550 = ssub.s32 16, 16
          %551 = vsyncadd %s546, %s550
          %s552 = smul.addr %s38, 16
          %s553 = scalar_lea.hbm %s4, %s552
          %s555 = sshll.u32 %s548, 4
          %s556 = int_to_ptr.vmem [resolvable:$true] %s555
          %558 = dma.hbm_to_vmem [thread:$0]  %s553, 16, %s556, %s546
        $region48: #{tpu_custom_call.1} parent=39 // pred_fallthru
          _
        // Predicated region
        $region49: #{tpu_custom_call.1} parent=39 // pred_check
          %p559 = pneg %p177
        $region50: #{tpu_custom_call.1} parent=39 // pred_check_branch
          %561 = sbr.rel (%p559) target = $region52
        $region51: #{tpu_custom_call.1} parent=39 // pred_region
          %s562 = sand.u32 %s30, 1
          %s563 = scalar_lea.sflag [#allocation8], %s562
          %s564 = sand.u32 %s167, 1
          %s565 = scalar_lea.vmem [#allocation16], %s564
          %s567 = ssub.s32 16, 16
          %568 = vsyncadd %s563, %s567
          %s569 = smul.addr %s38, 16
          %s570 = scalar_lea.hbm %s5, %s569
          %s572 = sshll.u32 %s565, 4
          %s573 = int_to_ptr.vmem [resolvable:$true] %s572
          %575 = dma.hbm_to_vmem [thread:$0]  %s570, 16, %s573, %s563
        $region52: #{tpu_custom_call.1} parent=39 // pred_fallthru
          _
        // Predicated region
        $region53: #{tpu_custom_call.1} parent=39 // pred_check
          %p576 = pneg %p203
        $region54: #{tpu_custom_call.1} parent=39 // pred_check_branch
          %578 = sbr.rel (%p576) target = $region56
        $region55: #{tpu_custom_call.1} parent=39 // pred_region
          %s579 = sand.u32 %s30, 1
          %s580 = scalar_lea.sflag [#allocation8], %s579
          %s581 = sand.u32 %s193, 1
          %s582 = smul.addr %s581, 16
          %s583 = scalar_lea.vmem [#allocation17], %s582
          %s585 = ssub.s32 256, 256
          %586 = vsyncadd %s580, %s585
          %s587 = smul.addr %s38, 4
          %s588 = smul.addr %s587, 64
          %s589 = scalar_lea.hbm %s6, %s588
          %s590 = sshll.u32 %s583, 4
          %s591 = int_to_ptr.vmem [resolvable:$true] %s590
          %596 = dma.hbm_to_vmem [thread:$0]  %s589, 256, %s591, %s580, 64, 64, 4
        $region56: #{tpu_custom_call.1} parent=39 // pred_fallthru
          _
        // Predicated region
        $region57: #{tpu_custom_call.1} parent=39 // pred_check
          %p597 = pneg %p229
        $region58: #{tpu_custom_call.1} parent=39 // pred_check_branch
          %599 = sbr.rel (%p597) target = $region60
        $region59: #{tpu_custom_call.1} parent=39 // pred_region
          %s600 = sand.u32 %s30, 1
          %s601 = scalar_lea.sflag [#allocation8], %s600
          %s602 = sand.u32 %s219, 1
          %s603 = smul.addr %s602, 16
          %s604 = scalar_lea.vmem [#allocation18], %s603
          %s606 = ssub.s32 256, 256
          %607 = vsyncadd %s601, %s606
          %s608 = smul.addr %s38, 4
          %s609 = smul.addr %s608, 64
          %s610 = scalar_lea.hbm %s7, %s609
          %s611 = sshll.u32 %s604, 4
          %s612 = int_to_ptr.vmem [resolvable:$true] %s611
          %617 = dma.hbm_to_vmem [thread:$0]  %s610, 256, %s612, %s601, 64, 64, 4
        $region60: #{tpu_custom_call.1} parent=39 // pred_fallthru
          _
        // Predicated region
        $region61: #{tpu_custom_call.1} parent=39 // pred_check
          %p618 = pneg %p255
        $region62: #{tpu_custom_call.1} parent=39 // pred_check_branch
          %620 = sbr.rel (%p618) target = $region64
        $region63: #{tpu_custom_call.1} parent=39 // pred_region
          %s621 = sand.u32 %s30, 1
          %s622 = scalar_lea.sflag [#allocation8], %s621
          %s623 = sand.u32 %s245, 1
          %s624 = scalar_lea.vmem [#allocation19], %s623
          %s626 = ssub.s32 16, 16
          %627 = vsyncadd %s622, %s626
          %s628 = smul.addr %s38, 16
          %s629 = scalar_lea.hbm %s8, %s628
          %s631 = sshll.u32 %s624, 4
          %s632 = int_to_ptr.vmem [resolvable:$true] %s631
          %634 = dma.hbm_to_vmem [thread:$0]  %s629, 16, %s632, %s622
        $region64: #{tpu_custom_call.1} parent=39 // pred_fallthru
          _
        // Predicated region
        $region65: #{tpu_custom_call.1} parent=39 // pred_check
          %p635 = pneg %p281
        $region66: #{tpu_custom_call.1} parent=39 // pred_check_branch
          %637 = sbr.rel (%p635) target = $region68
        $region67: #{tpu_custom_call.1} parent=39 // pred_region
          %s638 = sand.u32 %s30, 1
          %s639 = scalar_lea.sflag [#allocation8], %s638
          %s640 = sand.u32 %s271, 1
          %s641 = scalar_lea.vmem [#allocation20], %s640
          %s643 = ssub.s32 16, 16
          %644 = vsyncadd %s639, %s643
          %s645 = smul.addr %s38, 16
          %s646 = scalar_lea.hbm %s9, %s645
          %s648 = sshll.u32 %s641, 4
          %s649 = int_to_ptr.vmem [resolvable:$true] %s648
          %651 = dma.hbm_to_vmem [thread:$0]  %s646, 16, %s649, %s639
        $region68: #{tpu_custom_call.1} parent=39 // pred_fallthru
          _
        // Predicated region
        $region69: #{tpu_custom_call.1} parent=39 // pred_check
          %p652 = pneg %p307
        $region70: #{tpu_custom_call.1} parent=39 // pred_check_branch
          %654 = sbr.rel (%p652) target = $region72
        $region71: #{tpu_custom_call.1} parent=39 // pred_region
          %s655 = sand.u32 %s30, 1
          %s656 = scalar_lea.sflag [#allocation8], %s655
          %s657 = sand.u32 %s297, 1
          %s658 = smul.addr %s657, 16
          %s659 = scalar_lea.vmem [#allocation21], %s658
          %s661 = ssub.s32 256, 256
          %662 = vsyncadd %s656, %s661
          %s663 = smul.addr %s38, 4
          %s664 = smul.addr %s663, 64
          %s665 = scalar_lea.hbm %s10, %s664
          %s666 = sshll.u32 %s659, 4
          %s667 = int_to_ptr.vmem [resolvable:$true] %s666
          %672 = dma.hbm_to_vmem [thread:$0]  %s665, 256, %s667, %s656, 64, 64, 4
        $region72: #{tpu_custom_call.1} parent=39 // pred_fallthru
          _
        // Predicated region
        $region73: #{tpu_custom_call.1} parent=39 // pred_check
          %p673 = pneg %p333
        $region74: #{tpu_custom_call.1} parent=39 // pred_check_branch
          %675 = sbr.rel (%p673) target = $region76
        $region75: #{tpu_custom_call.1} parent=39 // pred_region
          %s676 = sand.u32 %s30, 1
          %s677 = scalar_lea.sflag [#allocation8], %s676
          %s678 = sand.u32 %s323, 1
          %s679 = smul.addr %s678, 32
          %s680 = scalar_lea.vmem [#allocation22], %s679
          %s682 = ssub.s32 512, 512
          %683 = vsyncadd %s677, %s682
          %s684 = smul.addr %s38, 8
          %s685 = smul.addr %s684, 64
          %s686 = scalar_lea.hbm %s11, %s685
          %s687 = sshll.u32 %s680, 4
          %s688 = int_to_ptr.vmem [resolvable:$true] %s687
          %693 = dma.hbm_to_vmem [thread:$0]  %s686, 512, %s688, %s677, 64, 64, 4
        $region76: #{tpu_custom_call.1} parent=39 // pred_fallthru
          _
      $region40: #{tpu_custom_call.1} parent=5 // pred_fallthru
        _
      %p694 = scmp.le.s32.totalorder 1, %s30
      %p695 = scmp.lt.s32.totalorder %s30, 5
      %p696 = pnand %p694, %p695
      %p697 = pneg %p696
      // Predicated region
      $region77: #{tpu_custom_call.1} parent=5 // pred_check
        _
      $region78: #{tpu_custom_call.1} parent=5 // pred_check_branch
        %699 = sbr.rel (%p696) target = $region80
      $region79: #{tpu_custom_call.1} parent=5 // pred_region
        %s700 = ssub.s32 %s30, 1
        %s701 = sand.u32 %s35, 1
        %s702 = scalar_lea.sflag [#allocation8], %s701
        %s703 = sand.u32 %s55, 1
        %s704 = smul.addr %s703, 16
        %s705 = scalar_lea.vmem [#allocation7], %s704
        // Predicated region
        $region81: #{tpu_custom_call.1} parent=79 // pred_check
          %p706 = pneg %p68
        $region82: #{tpu_custom_call.1} parent=79 // pred_check_branch
          %708 = sbr.rel (%p706) target = $region84
        $region83: #{tpu_custom_call.1} parent=79 // pred_region
          %709 = dma.done %s702, 256
        $region84: #{tpu_custom_call.1} parent=79 // pred_fallthru
          _
        // Predicated region
        $region85: #{tpu_custom_call.1} parent=79 // pred_check
          %p710 = pneg %p89
        $region86: #{tpu_custom_call.1} parent=79 // pred_check_branch
          %712 = sbr.rel (%p710) target = $region88
        $region87: #{tpu_custom_call.1} parent=79 // pred_region
          %713 = dma.done [#allocation11], 128
        $region88: #{tpu_custom_call.1} parent=79 // pred_fallthru
          _
        // Predicated region
        $region89: #{tpu_custom_call.1} parent=79 // pred_check
          %p714 = pneg %p110
        $region90: #{tpu_custom_call.1} parent=79 // pred_check_branch
          %716 = sbr.rel (%p714) target = $region92
        $region91: #{tpu_custom_call.1} parent=79 // pred_region
          %717 = dma.done [#allocation11], 128
        $region92: #{tpu_custom_call.1} parent=79 // pred_fallthru
          _
        // Predicated region
        $region93: #{tpu_custom_call.1} parent=79 // pred_check
          %p718 = pneg %p131
        $region94: #{tpu_custom_call.1} parent=79 // pred_check_branch
          %720 = sbr.rel (%p718) target = $region96
        $region95: #{tpu_custom_call.1} parent=79 // pred_region
          %721 = dma.done [#allocation14], 128
        $region96: #{tpu_custom_call.1} parent=79 // pred_fallthru
          _
        %s722 = sand.u32 %s35, 1
        %s723 = scalar_lea.sflag [#allocation8], %s722
        %s724 = sand.u32 %s144, 1
        %s725 = scalar_lea.vmem [#allocation15], %s724
        // Predicated region
        $region97: #{tpu_custom_call.1} parent=79 // pred_check
          %p726 = pneg %p157
        $region98: #{tpu_custom_call.1} parent=79 // pred_check_branch
          %728 = sbr.rel (%p726) target = $region100
        $region99: #{tpu_custom_call.1} parent=79 // pred_region
          %729 = dma.done %s723, 16
        $region100: #{tpu_custom_call.1} parent=79 // pred_fallthru
          _
        %s730 = sand.u32 %s35, 1
        %s731 = scalar_lea.sflag [#allocation8], %s730
        %s732 = sand.u32 %s170, 1
        %s733 = scalar_lea.vmem [#allocation16], %s732
        // Predicated region
        $region101: #{tpu_custom_call.1} parent=79 // pred_check
          %p734 = pneg %p183
        $region102: #{tpu_custom_call.1} parent=79 // pred_check_branch
          %736 = sbr.rel (%p734) target = $region104
        $region103: #{tpu_custom_call.1} parent=79 // pred_region
          %737 = dma.done %s731, 16
        $region104: #{tpu_custom_call.1} parent=79 // pred_fallthru
          _
        %s738 = sand.u32 %s35, 1
        %s739 = scalar_lea.sflag [#allocation8], %s738
        %s740 = sand.u32 %s196, 1
        %s741 = smul.addr %s740, 16
        %s742 = scalar_lea.vmem [#allocation17], %s741
        // Predicated region
        $region105: #{tpu_custom_call.1} parent=79 // pred_check
          %p743 = pneg %p209
        $region106: #{tpu_custom_call.1} parent=79 // pred_check_branch
          %745 = sbr.rel (%p743) target = $region108
        $region107: #{tpu_custom_call.1} parent=79 // pred_region
          %746 = dma.done %s739, 256
        $region108: #{tpu_custom_call.1} parent=79 // pred_fallthru
          _
        %s747 = sand.u32 %s35, 1
        %s748 = scalar_lea.sflag [#allocation8], %s747
        %s749 = sand.u32 %s222, 1
        %s750 = smul.addr %s749, 16
        %s751 = scalar_lea.vmem [#allocation18], %s750
        // Predicated region
        $region109: #{tpu_custom_call.1} parent=79 // pred_check
          %p752 = pneg %p235
        $region110: #{tpu_custom_call.1} parent=79 // pred_check_branch
          %754 = sbr.rel (%p752) target = $region112
        $region111: #{tpu_custom_call.1} parent=79 // pred_region
          %755 = dma.done %s748, 256
        $region112: #{tpu_custom_call.1} parent=79 // pred_fallthru
          _
        %s756 = sand.u32 %s35, 1
        %s757 = scalar_lea.sflag [#allocation8], %s756
        %s758 = sand.u32 %s248, 1
        %s759 = scalar_lea.vmem [#allocation19], %s758
        // Predicated region
        $region113: #{tpu_custom_call.1} parent=79 // pred_check
          %p760 = pneg %p261
        $region114: #{tpu_custom_call.1} parent=79 // pred_check_branch
          %762 = sbr.rel (%p760) target = $region116
        $region115: #{tpu_custom_call.1} parent=79 // pred_region
          %763 = dma.done %s757, 16
        $region116: #{tpu_custom_call.1} parent=79 // pred_fallthru
          _
        %s764 = sand.u32 %s35, 1
        %s765 = scalar_lea.sflag [#allocation8], %s764
        %s766 = sand.u32 %s274, 1
        %s767 = scalar_lea.vmem [#allocation20], %s766
        // Predicated region
        $region117: #{tpu_custom_call.1} parent=79 // pred_check
          %p768 = pneg %p287
        $region118: #{tpu_custom_call.1} parent=79 // pred_check_branch
          %770 = sbr.rel (%p768) target = $region120
        $region119: #{tpu_custom_call.1} parent=79 // pred_region
          %771 = dma.done %s765, 16
        $region120: #{tpu_custom_call.1} parent=79 // pred_fallthru
          _
        %s772 = sand.u32 %s35, 1
        %s773 = scalar_lea.sflag [#allocation8], %s772
        %s774 = sand.u32 %s300, 1
        %s775 = smul.addr %s774, 16
        %s776 = scalar_lea.vmem [#allocation21], %s775
        // Predicated region
        $region121: #{tpu_custom_call.1} parent=79 // pred_check
          %p777 = pneg %p313
        $region122: #{tpu_custom_call.1} parent=79 // pred_check_branch
          %779 = sbr.rel (%p777) target = $region124
        $region123: #{tpu_custom_call.1} parent=79 // pred_region
          %780 = dma.done %s773, 256
        $region124: #{tpu_custom_call.1} parent=79 // pred_fallthru
          _
        %s781 = sand.u32 %s35, 1
        %s782 = scalar_lea.sflag [#allocation8], %s781
        %s783 = sand.u32 %s326, 1
        %s784 = smul.addr %s783, 32
        %s785 = scalar_lea.vmem [#allocation22], %s784
        // Predicated region
        $region125: #{tpu_custom_call.1} parent=79 // pred_check
          %p786 = pneg %p339
        $region126: #{tpu_custom_call.1} parent=79 // pred_check_branch
          %788 = sbr.rel (%p786) target = $region128
        $region127: #{tpu_custom_call.1} parent=79 // pred_region
          %789 = dma.done %s782, 512
        $region128: #{tpu_custom_call.1} parent=79 // pred_fallthru
          _
        // Predicated region
        $region129: #{tpu_custom_call.1} parent=79 // pred_check
          %p790 = pneg %p360
        $region130: #{tpu_custom_call.1} parent=79 // pred_check_branch
          %792 = sbr.rel (%p790) target = $region132
        $region131: #{tpu_custom_call.1} parent=79 // pred_region
          %793 = dma.done [#allocation11], 16
        $region132: #{tpu_custom_call.1} parent=79 // pred_fallthru
          _
        // Predicated region
        $region133: #{tpu_custom_call.1} parent=79 // pred_check
          %p794 = pneg %p381
        $region134: #{tpu_custom_call.1} parent=79 // pred_check_branch
          %796 = sbr.rel (%p794) target = $region136
        $region135: #{tpu_custom_call.1} parent=79 // pred_region
          %797 = dma.done [#allocation14], 16
        $region136: #{tpu_custom_call.1} parent=79 // pred_fallthru
          _
        // Predicated region
        $region137: #{tpu_custom_call.1} parent=79 // pred_check
          %p798 = pneg %p402
        $region138: #{tpu_custom_call.1} parent=79 // pred_check_branch
          %800 = sbr.rel (%p798) target = $region140
        $region139: #{tpu_custom_call.1} parent=79 // pred_region
          %801 = dma.done [#allocation26], 1536
        $region140: #{tpu_custom_call.1} parent=79 // pred_fallthru
          _
        %s802 = sand.u32 %s35, 1
        %s803 = scalar_lea.sflag [#allocation8], %s802
        %s804 = sand.u32 %s55, 1
        %s805 = smul.addr %s804, 16
        %s806 = scalar_lea.vmem [#allocation7], %s805
        %p807 = pneg %p68
        %p808 = pneg %p65
        %p809 = pneg %p89
        %p810 = pneg %p86
        %p811 = pneg %p110
        %p812 = pneg %p107
        %p813 = pneg %p131
        %p814 = pneg %p128
        %s815 = sand.u32 %s35, 1
        %s816 = scalar_lea.sflag [#allocation8], %s815
        %s817 = sand.u32 %s144, 1
        %s818 = scalar_lea.vmem [#allocation15], %s817
        %p819 = pneg %p157
        %p820 = pneg %p154
        %s821 = sand.u32 %s35, 1
        %s822 = scalar_lea.sflag [#allocation8], %s821
        %s823 = sand.u32 %s170, 1
        %s824 = scalar_lea.vmem [#allocation16], %s823
        %p825 = pneg %p183
        %p826 = pneg %p180
        %s827 = sand.u32 %s35, 1
        %s828 = scalar_lea.sflag [#allocation8], %s827
        %s829 = sand.u32 %s196, 1
        %s830 = smul.addr %s829, 16
        %s831 = scalar_lea.vmem [#allocation17], %s830
        %p832 = pneg %p209
        %p833 = pneg %p206
        %s834 = sand.u32 %s35, 1
        %s835 = scalar_lea.sflag [#allocation8], %s834
        %s836 = sand.u32 %s222, 1
        %s837 = smul.addr %s836, 16
        %s838 = scalar_lea.vmem [#allocation18], %s837
        %p839 = pneg %p235
        %p840 = pneg %p232
        %s841 = sand.u32 %s35, 1
        %s842 = scalar_lea.sflag [#allocation8], %s841
        %s843 = sand.u32 %s248, 1
        %s844 = scalar_lea.vmem [#allocation19], %s843
        %p845 = pneg %p261
        %p846 = pneg %p258
        %s847 = sand.u32 %s35, 1
        %s848 = scalar_lea.sflag [#allocation8], %s847
        %s849 = sand.u32 %s274, 1
        %s850 = scalar_lea.vmem [#allocation20], %s849
        %p851 = pneg %p287
        %p852 = pneg %p284
        %s853 = sand.u32 %s35, 1
        %s854 = scalar_lea.sflag [#allocation8], %s853
        %s855 = sand.u32 %s300, 1
        %s856 = smul.addr %s855, 16
        %s857 = scalar_lea.vmem [#allocation21], %s856
        %p858 = pneg %p313
        %p859 = pneg %p310
        %s860 = sand.u32 %s35, 1
        %s861 = scalar_lea.sflag [#allocation8], %s860
        %s862 = sand.u32 %s326, 1
        %s863 = smul.addr %s862, 32
        %s864 = scalar_lea.vmem [#allocation22], %s863
        %p865 = pneg %p339
        %p866 = pneg %p336
        %p867 = pneg %p360
        %p868 = pneg %p357
        %p869 = pneg %p381
        %p870 = pneg %p378
        %p871 = pneg %p402
        %p872 = pneg %p399
        %p873 = pneg %p428
        %p874 = pneg %p425
        %s875 = sand.u32 %s415, 1
        %s876 = scalar_lea.sflag [#allocation9], %s875
        %s877 = sand.u32 %s415, 1
        %s878 = smul.addr %s877, 96
        %s879 = scalar_lea.vmem [#allocation27], %s878
        %p881 = scmp.eq.s32.totalorder %s40, 0
        // Predicated region
        $region141: #{tpu_custom_call.1} parent=79 // pred_check
          %p882 = pneg %p881
        $region142: #{tpu_custom_call.1} parent=79 // pred_check_branch
          %884 = sbr.rel (%p882) target = $region144
        $region143: #{tpu_custom_call.1} parent=79 // pred_region
          %v885 = vld [vmem:[%s705] sm:$0xff]
          %v886 = vld [vmem:[%s705 + $0x8] sm:$0xff]
          %vm887 = vcmask 261120
          %888 = vst.msk [vmem:[#allocation2] sm:$0xff] %vm887, %v885
          %889 = vst.msk [vmem:[#allocation2 + $0x8] sm:$0xff] %vm887, %v886
        $region144: #{tpu_custom_call.1} parent=79 // pred_fallthru
          _
        %v890 = vld [vmem:[#allocation2] sm:$0xff]
        %v891 = vld [vmem:[#allocation2 + $0x8] sm:$0xff]
        %v892 = vld [vmem:[#allocation10] sm:$0xf]
        %v893 = vld [vmem:[#allocation10 + $0x4] sm:$0xf]
        %v894 = vld [vmem:[#allocation12] sm:$0xf]
        %v895 = vld [vmem:[#allocation12 + $0x4] sm:$0xf]
        %v896 = vld [vmem:[#allocation13] sm:$0xf]
        %v897 = vld [vmem:[#allocation13 + $0x4] sm:$0xf]
        %v898 = vld [vmem:[%s725] sm:$0x1]
        %v899 = vld [vmem:[%s733] sm:$0x1]
        %vm900 = vcmask 261120
        %v901 = vsel %vm900, %v890, 0.0
        %902 = vadd.xlane.f32.xlu0 %v901
        %v903 = vpop.xlane.xlu0 %902
        %v904 = vsel %vm900, %v891, 0.0
        %905 = vadd.xlane.f32.xlu0 %v904
        %v906 = vpop.xlane.xlu0 %905
        %v907 = vrcp.pop 32.0
        %v908 = vmul.f32 %v903, %v907
        %v909 = vmul.f32 %v906, %v907
        %v910 = vsub.f32 %v890, %v908
        %v911 = vsub.f32 %v891, %v909
        %v912 = vmul.f32 %v910, %v910
        %v913 = vmul.f32 %v911, %v911
        %v914 = vsel %vm900, %v912, 0.0
        %915 = vadd.xlane.f32.xlu0 %v914
        %v916 = vpop.xlane.xlu0 %915
        %v917 = vsel %vm900, %v913, 0.0
        %918 = vadd.xlane.f32.xlu0 %v917
        %v919 = vpop.xlane.xlu0 %918
        %v920 = vmul.f32 %v916, %v907
        %v921 = vmul.f32 %v919, %v907
        %v922 = vadd.f32 %v920, 1e-05
        %v923 = vadd.f32 %v921, 1e-05
        %v924 = vrsqrt.pop %v922
        %v925 = vrsqrt.pop %v923
        %v926 = vmul.f32 %v910, %v924
        %v927 = vmul.f32 %v911, %v925
        %v929 = vlaneseq
        %v930 = vshrl.u32 %v929, 7
        %v931 = vsub.s32 0, %v930
        %v932 = vrot.slane %v898, %v931
        %v934 = vmul.f32 %v926, %v932
        %v935 = vmul.f32 %v927, %v932
        %v937 = vlaneseq
        %v938 = vshrl.u32 %v937, 7
        %v939 = vsub.s32 0, %v938
        %v940 = vrot.slane %v899, %v939
        %v942 = vadd.f32 %v934, %v940
        %v943 = vadd.f32 %v935, %v940
        %v944 = vpack.c.bf16 %v943, %v942
        %v945 = vld [vmem:[%s742] sm:$0xf]
        %v946 = vld [vmem:[%s742 + $0x4] sm:$0xf]
        %v947 = vld [vmem:[%s742 + $0x8] sm:$0xf]
        %v948 = vld [vmem:[%s742 + $0xc] sm:$0xf]
        %v953 = vunpack.c.l.b16 %v945
        %v954 = vunpack.c.l.b16 %v946
        %v955 = vunpack.c.l.b16 %v947
        %v956 = vunpack.c.l.b16 %v948
        %v957 = vpack.c.b16 %v954, %v953
        %v958 = vpack.c.b16 %v956, %v955
        %v962 = vsel %vm900, %v944, 0
        %964 = vmatprep.subr.bf16.mxu0 0
        %965 = vmatpush1.bf16.msra.mxu0 %v957
        %966 = vmatprep.subr.bf16.mxu0 0
        %967 = vmatpush1.bf16.msra.mxu0 %v958
        %968 = vmatprep.subr.bf16.mxu0 0
        %969 = vmatpush1.bf16.msra.mxu0 0
        %970 = vmatprep.subr.bf16.mxu0 0
        %971 = vmatpush1.bf16.msra.mxu0 0
        %972 = vmatprep.subr.bf16.mxu0 0
        %973 = vmatpush1.bf16.msra.mxu0 0
        %974 = vmatprep.subr.bf16.mxu0 0
        %975 = vmatpush1.bf16.msra.mxu0 0
        %976 = vmatprep.subr.bf16.mxu0 0
        %977 = vmatpush1.bf16.msra.mxu0 0
        %978 = vmatprep.subr.bf16.mxu0 0
        %979 = vmatpush1.bf16.msra.mxu0 0
        %980 = vmatprep.subr.bf16.mxu0 0
        %981 = vmatpush1.bf16.msra.mxu0 0
        %982 = vmatprep.subr.bf16.mxu0 0
        %983 = vmatpush1.bf16.msra.mxu0 0
        %984 = vmatprep.subr.bf16.mxu0 0
        %985 = vmatpush1.bf16.msra.mxu0 0
        %986 = vmatprep.subr.bf16.mxu0 0
        %987 = vmatpush1.bf16.msra.mxu0 0
        %988 = vmatprep.subr.bf16.mxu0 0
        %989 = vmatpush1.bf16.msra.mxu0 0
        %990 = vmatprep.subr.bf16.mxu0 0
        %991 = vmatpush1.bf16.msra.mxu0 0
        %992 = vmatprep.subr.bf16.mxu0 0
        %993 = vmatpush1.bf16.msra.mxu0 0
        %994 = vmatprep.subr.bf16.mxu0 0
        %995 = vmatpush1.bf16.msra.mxu0 0
        %996 = vmatprep.mubr.bf16.mxu0 0
        %997 = vmatmul.mubr.bf16.gmra.mrb[0].mxu0 %v962
        %v998 = vpop.f32.mrb[0].mxu0
        %v999 = vadd.f32 0.0, %v998
        %v1000 = vpop.f32.mrb[0].mxu0
        %v1001 = vpop.f32.mrb[0].mxu0
        %v1002 = vadd.f32 0.0, %v1001
        %v1003 = vpop.f32.mrb[0].mxu0
        %1004 = vdwg.mxu0
        %v1005 = vunpack.c.l.bf16 %v892
        %v1006 = vunpack.c.l.bf16 %v893
        %v1007 = vmul.f32 %v999, %v1005
        %v1008 = vmul.f32 %v1002, %v1006
        %1011 = vrot.lane.b32.xlu0 %v999, 124
        %v1012 = vpop.permute.xlu0 %1011
        %1013 = vrot.lane.b32.xlu0 %v1002, 124
        %v1014 = vpop.permute.xlu0 %1013
        %1017 = vrot.lane.b32.xlu0 %v999, 28
        %v1018 = vpop.permute.xlu0 %1017
        %1019 = vrot.lane.b32.xlu0 %v1002, 28
        %v1020 = vpop.permute.xlu0 %1019
        %vm1023 = vcmask 228352
        %v1024 = vsel %vm1023, %v1012, %v1018
        %v1025 = vsel %vm1023, %v1014, %v1020
        %v1026 = vunpack.c.l.bf16 %v894
        %v1027 = vunpack.c.l.bf16 %v895
        %v1028 = vmul.f32 %v1024, %v1026
        %v1029 = vmul.f32 %v1025, %v1027
        %v1030 = vadd.f32 %v1007, %v1028
        %v1031 = vadd.f32 %v1008, %v1029
        %1032 = vrot.lane.b32.xlu0 %v999, 100
        %v1033 = vpop.permute.xlu0 %1032
        %1034 = vrot.lane.b32.xlu0 %v1002, 100
        %v1035 = vpop.permute.xlu0 %1034
        %1038 = vrot.lane.b32.xlu0 %v999, 4
        %v1039 = vpop.permute.xlu0 %1038
        %1040 = vrot.lane.b32.xlu0 %v1002, 4
        %v1041 = vpop.permute.xlu0 %1040
        %vm1044 = vcmask 31744
        %v1045 = vsel %vm1044, %v1033, %v1039
        %v1046 = vsel %vm1044, %v1035, %v1041
        %v1047 = vunpack.c.l.bf16 %v896
        %v1048 = vunpack.c.l.bf16 %v897
        %v1049 = vmul.f32 %v1045, %v1047
        %v1050 = vmul.f32 %v1046, %v1048
        %v1051 = vadd.f32 %v1030, %v1049
        %v1052 = vadd.f32 %v1031, %v1050
        %v1053 = vmul.f32 %v1051, 0.25
        %v1054 = vmul.f32 %v1052, 0.25
        %v1055 = vpack.c.bf16 %v1054, %v1053
        %1058 = vrot.lane.b32.xlu0 %v1005, 32
        %v1059 = vpop.permute.xlu0 %1058
        %1060 = vrot.lane.b32.xlu0 %v1006, 32
        %v1061 = vpop.permute.xlu0 %1060
        %v1064 = vmul.f32 %v999, %v1059
        %v1065 = vmul.f32 %v1002, %v1061
        %1066 = vrot.lane.b32.xlu0 %v999, 92
        %v1067 = vpop.permute.xlu0 %1066
        %1068 = vrot.lane.b32.xlu0 %v1002, 92
        %v1069 = vpop.permute.xlu0 %1068
        %v1072 = vsel %vm1023, %v1067, %v1012
        %v1073 = vsel %vm1023, %v1069, %v1014
        %v1074 = vmul.f32 %v1072, %v1026
        %v1075 = vmul.f32 %v1073, %v1027
        %1078 = vrot.lane.b32.xlu0 %v1074, 32
        %v1079 = vpop.permute.xlu0 %1078
        %1080 = vrot.lane.b32.xlu0 %v1075, 32
        %v1081 = vpop.permute.xlu0 %1080
        %v1084 = vadd.f32 %v1064, %v1079
        %v1085 = vadd.f32 %v1065, %v1081
        %1086 = vrot.lane.b32.xlu0 %v999, 68
        %v1087 = vpop.permute.xlu0 %1086
        %1088 = vrot.lane.b32.xlu0 %v1002, 68
        %v1089 = vpop.permute.xlu0 %1088
        %v1092 = vsel %vm1044, %v1087, %v1033
        %v1093 = vsel %vm1044, %v1089, %v1035
        %v1094 = vmul.f32 %v1092, %v1047
        %v1095 = vmul.f32 %v1093, %v1048
        %1098 = vrot.lane.b32.xlu0 %v1094, 32
        %v1099 = vpop.permute.xlu0 %1098
        %1100 = vrot.lane.b32.xlu0 %v1095, 32
        %v1101 = vpop.permute.xlu0 %1100
        %v1104 = vadd.f32 %v1084, %v1099
        %v1105 = vadd.f32 %v1085, %v1101
        %v1106 = vpack.c.bf16 %v1105, %v1104
        %v1107 = vpack.c.bf16 %v1002, %v999
        %vm1108 = vcmask 130048
        %1109 = vst.msk [vmem:[#allocation3] sm:$0xff] %vm1108, %v1055
        %1111 = vrot.lane.b32.xlu0 %v1106, 96
        %v1112 = vpop.permute.xlu0 %1111
        %1114 = vst.msk [vmem:[#allocation4] sm:$0xff] %vm1108, %v1112
        %1116 = vrot.lane.b32.xlu0 %v1107, 64
        %v1117 = vpop.permute.xlu0 %1116
        %1119 = vst.msk [vmem:[#allocation5] sm:$0xff] %vm1108, %v1117
        %1121 = vrot.lane.b32.xlu0 %v1055, 112
        %v1122 = vpop.permute.xlu0 %1121
        %s1124 = scalar_lea.vmem [#allocation3], 8
        %1125 = vst.msk [vmem:[%s1124] sm:$0xff] %vm1108, %v1122
        %1126 = vrot.lane.b32.xlu0 %v1106, 80
        %v1127 = vpop.permute.xlu0 %1126
        %s1129 = scalar_lea.vmem [#allocation4], 8
        %1130 = vst.msk [vmem:[%s1129] sm:$0xff] %vm1108, %v1127
        %1131 = vrot.lane.b32.xlu0 %v1107, 48
        %v1132 = vpop.permute.xlu0 %1131
        %s1134 = scalar_lea.vmem [#allocation5], 8
        %1135 = vst.msk [vmem:[%s1134] sm:$0xff] %vm1108, %v1132
        %v1136 = vld [vmem:[#allocation3] sm:$0xf]
        %v1137 = vld [vmem:[#allocation3 + $0x8] sm:$0xf]
        %v1138 = vld [vmem:[#allocation4] sm:$0xf]
        %v1139 = vld [vmem:[#allocation4 + $0x8] sm:$0xf]
        %v1140 = vld [vmem:[#allocation5] sm:$0xf]
        %v1141 = vld [vmem:[#allocation5 + $0x8] sm:$0xf]
        %v1143 = vsel %vm1108, %v1136, 0
        %v1146 = vsel %vm1108, %v1138, 0
        %1148 = vmatprep.subr.bf16.mxu0 0
        %1149 = vmatpush1.bf16.xpose.msra.mxu0 %v1146
        %1150 = vmatprep.subr.bf16.mxu0 0
        %1151 = vmatpush1.bf16.xpose.msra.mxu0 0
        %1152 = vmatprep.subr.bf16.mxu0 0
        %1153 = vmatpush1.bf16.xpose.msra.mxu0 0
        %1154 = vmatprep.subr.bf16.mxu0 0
        %1155 = vmatpush1.bf16.xpose.msra.mxu0 0
        %1156 = vmatprep.subr.bf16.mxu0 0
        %1157 = vmatpush1.bf16.xpose.msra.mxu0 0
        %1158 = vmatprep.subr.bf16.mxu0 0
        %1159 = vmatpush1.bf16.xpose.msra.mxu0 0
        %1160 = vmatprep.subr.bf16.mxu0 0
        %1161 = vmatpush1.bf16.xpose.msra.mxu0 0
        %1162 = vmatprep.subr.bf16.mxu0 0
        %1163 = vmatpush1.bf16.xpose.msra.mxu0 0
        %1164 = vmatprep.subr.bf16.mxu0 0
        %1165 = vmatpush1.bf16.xpose.msra.mxu0 0
        %1166 = vmatprep.subr.bf16.mxu0 0
        %1167 = vmatpush1.bf16.xpose.msra.mxu0 0
        %1168 = vmatprep.subr.bf16.mxu0 0
        %1169 = vmatpush1.bf16.xpose.msra.mxu0 0
        %1170 = vmatprep.subr.bf16.mxu0 0
        %1171 = vmatpush1.bf16.xpose.msra.mxu0 0
        %1172 = vmatprep.subr.bf16.mxu0 0
        %1173 = vmatpush1.bf16.xpose.msra.mxu0 0
        %1174 = vmatprep.subr.bf16.mxu0 0
        %1175 = vmatpush1.bf16.xpose.msra.mxu0 0
        %1176 = vmatprep.subr.bf16.mxu0 0
        %1177 = vmatpush1.bf16.xpose.msra.mxu0 0
        %1178 = vmatprep.subr.bf16.mxu0 0
        %1179 = vmatpush1.bf16.xpose.msra.mxu0 0
        %1180 = vmatprep.mubr.bf16.mxu0 0
        %1181 = vmatmul.mubr.bf16.gmra.mrb[0].mxu0 %v1143
        %v1182 = vpop.f32.mrb[0].mxu0
        %v1183 = vadd.f32 0.0, %v1182
        %v1184 = vpop.f32.mrb[0].mxu0
        %v1185 = vpop.f32.mrb[0].mxu0
        %v1186 = vpop.f32.mrb[0].mxu0
        %1187 = vdwg.mxu0
        %v1189 = vsel %vm1108, %v1137, 0
        %v1192 = vsel %vm1108, %v1139, 0
        %1194 = vmatprep.subr.bf16.mxu0 0
        %1195 = vmatpush1.bf16.xpose.msra.mxu0 %v1192
        %1196 = vmatprep.subr.bf16.mxu0 0
        %1197 = vmatpush1.bf16.xpose.msra.mxu0 0
        %1198 = vmatprep.subr.bf16.mxu0 0
        %1199 = vmatpush1.bf16.xpose.msra.mxu0 0
        %1200 = vmatprep.subr.bf16.mxu0 0
        %1201 = vmatpush1.bf16.xpose.msra.mxu0 0
        %1202 = vmatprep.subr.bf16.mxu0 0
        %1203 = vmatpush1.bf16.xpose.msra.mxu0 0
        %1204 = vmatprep.subr.bf16.mxu0 0
        %1205 = vmatpush1.bf16.xpose.msra.mxu0 0
        %1206 = vmatprep.subr.bf16.mxu0 0
        %1207 = vmatpush1.bf16.xpose.msra.mxu0 0
        %1208 = vmatprep.subr.bf16.mxu0 0
        %1209 = vmatpush1.bf16.xpose.msra.mxu0 0
        %1210 = vmatprep.subr.bf16.mxu0 0
        %1211 = vmatpush1.bf16.xpose.msra.mxu0 0
        %1212 = vmatprep.subr.bf16.mxu0 0
        %1213 = vmatpush1.bf16.xpose.msra.mxu0 0
        %1214 = vmatprep.subr.bf16.mxu0 0
        %1215 = vmatpush1.bf16.xpose.msra.mxu0 0
        %1216 = vmatprep.subr.bf16.mxu0 0
        %1217 = vmatpush1.bf16.xpose.msra.mxu0 0
        %1218 = vmatprep.subr.bf16.mxu0 0
        %1219 = vmatpush1.bf16.xpose.msra.mxu0 0
        %1220 = vmatprep.subr.bf16.mxu0 0
        %1221 = vmatpush1.bf16.xpose.msra.mxu0 0
        %1222 = vmatprep.subr.bf16.mxu0 0
        %1223 = vmatpush1.bf16.xpose.msra.mxu0 0
        %1224 = vmatprep.subr.bf16.mxu0 0
        %1225 = vmatpush1.bf16.xpose.msra.mxu0 0
        %1226 = vmatprep.mubr.bf16.mxu0 0
        %1227 = vmatmul.mubr.bf16.gmra.mrb[0].mxu0 %v1189
        %v1228 = vpop.f32.mrb[0].mxu0
        %v1229 = vadd.f32 0.0, %v1228
        %v1230 = vpop.f32.mrb[0].mxu0
        %v1231 = vpop.f32.mrb[0].mxu0
        %v1232 = vpop.f32.mrb[0].mxu0
        %1233 = vdwg.mxu0
        %v1234 = vlaneseq
        %v1235 = vshrl.u32 %v1234, 7
        %v1236 = vlaneseq
        %v1237 = vand.u32 %v1236, 127
        %vm1238 = vcmp.le.s32.totalorder %v1237, %v1235
        %v1239 = vsel %vm1238, 1, 0
        %vm1240 = vcmp.eq.s32.totalorder %v1239, 1
        %v1241 = vsel %vm1240, %v1183, -1e+30
        %v1242 = vsel %vm1240, %v1229, -1e+30
        %vm1243 = vcmask 64512
        %v1244 = vsel %vm1243, %v1241, -inf
        %1245 = vmax.xlane.f32.xlu0 %v1244
        %v1246 = vpop.xlane.xlu0 %1245
        %v1247 = vsel %vm1243, %v1242, -inf
        %1248 = vmax.xlane.f32.xlu0 %v1247
        %v1249 = vpop.xlane.xlu0 %1248
        %v1250 = vsub.f32 %v1241, %v1246
        %v1251 = vsub.f32 %v1242, %v1249
        %v1252 = vmul.f32 %v1250, 1.442695
        %v1253 = vpow.pop %v1252
        %v1254 = vmul.f32 %v1251, 1.442695
        %v1255 = vpow.pop %v1254
        %v1256 = vsel %vm1243, %v1253, 0.0
        %1257 = vadd.xlane.f32.xlu0 %v1256
        %v1258 = vpop.xlane.xlu0 %1257
        %v1259 = vsel %vm1243, %v1255, 0.0
        %1260 = vadd.xlane.f32.xlu0 %v1259
        %v1261 = vpop.xlane.xlu0 %1260
        %v1262 = vrcp.pop %v1258
        %v1263 = vrcp.pop %v1261
        %v1264 = vmul.f32 %v1253, %v1262
        %v1265 = vmul.f32 %v1255, %v1263
        %v1266 = vpack.c.bf16 %v1264, %v1264
        %v1267 = vpack.c.bf16 %v1265, %v1265
        %v1269 = vsel %vm1243, %v1266, 0
        %vm1271 = vcmask 1043456
        %v1273 = vsel %vm1271, %v1140, 0
        %1275 = vmatprep.subr.bf16.mxu0 0
        %1276 = vmatpush1.bf16.msra.mxu0 %v1273
        %1277 = vmatprep.subr.bf16.mxu0 0
        %1278 = vmatpush1.bf16.msra.mxu0 0
        %1279 = vmatprep.subr.bf16.mxu0 0
        %1280 = vmatpush1.bf16.msra.mxu0 0
        %1281 = vmatprep.subr.bf16.mxu0 0
        %1282 = vmatpush1.bf16.msra.mxu0 0
        %1283 = vmatprep.subr.bf16.mxu0 0
        %1284 = vmatpush1.bf16.msra.mxu0 0
        %1285 = vmatprep.subr.bf16.mxu0 0
        %1286 = vmatpush1.bf16.msra.mxu0 0
        %1287 = vmatprep.subr.bf16.mxu0 0
        %1288 = vmatpush1.bf16.msra.mxu0 0
        %1289 = vmatprep.subr.bf16.mxu0 0
        %1290 = vmatpush1.bf16.msra.mxu0 0
        %1291 = vmatprep.subr.bf16.mxu0 0
        %1292 = vmatpush1.bf16.msra.mxu0 0
        %1293 = vmatprep.subr.bf16.mxu0 0
        %1294 = vmatpush1.bf16.msra.mxu0 0
        %1295 = vmatprep.subr.bf16.mxu0 0
        %1296 = vmatpush1.bf16.msra.mxu0 0
        %1297 = vmatprep.subr.bf16.mxu0 0
        %1298 = vmatpush1.bf16.msra.mxu0 0
        %1299 = vmatprep.subr.bf16.mxu0 0
        %1300 = vmatpush1.bf16.msra.mxu0 0
        %1301 = vmatprep.subr.bf16.mxu0 0
        %1302 = vmatpush1.bf16.msra.mxu0 0
        %1303 = vmatprep.subr.bf16.mxu0 0
        %1304 = vmatpush1.bf16.msra.mxu0 0
        %1305 = vmatprep.subr.bf16.mxu0 0
        %1306 = vmatpush1.bf16.msra.mxu0 0
        %1307 = vmatprep.mubr.bf16.mxu0 0
        %1308 = vmatmul.mubr.bf16.gmra.mrb[0].mxu0 %v1269
        %v1309 = vpop.f32.mrb[0].mxu0
        %v1310 = vadd.f32 0.0, %v1309
        %v1311 = vpop.f32.mrb[0].mxu0
        %v1312 = vpop.f32.mrb[0].mxu0
        %v1313 = vpop.f32.mrb[0].mxu0
        %1314 = vdwg.mxu0
        %v1316 = vsel %vm1243, %v1267, 0
        %v1319 = vsel %vm1271, %v1141, 0
        %1321 = vmatprep.subr.bf16.mxu0 0
        %1322 = vmatpush1.bf16.msra.mxu0 %v1319
        %1323 = vmatprep.subr.bf16.mxu0 0
        %1324 = vmatpush1.bf16.msra.mxu0 0
        %1325 = vmatprep.subr.bf16.mxu0 0
        %1326 = vmatpush1.bf16.msra.mxu0 0
        %1327 = vmatprep.subr.bf16.mxu0 0
        %1328 = vmatpush1.bf16.msra.mxu0 0
        %1329 = vmatprep.subr.bf16.mxu0 0
        %1330 = vmatpush1.bf16.msra.mxu0 0
        %1331 = vmatprep.subr.bf16.mxu0 0
        %1332 = vmatpush1.bf16.msra.mxu0 0
        %1333 = vmatprep.subr.bf16.mxu0 0
        %1334 = vmatpush1.bf16.msra.mxu0 0
        %1335 = vmatprep.subr.bf16.mxu0 0
        %1336 = vmatpush1.bf16.msra.mxu0 0
        %1337 = vmatprep.subr.bf16.mxu0 0
        %1338 = vmatpush1.bf16.msra.mxu0 0
        %1339 = vmatprep.subr.bf16.mxu0 0
        %1340 = vmatpush1.bf16.msra.mxu0 0
        %1341 = vmatprep.subr.bf16.mxu0 0
        %1342 = vmatpush1.bf16.msra.mxu0 0
        %1343 = vmatprep.subr.bf16.mxu0 0
        %1344 = vmatpush1.bf16.msra.mxu0 0
        %1345 = vmatprep.subr.bf16.mxu0 0
        %1346 = vmatpush1.bf16.msra.mxu0 0
        %1347 = vmatprep.subr.bf16.mxu0 0
        %1348 = vmatpush1.bf16.msra.mxu0 0
        %1349 = vmatprep.subr.bf16.mxu0 0
        %1350 = vmatpush1.bf16.msra.mxu0 0
        %1351 = vmatprep.subr.bf16.mxu0 0
        %1352 = vmatpush1.bf16.msra.mxu0 0
        %1353 = vmatprep.mubr.bf16.mxu0 0
        %1354 = vmatmul.mubr.bf16.gmra.mrb[0].mxu0 %v1316
        %v1355 = vpop.f32.mrb[0].mxu0
        %v1356 = vadd.f32 0.0, %v1355
        %v1357 = vpop.f32.mrb[0].mxu0
        %v1358 = vpop.f32.mrb[0].mxu0
        %v1359 = vpop.f32.mrb[0].mxu0
        %1360 = vdwg.mxu0
        %v1361 = vpack.c.bf16 %v1310, %v1310
        %v1362 = vpack.c.bf16 %v1356, %v1356
        %vm1363 = vcmask 125952
        %1364 = vst.msk [vmem:[#allocation6] sm:$0xf] %vm1363, %v1361
        %1365 = vst.msk [vmem:[#allocation6 + $0x8] sm:$0xf] %vm1363, %v1362
        %v1366 = vld [vmem:[#allocation3] sm:$0xf0]
        %v1367 = vld [vmem:[#allocation3 + $0x8] sm:$0xf0]
        %v1368 = vld [vmem:[#allocation4] sm:$0xff]
        %v1369 = vld [vmem:[#allocation4 + $0x8] sm:$0xff]
        %v1370 = vld [vmem:[#allocation5] sm:$0xff]
        %v1371 = vld [vmem:[#allocation5 + $0x8] sm:$0xff]
        %v1373 = vrot.slane %v1366, 4
        %v1375 = vsel %vm1108, %v1373, 0
        %v1378 = vsel %vm1108, %v1368, 0
        %1380 = vmatprep.subr.bf16.mxu0 0
        %1381 = vmatpush1.bf16.xpose.msra.mxu0 %v1378
        %1382 = vmatprep.subr.bf16.mxu0 0
        %1383 = vmatpush1.bf16.xpose.msra.mxu0 0
        %1384 = vmatprep.subr.bf16.mxu0 0
        %1385 = vmatpush1.bf16.xpose.msra.mxu0 0
        %1386 = vmatprep.subr.bf16.mxu0 0
        %1387 = vmatpush1.bf16.xpose.msra.mxu0 0
        %1388 = vmatprep.subr.bf16.mxu0 0
        %1389 = vmatpush1.bf16.xpose.msra.mxu0 0
        %1390 = vmatprep.subr.bf16.mxu0 0
        %1391 = vmatpush1.bf16.xpose.msra.mxu0 0
        %1392 = vmatprep.subr.bf16.mxu0 0
        %1393 = vmatpush1.bf16.xpose.msra.mxu0 0
        %1394 = vmatprep.subr.bf16.mxu0 0
        %1395 = vmatpush1.bf16.xpose.msra.mxu0 0
        %1396 = vmatprep.subr.bf16.mxu0 0
        %1397 = vmatpush1.bf16.xpose.msra.mxu0 0
        %1398 = vmatprep.subr.bf16.mxu0 0
        %1399 = vmatpush1.bf16.xpose.msra.mxu0 0
        %1400 = vmatprep.subr.bf16.mxu0 0
        %1401 = vmatpush1.bf16.xpose.msra.mxu0 0
        %1402 = vmatprep.subr.bf16.mxu0 0
        %1403 = vmatpush1.bf16.xpose.msra.mxu0 0
        %1404 = vmatprep.subr.bf16.mxu0 0
        %1405 = vmatpush1.bf16.xpose.msra.mxu0 0
        %1406 = vmatprep.subr.bf16.mxu0 0
        %1407 = vmatpush1.bf16.xpose.msra.mxu0 0
        %1408 = vmatprep.subr.bf16.mxu0 0
        %1409 = vmatpush1.bf16.xpose.msra.mxu0 0
        %1410 = vmatprep.subr.bf16.mxu0 0
        %1411 = vmatpush1.bf16.xpose.msra.mxu0 0
        %1412 = vmatprep.mubr.bf16.mxu0 0
        %1413 = vmatmul.mubr.bf16.gmra.mrb[0].mxu0 %v1375
        %v1414 = vpop.f32.mrb[0].mxu0
        %v1415 = vadd.f32 0.0, %v1414
        %v1416 = vpop.f32.mrb[0].mxu0
        %v1417 = vpop.f32.mrb[0].mxu0
        %v1418 = vpop.f32.mrb[0].mxu0
        %1419 = vdwg.mxu0
        %v1421 = vrot.slane %v1367, 4
        %v1423 = vsel %vm1108, %v1421, 0
        %v1426 = vsel %vm1108, %v1369, 0
        %1428 = vmatprep.subr.bf16.mxu0 0
        %1429 = vmatpush1.bf16.xpose.msra.mxu0 %v1426
        %1430 = vmatprep.subr.bf16.mxu0 0
        %1431 = vmatpush1.bf16.xpose.msra.mxu0 0
        %1432 = vmatprep.subr.bf16.mxu0 0
        %1433 = vmatpush1.bf16.xpose.msra.mxu0 0
        %1434 = vmatprep.subr.bf16.mxu0 0
        %1435 = vmatpush1.bf16.xpose.msra.mxu0 0
        %1436 = vmatprep.subr.bf16.mxu0 0
        %1437 = vmatpush1.bf16.xpose.msra.mxu0 0
        %1438 = vmatprep.subr.bf16.mxu0 0
        %1439 = vmatpush1.bf16.xpose.msra.mxu0 0
        %1440 = vmatprep.subr.bf16.mxu0 0
        %1441 = vmatpush1.bf16.xpose.msra.mxu0 0
        %1442 = vmatprep.subr.bf16.mxu0 0
        %1443 = vmatpush1.bf16.xpose.msra.mxu0 0
        %1444 = vmatprep.subr.bf16.mxu0 0
        %1445 = vmatpush1.bf16.xpose.msra.mxu0 0
        %1446 = vmatprep.subr.bf16.mxu0 0
        %1447 = vmatpush1.bf16.xpose.msra.mxu0 0
        %1448 = vmatprep.subr.bf16.mxu0 0
        %1449 = vmatpush1.bf16.xpose.msra.mxu0 0
        %1450 = vmatprep.subr.bf16.mxu0 0
        %1451 = vmatpush1.bf16.xpose.msra.mxu0 0
        %1452 = vmatprep.subr.bf16.mxu0 0
        %1453 = vmatpush1.bf16.xpose.msra.mxu0 0
        %1454 = vmatprep.subr.bf16.mxu0 0
        %1455 = vmatpush1.bf16.xpose.msra.mxu0 0
        %1456 = vmatprep.subr.bf16.mxu0 0
        %1457 = vmatpush1.bf16.xpose.msra.mxu0 0
        %1458 = vmatprep.subr.bf16.mxu0 0
        %1459 = vmatpush1.bf16.xpose.msra.mxu0 0
        %1460 = vmatprep.mubr.bf16.mxu0 0
        %1461 = vmatmul.mubr.bf16.gmra.mrb[0].mxu0 %v1423
        %v1462 = vpop.f32.mrb[0].mxu0
        %v1463 = vadd.f32 0.0, %v1462
        %v1464 = vpop.f32.mrb[0].mxu0
        %v1465 = vpop.f32.mrb[0].mxu0
        %v1466 = vpop.f32.mrb[0].mxu0
        %1467 = vdwg.mxu0
        %v1468 = vadd.s32 %v1235, 8
        %vm1469 = vcmp.le.s32.totalorder %v1237, %v1468
        %v1470 = vsel %vm1469, 1, 0
        %vm1471 = vcmp.eq.s32.totalorder %v1470, 1
        %v1472 = vsel %vm1471, %v1415, -1e+30
        %v1473 = vsel %vm1471, %v1463, -1e+30
        %v1474 = vsel %vm1108, %v1472, -inf
        %1475 = vmax.xlane.f32.xlu0 %v1474
        %v1476 = vpop.xlane.xlu0 %1475
        %v1477 = vsel %vm1108, %v1473, -inf
        %1478 = vmax.xlane.f32.xlu0 %v1477
        %v1479 = vpop.xlane.xlu0 %1478
        %v1480 = vsub.f32 %v1472, %v1476
        %v1481 = vsub.f32 %v1473, %v1479
        %v1482 = vmul.f32 %v1480, 1.442695
        %v1483 = vpow.pop %v1482
        %v1484 = vmul.f32 %v1481, 1.442695
        %v1485 = vpow.pop %v1484
        %v1486 = vsel %vm1108, %v1483, 0.0
        %1487 = vadd.xlane.f32.xlu0 %v1486
        %v1488 = vpop.xlane.xlu0 %1487
        %v1489 = vsel %vm1108, %v1485, 0.0
        %1490 = vadd.xlane.f32.xlu0 %v1489
        %v1491 = vpop.xlane.xlu0 %1490
        %v1492 = vrcp.pop %v1488
        %v1493 = vrcp.pop %v1491
        %v1494 = vmul.f32 %v1483, %v1492
        %v1495 = vmul.f32 %v1485, %v1493
        %v1496 = vpack.c.bf16 %v1494, %v1494
        %v1497 = vpack.c.bf16 %v1495, %v1495
        %v1499 = vsel %vm1108, %v1496, 0
        %1501 = vmatprep.subr.bf16.mxu0 0
        %1502 = vmatpush1.bf16.msra.mxu0 %v1370
        %1503 = vmatprep.subr.bf16.mxu0 0
        %1504 = vmatpush1.bf16.msra.mxu0 0
        %1505 = vmatprep.subr.bf16.mxu0 0
        %1506 = vmatpush1.bf16.msra.mxu0 0
        %1507 = vmatprep.subr.bf16.mxu0 0
        %1508 = vmatpush1.bf16.msra.mxu0 0
        %1509 = vmatprep.subr.bf16.mxu0 0
        %1510 = vmatpush1.bf16.msra.mxu0 0
        %1511 = vmatprep.subr.bf16.mxu0 0
        %1512 = vmatpush1.bf16.msra.mxu0 0
        %1513 = vmatprep.subr.bf16.mxu0 0
        %1514 = vmatpush1.bf16.msra.mxu0 0
        %1515 = vmatprep.subr.bf16.mxu0 0
        %1516 = vmatpush1.bf16.msra.mxu0 0
        %1517 = vmatprep.subr.bf16.mxu0 0
        %1518 = vmatpush1.bf16.msra.mxu0 0
        %1519 = vmatprep.subr.bf16.mxu0 0
        %1520 = vmatpush1.bf16.msra.mxu0 0
        %1521 = vmatprep.subr.bf16.mxu0 0
        %1522 = vmatpush1.bf16.msra.mxu0 0
        %1523 = vmatprep.subr.bf16.mxu0 0
        %1524 = vmatpush1.bf16.msra.mxu0 0
        %1525 = vmatprep.subr.bf16.mxu0 0
        %1526 = vmatpush1.bf16.msra.mxu0 0
        %1527 = vmatprep.subr.bf16.mxu0 0
        %1528 = vmatpush1.bf16.msra.mxu0 0
        %1529 = vmatprep.subr.bf16.mxu0 0
        %1530 = vmatpush1.bf16.msra.mxu0 0
        %1531 = vmatprep.subr.bf16.mxu0 0
        %1532 = vmatpush1.bf16.msra.mxu0 0
        %1533 = vmatprep.mubr.bf16.mxu0 0
        %1534 = vmatmul.mubr.bf16.gmra.mrb[0].mxu0 %v1499
        %v1535 = vpop.f32.mrb[0].mxu0
        %v1536 = vadd.f32 0.0, %v1535
        %v1537 = vpop.f32.mrb[0].mxu0
        %v1538 = vpop.f32.mrb[0].mxu0
        %v1539 = vpop.f32.mrb[0].mxu0
        %1540 = vdwg.mxu0
        %v1542 = vsel %vm1108, %v1497, 0
        %1544 = vmatprep.subr.bf16.mxu0 0
        %1545 = vmatpush1.bf16.msra.mxu0 %v1371
        %1546 = vmatprep.subr.bf16.mxu0 0
        %1547 = vmatpush1.bf16.msra.mxu0 0
        %1548 = vmatprep.subr.bf16.mxu0 0
        %1549 = vmatpush1.bf16.msra.mxu0 0
        %1550 = vmatprep.subr.bf16.mxu0 0
        %1551 = vmatpush1.bf16.msra.mxu0 0
        %1552 = vmatprep.subr.bf16.mxu0 0
        %1553 = vmatpush1.bf16.msra.mxu0 0
        %1554 = vmatprep.subr.bf16.mxu0 0
        %1555 = vmatpush1.bf16.msra.mxu0 0
        %1556 = vmatprep.subr.bf16.mxu0 0
        %1557 = vmatpush1.bf16.msra.mxu0 0
        %1558 = vmatprep.subr.bf16.mxu0 0
        %1559 = vmatpush1.bf16.msra.mxu0 0
        %1560 = vmatprep.subr.bf16.mxu0 0
        %1561 = vmatpush1.bf16.msra.mxu0 0
        %1562 = vmatprep.subr.bf16.mxu0 0
        %1563 = vmatpush1.bf16.msra.mxu0 0
        %1564 = vmatprep.subr.bf16.mxu0 0
        %1565 = vmatpush1.bf16.msra.mxu0 0
        %1566 = vmatprep.subr.bf16.mxu0 0
        %1567 = vmatpush1.bf16.msra.mxu0 0
        %1568 = vmatprep.subr.bf16.mxu0 0
        %1569 = vmatpush1.bf16.msra.mxu0 0
        %1570 = vmatprep.subr.bf16.mxu0 0
        %1571 = vmatpush1.bf16.msra.mxu0 0
        %1572 = vmatprep.subr.bf16.mxu0 0
        %1573 = vmatpush1.bf16.msra.mxu0 0
        %1574 = vmatprep.subr.bf16.mxu0 0
        %1575 = vmatpush1.bf16.msra.mxu0 0
        %1576 = vmatprep.mubr.bf16.mxu0 0
        %1577 = vmatmul.mubr.bf16.gmra.mrb[0].mxu0 %v1542
        %v1578 = vpop.f32.mrb[0].mxu0
        %v1579 = vadd.f32 0.0, %v1578
        %v1580 = vpop.f32.mrb[0].mxu0
        %v1581 = vpop.f32.mrb[0].mxu0
        %v1582 = vpop.f32.mrb[0].mxu0
        %1583 = vdwg.mxu0
        %v1584 = vpack.c.bf16 %v1536, %v1536
        %v1585 = vpack.c.bf16 %v1579, %v1579
        %v1588 = vrot.slane %v1584, 4
        %v1589 = vrot.slane %v1585, 4
        %vm1592 = vcmask 130052
        %1593 = vst.msk [vmem:[#allocation6] sm:$0xf0] %vm1592, %v1588
        %1594 = vst.msk [vmem:[#allocation6 + $0x8] sm:$0xf0] %vm1592, %v1589
        %v1595 = vld [vmem:[#allocation6] sm:$0xff]
        %s1596 = scalar_lea.vmem [#allocation6], 8
        %v1597 = vld [vmem:[%s1596] sm:$0xff]
        %1599 = vrot.lane.b32.xlu0 %v1597, 16
        %v1600 = vpop.permute.xlu0 %1599
        %v1603 = vsel %vm1108, %v1595, %v1600
        %v1604 = vld [vmem:[%s751] sm:$0xf]
        %v1605 = vld [vmem:[%s751 + $0x4] sm:$0xf]
        %v1606 = vld [vmem:[%s751 + $0x8] sm:$0xf]
        %v1607 = vld [vmem:[%s751 + $0xc] sm:$0xf]
        %v1612 = vunpack.c.l.b16 %v1604
        %v1613 = vunpack.c.l.b16 %v1605
        %v1614 = vunpack.c.l.b16 %v1606
        %v1615 = vunpack.c.l.b16 %v1607
        %v1616 = vpack.c.b16 %v1613, %v1612
        %v1617 = vpack.c.b16 %v1615, %v1614
        %v1620 = vsel %vm900, %v1603, 0
        %1622 = vmatprep.subr.bf16.mxu0 0
        %1623 = vmatpush1.bf16.msra.mxu0 %v1616
        %1624 = vmatprep.subr.bf16.mxu0 0
        %1625 = vmatpush1.bf16.msra.mxu0 %v1617
        %1626 = vmatprep.subr.bf16.mxu0 0
        %1627 = vmatpush1.bf16.msra.mxu0 0
        %1628 = vmatprep.subr.bf16.mxu0 0
        %1629 = vmatpush1.bf16.msra.mxu0 0
        %1630 = vmatprep.subr.bf16.mxu0 0
        %1631 = vmatpush1.bf16.msra.mxu0 0
        %1632 = vmatprep.subr.bf16.mxu0 0
        %1633 = vmatpush1.bf16.msra.mxu0 0
        %1634 = vmatprep.subr.bf16.mxu0 0
        %1635 = vmatpush1.bf16.msra.mxu0 0
        %1636 = vmatprep.subr.bf16.mxu0 0
        %1637 = vmatpush1.bf16.msra.mxu0 0
        %1638 = vmatprep.subr.bf16.mxu0 0
        %1639 = vmatpush1.bf16.msra.mxu0 0
        %1640 = vmatprep.subr.bf16.mxu0 0
        %1641 = vmatpush1.bf16.msra.mxu0 0
        %1642 = vmatprep.subr.bf16.mxu0 0
        %1643 = vmatpush1.bf16.msra.mxu0 0
        %1644 = vmatprep.subr.bf16.mxu0 0
        %1645 = vmatpush1.bf16.msra.mxu0 0
        %1646 = vmatprep.subr.bf16.mxu0 0
        %1647 = vmatpush1.bf16.msra.mxu0 0
        %1648 = vmatprep.subr.bf16.mxu0 0
        %1649 = vmatpush1.bf16.msra.mxu0 0
        %1650 = vmatprep.subr.bf16.mxu0 0
        %1651 = vmatpush1.bf16.msra.mxu0 0
        %1652 = vmatprep.subr.bf16.mxu0 0
        %1653 = vmatpush1.bf16.msra.mxu0 0
        %1654 = vmatprep.mubr.bf16.mxu0 0
        %1655 = vmatmul.mubr.bf16.gmra.mrb[0].mxu0 %v1620
        %v1656 = vpop.f32.mrb[0].mxu0
        %v1657 = vadd.f32 0.0, %v1656
        %v1658 = vpop.f32.mrb[0].mxu0
        %v1659 = vpop.f32.mrb[0].mxu0
        %v1660 = vadd.f32 0.0, %v1659
        %v1661 = vpop.f32.mrb[0].mxu0
        %1662 = vdwg.mxu0
        %v1663 = vadd.f32 %v890, %v1657
        %v1664 = vadd.f32 %v891, %v1660
        %v1665 = vld [vmem:[%s759] sm:$0x1]
        %v1666 = vld [vmem:[%s767] sm:$0x1]
        %v1667 = vsel %vm900, %v1663, 0.0
        %1668 = vadd.xlane.f32.xlu0 %v1667
        %v1669 = vpop.xlane.xlu0 %1668
        %v1670 = vsel %vm900, %v1664, 0.0
        %1671 = vadd.xlane.f32.xlu0 %v1670
        %v1672 = vpop.xlane.xlu0 %1671
        %v1673 = vmul.f32 %v1669, %v907
        %v1674 = vmul.f32 %v1672, %v907
        %v1675 = vsub.f32 %v1663, %v1673
        %v1676 = vsub.f32 %v1664, %v1674
        %v1677 = vmul.f32 %v1675, %v1675
        %v1678 = vmul.f32 %v1676, %v1676
        %v1679 = vsel %vm900, %v1677, 0.0
        %1680 = vadd.xlane.f32.xlu0 %v1679
        %v1681 = vpop.xlane.xlu0 %1680
        %v1682 = vsel %vm900, %v1678, 0.0
        %1683 = vadd.xlane.f32.xlu0 %v1682
        %v1684 = vpop.xlane.xlu0 %1683
        %v1685 = vmul.f32 %v1681, %v907
        %v1686 = vmul.f32 %v1684, %v907
        %v1687 = vadd.f32 %v1685, 1e-05
        %v1688 = vadd.f32 %v1686, 1e-05
        %v1689 = vrsqrt.pop %v1687
        %v1690 = vrsqrt.pop %v1688
        %v1691 = vmul.f32 %v1675, %v1689
        %v1692 = vmul.f32 %v1676, %v1690
        %v1694 = vlaneseq
        %v1695 = vshrl.u32 %v1694, 7
        %v1696 = vsub.s32 0, %v1695
        %v1697 = vrot.slane %v1665, %v1696
        %v1699 = vmul.f32 %v1691, %v1697
        %v1700 = vmul.f32 %v1692, %v1697
        %v1702 = vlaneseq
        %v1703 = vshrl.u32 %v1702, 7
        %v1704 = vsub.s32 0, %v1703
        %v1705 = vrot.slane %v1666, %v1704
        %v1707 = vadd.f32 %v1699, %v1705
        %v1708 = vadd.f32 %v1700, %v1705
        %v1709 = vpack.c.bf16 %v1708, %v1707
        %v1710 = vld [vmem:[%s776] sm:$0xf]
        %v1711 = vld [vmem:[%s776 + $0x4] sm:$0xf]
        %v1712 = vld [vmem:[%s776 + $0x8] sm:$0xf]
        %v1713 = vld [vmem:[%s776 + $0xc] sm:$0xf]
        %v1718 = vunpack.c.l.b16 %v1710
        %v1719 = vunpack.c.l.b16 %v1711
        %v1720 = vunpack.c.l.b16 %v1712
        %v1721 = vunpack.c.l.b16 %v1713
        %v1722 = vpack.c.b16 %v1719, %v1718
        %v1723 = vpack.c.b16 %v1721, %v1720
        %v1727 = vsel %vm900, %v1709, 0
        %1729 = vmatprep.subr.bf16.mxu0 0
        %1730 = vmatpush1.bf16.msra.mxu0 %v1722
        %1731 = vmatprep.subr.bf16.mxu0 0
        %1732 = vmatpush1.bf16.msra.mxu0 %v1723
        %1733 = vmatprep.subr.bf16.mxu0 0
        %1734 = vmatpush1.bf16.msra.mxu0 0
        %1735 = vmatprep.subr.bf16.mxu0 0
        %1736 = vmatpush1.bf16.msra.mxu0 0
        %1737 = vmatprep.subr.bf16.mxu0 0
        %1738 = vmatpush1.bf16.msra.mxu0 0
        %1739 = vmatprep.subr.bf16.mxu0 0
        %1740 = vmatpush1.bf16.msra.mxu0 0
        %1741 = vmatprep.subr.bf16.mxu0 0
        %1742 = vmatpush1.bf16.msra.mxu0 0
        %1743 = vmatprep.subr.bf16.mxu0 0
        %1744 = vmatpush1.bf16.msra.mxu0 0
        %1745 = vmatprep.subr.bf16.mxu0 0
        %1746 = vmatpush1.bf16.msra.mxu0 0
        %1747 = vmatprep.subr.bf16.mxu0 0
        %1748 = vmatpush1.bf16.msra.mxu0 0
        %1749 = vmatprep.subr.bf16.mxu0 0
        %1750 = vmatpush1.bf16.msra.mxu0 0
        %1751 = vmatprep.subr.bf16.mxu0 0
        %1752 = vmatpush1.bf16.msra.mxu0 0
        %1753 = vmatprep.subr.bf16.mxu0 0
        %1754 = vmatpush1.bf16.msra.mxu0 0
        %1755 = vmatprep.subr.bf16.mxu0 0
        %1756 = vmatpush1.bf16.msra.mxu0 0
        %1757 = vmatprep.subr.bf16.mxu0 0
        %1758 = vmatpush1.bf16.msra.mxu0 0
        %1759 = vmatprep.subr.bf16.mxu0 0
        %1760 = vmatpush1.bf16.msra.mxu0 0
        %1761 = vmatprep.mubr.bf16.mxu0 0
        %1762 = vmatmul.mubr.bf16.gmra.mrb[0].mxu0 %v1727
        %v1763 = vpop.f32.mrb[0].mxu0
        %v1764 = vadd.f32 0.0, %v1763
        %v1765 = vpop.f32.mrb[0].mxu0
        %v1766 = vpop.f32.mrb[0].mxu0
        %v1767 = vadd.f32 0.0, %v1766
        %v1768 = vpop.f32.mrb[0].mxu0
        %1769 = vdwg.mxu0
        %1770 = vrot.lane.b32.xlu0 %v1722, 64
        %v1771 = vpop.permute.xlu0 %1770
        %1772 = vrot.lane.b32.xlu0 %v1723, 64
        %v1773 = vpop.permute.xlu0 %1772
        %1776 = vmatprep.subr.bf16.mxu0 0
        %1777 = vmatpush1.bf16.msra.mxu0 %v1771
        %1778 = vmatprep.subr.bf16.mxu0 0
        %1779 = vmatpush1.bf16.msra.mxu0 %v1773
        %1780 = vmatprep.subr.bf16.mxu0 0
        %1781 = vmatpush1.bf16.msra.mxu0 0
        %1782 = vmatprep.subr.bf16.mxu0 0
        %1783 = vmatpush1.bf16.msra.mxu0 0
        %1784 = vmatprep.subr.bf16.mxu0 0
        %1785 = vmatpush1.bf16.msra.mxu0 0
        %1786 = vmatprep.subr.bf16.mxu0 0
        %1787 = vmatpush1.bf16.msra.mxu0 0
        %1788 = vmatprep.subr.bf16.mxu0 0
        %1789 = vmatpush1.bf16.msra.mxu0 0
        %1790 = vmatprep.subr.bf16.mxu0 0
        %1791 = vmatpush1.bf16.msra.mxu0 0
        %1792 = vmatprep.subr.bf16.mxu0 0
        %1793 = vmatpush1.bf16.msra.mxu0 0
        %1794 = vmatprep.subr.bf16.mxu0 0
        %1795 = vmatpush1.bf16.msra.mxu0 0
        %1796 = vmatprep.subr.bf16.mxu0 0
        %1797 = vmatpush1.bf16.msra.mxu0 0
        %1798 = vmatprep.subr.bf16.mxu0 0
        %1799 = vmatpush1.bf16.msra.mxu0 0
        %1800 = vmatprep.subr.bf16.mxu0 0
        %1801 = vmatpush1.bf16.msra.mxu0 0
        %1802 = vmatprep.subr.bf16.mxu0 0
        %1803 = vmatpush1.bf16.msra.mxu0 0
        %1804 = vmatprep.subr.bf16.mxu0 0
        %1805 = vmatpush1.bf16.msra.mxu0 0
        %1806 = vmatprep.subr.bf16.mxu0 0
        %1807 = vmatpush1.bf16.msra.mxu0 0
        %1808 = vmatprep.mubr.bf16.mxu0 0
        %1809 = vmatmul.mubr.bf16.gmra.mrb[0].mxu0 %v1727
        %v1810 = vpop.f32.mrb[0].mxu0
        %v1811 = vadd.f32 0.0, %v1810
        %v1812 = vpop.f32.mrb[0].mxu0
        %v1813 = vpop.f32.mrb[0].mxu0
        %v1814 = vadd.f32 0.0, %v1813
        %v1815 = vpop.f32.mrb[0].mxu0
        %1816 = vdwg.mxu0
        %v1817 = vxor.u32 %v1811, 2147483648
        %v1818 = vxor.u32 %v1814, 2147483648
        %v1819 = vmul.f32 %v1817, 1.442695
        %v1820 = vpow.pop %v1819
        %v1821 = vmul.f32 %v1818, 1.442695
        %v1822 = vpow.pop %v1821
        %v1823 = vadd.f32 %v1820, 1.0
        %v1824 = vadd.f32 %v1822, 1.0
        %v1825 = vrcp.pop %v1823
        %v1826 = vmul.f32 1.0, %v1825
        %v1827 = vrcp.pop %v1824
        %v1828 = vmul.f32 1.0, %v1827
        %v1829 = vmul.f32 %v1811, %v1826
        %v1830 = vmul.f32 %v1814, %v1828
        %v1831 = vmul.f32 %v1764, %v1829
        %v1832 = vmul.f32 %v1767, %v1830
        %v1833 = vpack.c.bf16 %v1832, %v1831
        %v1834 = vld [vmem:[%s785] sm:$0xf]
        %v1835 = vld [vmem:[%s785 + $0x4] sm:$0xf]
        %v1836 = vld [vmem:[%s785 + $0x8] sm:$0xf]
        %v1837 = vld [vmem:[%s785 + $0xc] sm:$0xf]
        %v1842 = vunpack.c.l.b16 %v1834
        %v1843 = vunpack.c.l.b16 %v1835
        %v1844 = vunpack.c.l.b16 %v1836
        %v1845 = vunpack.c.l.b16 %v1837
        %v1846 = vpack.c.b16 %v1843, %v1842
        %v1847 = vpack.c.b16 %v1845, %v1844
        %v1851 = vsel %vm900, %v1833, 0
        %1853 = vmatprep.subr.bf16.mxu0 0
        %1854 = vmatpush1.bf16.msra.mxu0 %v1846
        %1855 = vmatprep.subr.bf16.mxu0 0
        %1856 = vmatpush1.bf16.msra.mxu0 %v1847
        %1857 = vmatprep.subr.bf16.mxu0 0
        %1858 = vmatpush1.bf16.msra.mxu0 0
        %1859 = vmatprep.subr.bf16.mxu0 0
        %1860 = vmatpush1.bf16.msra.mxu0 0
        %1861 = vmatprep.subr.bf16.mxu0 0
        %1862 = vmatpush1.bf16.msra.mxu0 0
        %1863 = vmatprep.subr.bf16.mxu0 0
        %1864 = vmatpush1.bf16.msra.mxu0 0
        %1865 = vmatprep.subr.bf16.mxu0 0
        %1866 = vmatpush1.bf16.msra.mxu0 0
        %1867 = vmatprep.subr.bf16.mxu0 0
        %1868 = vmatpush1.bf16.msra.mxu0 0
        %1869 = vmatprep.subr.bf16.mxu0 0
        %1870 = vmatpush1.bf16.msra.mxu0 0
        %1871 = vmatprep.subr.bf16.mxu0 0
        %1872 = vmatpush1.bf16.msra.mxu0 0
        %1873 = vmatprep.subr.bf16.mxu0 0
        %1874 = vmatpush1.bf16.msra.mxu0 0
        %1875 = vmatprep.subr.bf16.mxu0 0
        %1876 = vmatpush1.bf16.msra.mxu0 0
        %1877 = vmatprep.subr.bf16.mxu0 0
        %1878 = vmatpush1.bf16.msra.mxu0 0
        %1879 = vmatprep.subr.bf16.mxu0 0
        %1880 = vmatpush1.bf16.msra.mxu0 0
        %1881 = vmatprep.subr.bf16.mxu0 0
        %1882 = vmatpush1.bf16.msra.mxu0 0
        %1883 = vmatprep.subr.bf16.mxu0 0
        %1884 = vmatpush1.bf16.msra.mxu0 0
        %1885 = vmatprep.mubr.bf16.mxu0 0
        %1886 = vmatmul.mubr.bf16.gmra.mrb[0].mxu0 %v1851
        %v1887 = vpop.f32.mrb[0].mxu0
        %v1888 = vadd.f32 0.0, %v1887
        %v1889 = vpop.f32.mrb[0].mxu0
        %v1890 = vpop.f32.mrb[0].mxu0
        %v1891 = vadd.f32 0.0, %v1890
        %v1892 = vpop.f32.mrb[0].mxu0
        %1893 = vdwg.mxu0
        %v1894 = vadd.f32 %v1663, %v1888
        %v1895 = vadd.f32 %v1664, %v1891
        %1896 = vrot.lane.b32.xlu0 %v1722, 96
        %v1897 = vpop.permute.xlu0 %1896
        %1898 = vrot.lane.b32.xlu0 %v1723, 96
        %v1899 = vpop.permute.xlu0 %1898
        %1902 = vmatprep.subr.bf16.mxu0 0
        %1903 = vmatpush1.bf16.msra.mxu0 %v1897
        %1904 = vmatprep.subr.bf16.mxu0 0
        %1905 = vmatpush1.bf16.msra.mxu0 %v1899
        %1906 = vmatprep.subr.bf16.mxu0 0
        %1907 = vmatpush1.bf16.msra.mxu0 0
        %1908 = vmatprep.subr.bf16.mxu0 0
        %1909 = vmatpush1.bf16.msra.mxu0 0
        %1910 = vmatprep.subr.bf16.mxu0 0
        %1911 = vmatpush1.bf16.msra.mxu0 0
        %1912 = vmatprep.subr.bf16.mxu0 0
        %1913 = vmatpush1.bf16.msra.mxu0 0
        %1914 = vmatprep.subr.bf16.mxu0 0
        %1915 = vmatpush1.bf16.msra.mxu0 0
        %1916 = vmatprep.subr.bf16.mxu0 0
        %1917 = vmatpush1.bf16.msra.mxu0 0
        %1918 = vmatprep.subr.bf16.mxu0 0
        %1919 = vmatpush1.bf16.msra.mxu0 0
        %1920 = vmatprep.subr.bf16.mxu0 0
        %1921 = vmatpush1.bf16.msra.mxu0 0
        %1922 = vmatprep.subr.bf16.mxu0 0
        %1923 = vmatpush1.bf16.msra.mxu0 0
        %1924 = vmatprep.subr.bf16.mxu0 0
        %1925 = vmatpush1.bf16.msra.mxu0 0
        %1926 = vmatprep.subr.bf16.mxu0 0
        %1927 = vmatpush1.bf16.msra.mxu0 0
        %1928 = vmatprep.subr.bf16.mxu0 0
        %1929 = vmatpush1.bf16.msra.mxu0 0
        %1930 = vmatprep.subr.bf16.mxu0 0
        %1931 = vmatpush1.bf16.msra.mxu0 0
        %1932 = vmatprep.subr.bf16.mxu0 0
        %1933 = vmatpush1.bf16.msra.mxu0 0
        %1934 = vmatprep.mubr.bf16.mxu0 0
        %1935 = vmatmul.mubr.bf16.gmra.mrb[0].mxu0 %v1727
        %v1936 = vpop.f32.mrb[0].mxu0
        %v1937 = vadd.f32 0.0, %v1936
        %v1938 = vpop.f32.mrb[0].mxu0
        %v1939 = vpop.f32.mrb[0].mxu0
        %v1940 = vadd.f32 0.0, %v1939
        %v1941 = vpop.f32.mrb[0].mxu0
        %1942 = vdwg.mxu0
        %1943 = vrot.lane.b32.xlu0 %v1722, 32
        %v1944 = vpop.permute.xlu0 %1943
        %1945 = vrot.lane.b32.xlu0 %v1723, 32
        %v1946 = vpop.permute.xlu0 %1945
        %1949 = vmatprep.subr.bf16.mxu0 0
        %1950 = vmatpush1.bf16.msra.mxu0 %v1944
        %1951 = vmatprep.subr.bf16.mxu0 0
        %1952 = vmatpush1.bf16.msra.mxu0 %v1946
        %1953 = vmatprep.subr.bf16.mxu0 0
        %1954 = vmatpush1.bf16.msra.mxu0 0
        %1955 = vmatprep.subr.bf16.mxu0 0
        %1956 = vmatpush1.bf16.msra.mxu0 0
        %1957 = vmatprep.subr.bf16.mxu0 0
        %1958 = vmatpush1.bf16.msra.mxu0 0
        %1959 = vmatprep.subr.bf16.mxu0 0
        %1960 = vmatpush1.bf16.msra.mxu0 0
        %1961 = vmatprep.subr.bf16.mxu0 0
        %1962 = vmatpush1.bf16.msra.mxu0 0
        %1963 = vmatprep.subr.bf16.mxu0 0
        %1964 = vmatpush1.bf16.msra.mxu0 0
        %1965 = vmatprep.subr.bf16.mxu0 0
        %1966 = vmatpush1.bf16.msra.mxu0 0
        %1967 = vmatprep.subr.bf16.mxu0 0
        %1968 = vmatpush1.bf16.msra.mxu0 0
        %1969 = vmatprep.subr.bf16.mxu0 0
        %1970 = vmatpush1.bf16.msra.mxu0 0
        %1971 = vmatprep.subr.bf16.mxu0 0
        %1972 = vmatpush1.bf16.msra.mxu0 0
        %1973 = vmatprep.subr.bf16.mxu0 0
        %1974 = vmatpush1.bf16.msra.mxu0 0
        %1975 = vmatprep.subr.bf16.mxu0 0
        %1976 = vmatpush1.bf16.msra.mxu0 0
        %1977 = vmatprep.subr.bf16.mxu0 0
        %1978 = vmatpush1.bf16.msra.mxu0 0
        %1979 = vmatprep.subr.bf16.mxu0 0
        %1980 = vmatpush1.bf16.msra.mxu0 0
        %1981 = vmatprep.mubr.bf16.mxu0 0
        %1982 = vmatmul.mubr.bf16.gmra.mrb[0].mxu0 %v1727
        %v1983 = vpop.f32.mrb[0].mxu0
        %v1984 = vadd.f32 0.0, %v1983
        %v1985 = vpop.f32.mrb[0].mxu0
        %v1986 = vpop.f32.mrb[0].mxu0
        %v1987 = vadd.f32 0.0, %v1986
        %v1988 = vpop.f32.mrb[0].mxu0
        %1989 = vdwg.mxu0
        %v1990 = vxor.u32 %v1984, 2147483648
        %v1991 = vxor.u32 %v1987, 2147483648
        %v1992 = vmul.f32 %v1990, 1.442695
        %v1993 = vpow.pop %v1992
        %v1994 = vmul.f32 %v1991, 1.442695
        %v1995 = vpow.pop %v1994
        %v1996 = vadd.f32 %v1993, 1.0
        %v1997 = vadd.f32 %v1995, 1.0
        %v1998 = vrcp.pop %v1996
        %v1999 = vmul.f32 1.0, %v1998
        %v2000 = vrcp.pop %v1997
        %v2001 = vmul.f32 1.0, %v2000
        %v2002 = vmul.f32 %v1984, %v1999
        %v2003 = vmul.f32 %v1987, %v2001
        %v2004 = vmul.f32 %v1937, %v2002
        %v2005 = vmul.f32 %v1940, %v2003
        %v2006 = vpack.c.bf16 %v2005, %v2004
        %v2007 = vld [vmem:[%s785 + $0x10] sm:$0xf]
        %v2008 = vld [vmem:[%s785 + $0x14] sm:$0xf]
        %v2009 = vld [vmem:[%s785 + $0x18] sm:$0xf]
        %v2010 = vld [vmem:[%s785 + $0x1c] sm:$0xf]
        %v2015 = vunpack.c.l.b16 %v2007
        %v2016 = vunpack.c.l.b16 %v2008
        %v2017 = vunpack.c.l.b16 %v2009
        %v2018 = vunpack.c.l.b16 %v2010
        %v2019 = vpack.c.b16 %v2016, %v2015
        %v2020 = vpack.c.b16 %v2018, %v2017
        %v2024 = vsel %vm900, %v2006, 0
        %2026 = vmatprep.subr.bf16.mxu0 0
        %2027 = vmatpush1.bf16.msra.mxu0 %v2019
        %2028 = vmatprep.subr.bf16.mxu0 0
        %2029 = vmatpush1.bf16.msra.mxu0 %v2020
        %2030 = vmatprep.subr.bf16.mxu0 0
        %2031 = vmatpush1.bf16.msra.mxu0 0
        %2032 = vmatprep.subr.bf16.mxu0 0
        %2033 = vmatpush1.bf16.msra.mxu0 0
        %2034 = vmatprep.subr.bf16.mxu0 0
        %2035 = vmatpush1.bf16.msra.mxu0 0
        %2036 = vmatprep.subr.bf16.mxu0 0
        %2037 = vmatpush1.bf16.msra.mxu0 0
        %2038 = vmatprep.subr.bf16.mxu0 0
        %2039 = vmatpush1.bf16.msra.mxu0 0
        %2040 = vmatprep.subr.bf16.mxu0 0
        %2041 = vmatpush1.bf16.msra.mxu0 0
        %2042 = vmatprep.subr.bf16.mxu0 0
        %2043 = vmatpush1.bf16.msra.mxu0 0
        %2044 = vmatprep.subr.bf16.mxu0 0
        %2045 = vmatpush1.bf16.msra.mxu0 0
        %2046 = vmatprep.subr.bf16.mxu0 0
        %2047 = vmatpush1.bf16.msra.mxu0 0
        %2048 = vmatprep.subr.bf16.mxu0 0
        %2049 = vmatpush1.bf16.msra.mxu0 0
        %2050 = vmatprep.subr.bf16.mxu0 0
        %2051 = vmatpush1.bf16.msra.mxu0 0
        %2052 = vmatprep.subr.bf16.mxu0 0
        %2053 = vmatpush1.bf16.msra.mxu0 0
        %2054 = vmatprep.subr.bf16.mxu0 0
        %2055 = vmatpush1.bf16.msra.mxu0 0
        %2056 = vmatprep.subr.bf16.mxu0 0
        %2057 = vmatpush1.bf16.msra.mxu0 0
        %2058 = vmatprep.mubr.bf16.mxu0 0
        %2059 = vmatmul.mubr.bf16.gmra.mrb[0].mxu0 %v2024
        %v2060 = vpop.f32.mrb[0].mxu0
        %v2061 = vadd.f32 0.0, %v2060
        %v2062 = vpop.f32.mrb[0].mxu0
        %v2063 = vpop.f32.mrb[0].mxu0
        %v2064 = vadd.f32 0.0, %v2063
        %v2065 = vpop.f32.mrb[0].mxu0
        %2066 = vdwg.mxu0
        %v2067 = vadd.f32 %v1894, %v2061
        %v2068 = vadd.f32 %v1895, %v2064
        %2069 = vst.msk [vmem:[#allocation2] sm:$0xff] %vm900, %v2067
        %2070 = vst.msk [vmem:[#allocation2 + $0x8] sm:$0xff] %vm900, %v2068
        %p2071 = scmp.eq.s32.totalorder %s40, 1
        // Predicated region
        $region145: #{tpu_custom_call.1} parent=79 // pred_check
          %p2072 = pneg %p2071
        $region146: #{tpu_custom_call.1} parent=79 // pred_check_branch
          %2074 = sbr.rel (%p2072) target = $region148
        $region147: #{tpu_custom_call.1} parent=79 // pred_region
          %v2075 = vld [vmem:[#allocation23] sm:$0x1]
          %v2076 = vld [vmem:[#allocation24] sm:$0x1]
          %v2077 = vsel %vm900, %v2067, 0.0
          %2078 = vadd.xlane.f32.xlu0 %v2077
          %v2079 = vpop.xlane.xlu0 %2078
          %v2080 = vsel %vm900, %v2068, 0.0
          %2081 = vadd.xlane.f32.xlu0 %v2080
          %v2082 = vpop.xlane.xlu0 %2081
          %v2083 = vmul.f32 %v2079, %v907
          %v2084 = vmul.f32 %v2082, %v907
          %v2085 = vsub.f32 %v2067, %v2083
          %v2086 = vsub.f32 %v2068, %v2084
          %v2087 = vmul.f32 %v2085, %v2085
          %v2088 = vmul.f32 %v2086, %v2086
          %v2089 = vsel %vm900, %v2087, 0.0
          %2090 = vadd.xlane.f32.xlu0 %v2089
          %v2091 = vpop.xlane.xlu0 %2090
          %v2092 = vsel %vm900, %v2088, 0.0
          %2093 = vadd.xlane.f32.xlu0 %v2092
          %v2094 = vpop.xlane.xlu0 %2093
          %v2095 = vmul.f32 %v2091, %v907
          %v2096 = vmul.f32 %v2094, %v907
          %v2097 = vadd.f32 %v2095, 1e-05
          %v2098 = vadd.f32 %v2096, 1e-05
          %v2099 = vrsqrt.pop %v2097
          %v2100 = vrsqrt.pop %v2098
          %v2101 = vmul.f32 %v2085, %v2099
          %v2102 = vmul.f32 %v2086, %v2100
          %v2104 = vlaneseq
          %v2105 = vshrl.u32 %v2104, 7
          %v2106 = vsub.s32 0, %v2105
          %v2107 = vrot.slane %v2075, %v2106
          %v2109 = vmul.f32 %v2101, %v2107
          %v2110 = vmul.f32 %v2102, %v2107
          %v2112 = vlaneseq
          %v2113 = vshrl.u32 %v2112, 7
          %v2114 = vsub.s32 0, %v2113
          %v2115 = vrot.slane %v2076, %v2114
          %v2117 = vadd.f32 %v2109, %v2115
          %v2118 = vadd.f32 %v2110, %v2115
          %v2119 = vpack.c.bf16 %v2118, %v2117
          %v2120 = vld [vmem:[#allocation25] sm:$0xff]
          %v2121 = vld [vmem:[#allocation25 + $0x8] sm:$0xff]
          %v2122 = vld [vmem:[#allocation25 + $0x10] sm:$0xff]
          %v2123 = vld [vmem:[#allocation25 + $0x18] sm:$0xff]
          %v2124 = vld [vmem:[#allocation25 + $0x20] sm:$0xff]
          %v2125 = vld [vmem:[#allocation25 + $0x28] sm:$0xff]
          %v2126 = vld [vmem:[#allocation25 + $0x30] sm:$0xff]
          %v2127 = vld [vmem:[#allocation25 + $0x38] sm:$0xff]
          %v2128 = vld [vmem:[#allocation25 + $0x40] sm:$0xff]
          %v2129 = vld [vmem:[#allocation25 + $0x48] sm:$0xff]
          %v2130 = vld [vmem:[#allocation25 + $0x50] sm:$0xff]
          %v2131 = vld [vmem:[#allocation25 + $0x58] sm:$0xff]
          %v2144 = vunpack.c.l.b16 %v2120
          %v2145 = vunpack.c.h.b16 %v2120
          %v2146 = vunpack.c.l.b16 %v2121
          %v2147 = vunpack.c.h.b16 %v2121
          %v2148 = vunpack.c.l.b16 %v2122
          %v2149 = vunpack.c.h.b16 %v2122
          %v2150 = vunpack.c.l.b16 %v2123
          %v2151 = vunpack.c.h.b16 %v2123
          %v2152 = vunpack.c.l.b16 %v2124
          %v2153 = vunpack.c.h.b16 %v2124
          %v2154 = vunpack.c.l.b16 %v2125
          %v2155 = vunpack.c.h.b16 %v2125
          %v2156 = vunpack.c.l.b16 %v2126
          %v2157 = vunpack.c.h.b16 %v2126
          %v2158 = vunpack.c.l.b16 %v2127
          %v2159 = vunpack.c.h.b16 %v2127
          %v2160 = vunpack.c.l.b16 %v2128
          %v2161 = vunpack.c.h.b16 %v2128
          %v2162 = vunpack.c.l.b16 %v2129
          %v2163 = vunpack.c.h.b16 %v2129
          %v2164 = vunpack.c.l.b16 %v2130
          %v2165 = vunpack.c.h.b16 %v2130
          %v2166 = vunpack.c.l.b16 %v2131
          %v2167 = vunpack.c.h.b16 %v2131
          %v2168 = vpack.c.b16 %v2150, %v2144
          %v2169 = vpack.c.b16 %v2151, %v2145
          %v2170 = vpack.c.b16 %v2152, %v2146
          %v2171 = vpack.c.b16 %v2153, %v2147
          %v2172 = vpack.c.b16 %v2154, %v2148
          %v2173 = vpack.c.b16 %v2155, %v2149
          %v2174 = vpack.c.b16 %v2162, %v2156
          %v2175 = vpack.c.b16 %v2163, %v2157
          %v2176 = vpack.c.b16 %v2164, %v2158
          %v2177 = vpack.c.b16 %v2165, %v2159
          %v2178 = vpack.c.b16 %v2166, %v2160
          %v2179 = vpack.c.b16 %v2167, %v2161
          %v2193 = vsel %vm900, %v2119, 0
          %2195 = vmatprep.subr.bf16.mxu0 %v2169
          %2196 = vmatpush1.bf16.msra.mxu0 %v2168
          %2197 = vmatprep.subr.bf16.mxu0 %v2175
          %2198 = vmatpush1.bf16.msra.mxu0 %v2174
          %2199 = vmatprep.subr.bf16.mxu0 0
          %2200 = vmatpush1.bf16.msra.mxu0 0
          %2201 = vmatprep.subr.bf16.mxu0 0
          %2202 = vmatpush1.bf16.msra.mxu0 0
          %2203 = vmatprep.subr.bf16.mxu0 0
          %2204 = vmatpush1.bf16.msra.mxu0 0
          %2205 = vmatprep.subr.bf16.mxu0 0
          %2206 = vmatpush1.bf16.msra.mxu0 0
          %2207 = vmatprep.subr.bf16.mxu0 0
          %2208 = vmatpush1.bf16.msra.mxu0 0
          %2209 = vmatprep.subr.bf16.mxu0 0
          %2210 = vmatpush1.bf16.msra.mxu0 0
          %2211 = vmatprep.subr.bf16.mxu0 0
          %2212 = vmatpush1.bf16.msra.mxu0 0
          %2213 = vmatprep.subr.bf16.mxu0 0
          %2214 = vmatpush1.bf16.msra.mxu0 0
          %2215 = vmatprep.subr.bf16.mxu0 0
          %2216 = vmatpush1.bf16.msra.mxu0 0
          %2217 = vmatprep.subr.bf16.mxu0 0
          %2218 = vmatpush1.bf16.msra.mxu0 0
          %2219 = vmatprep.subr.bf16.mxu0 0
          %2220 = vmatpush1.bf16.msra.mxu0 0
          %2221 = vmatprep.subr.bf16.mxu0 0
          %2222 = vmatpush1.bf16.msra.mxu0 0
          %2223 = vmatprep.subr.bf16.mxu0 0
          %2224 = vmatpush1.bf16.msra.mxu0 0
          %2225 = vmatprep.subr.bf16.mxu0 0
          %2226 = vmatpush1.bf16.msra.mxu0 0
          %2227 = vmatprep.mubr.bf16.mxu0 0
          %2228 = vmatmul.mubr.bf16.gmra.mrb[0].mxu0 %v2193
          %v2229 = vpop.f32.mrb[0].mxu0
          %v2230 = vadd.f32 0.0, %v2229
          %v2231 = vpop.f32.mrb[0].mxu0
          %v2232 = vadd.f32 0.0, %v2231
          %v2233 = vpop.f32.mrb[0].mxu0
          %v2234 = vadd.f32 0.0, %v2233
          %v2235 = vpop.f32.mrb[0].mxu0
          %v2236 = vadd.f32 0.0, %v2235
          %2237 = vdwg.mxu0
          %2238 = vmatprep.subr.bf16.mxu0 %v2171
          %2239 = vmatpush1.bf16.msra.mxu0 %v2170
          %2240 = vmatprep.subr.bf16.mxu0 %v2177
          %2241 = vmatpush1.bf16.msra.mxu0 %v2176
          %2242 = vmatprep.subr.bf16.mxu0 0
          %2243 = vmatpush1.bf16.msra.mxu0 0
          %2244 = vmatprep.subr.bf16.mxu0 0
          %2245 = vmatpush1.bf16.msra.mxu0 0
          %2246 = vmatprep.subr.bf16.mxu0 0
          %2247 = vmatpush1.bf16.msra.mxu0 0
          %2248 = vmatprep.subr.bf16.mxu0 0
          %2249 = vmatpush1.bf16.msra.mxu0 0
          %2250 = vmatprep.subr.bf16.mxu0 0
          %2251 = vmatpush1.bf16.msra.mxu0 0
          %2252 = vmatprep.subr.bf16.mxu0 0
          %2253 = vmatpush1.bf16.msra.mxu0 0
          %2254 = vmatprep.subr.bf16.mxu0 0
          %2255 = vmatpush1.bf16.msra.mxu0 0
          %2256 = vmatprep.subr.bf16.mxu0 0
          %2257 = vmatpush1.bf16.msra.mxu0 0
          %2258 = vmatprep.subr.bf16.mxu0 0
          %2259 = vmatpush1.bf16.msra.mxu0 0
          %2260 = vmatprep.subr.bf16.mxu0 0
          %2261 = vmatpush1.bf16.msra.mxu0 0
          %2262 = vmatprep.subr.bf16.mxu0 0
          %2263 = vmatpush1.bf16.msra.mxu0 0
          %2264 = vmatprep.subr.bf16.mxu0 0
          %2265 = vmatpush1.bf16.msra.mxu0 0
          %2266 = vmatprep.subr.bf16.mxu0 0
          %2267 = vmatpush1.bf16.msra.mxu0 0
          %2268 = vmatprep.subr.bf16.mxu0 0
          %2269 = vmatpush1.bf16.msra.mxu0 0
          %2270 = vmatprep.mubr.bf16.mxu0 0
          %2271 = vmatmul.mubr.bf16.gmra.mrb[0].mxu0 %v2193
          %v2272 = vpop.f32.mrb[0].mxu0
          %v2273 = vadd.f32 0.0, %v2272
          %v2274 = vpop.f32.mrb[0].mxu0
          %v2275 = vadd.f32 0.0, %v2274
          %v2276 = vpop.f32.mrb[0].mxu0
          %v2277 = vadd.f32 0.0, %v2276
          %v2278 = vpop.f32.mrb[0].mxu0
          %v2279 = vadd.f32 0.0, %v2278
          %2280 = vdwg.mxu0
          %2281 = vmatprep.subr.bf16.mxu0 %v2173
          %2282 = vmatpush1.bf16.msra.mxu0 %v2172
          %2283 = vmatprep.subr.bf16.mxu0 %v2179
          %2284 = vmatpush1.bf16.msra.mxu0 %v2178
          %2285 = vmatprep.subr.bf16.mxu0 0
          %2286 = vmatpush1.bf16.msra.mxu0 0
          %2287 = vmatprep.subr.bf16.mxu0 0
          %2288 = vmatpush1.bf16.msra.mxu0 0
          %2289 = vmatprep.subr.bf16.mxu0 0
          %2290 = vmatpush1.bf16.msra.mxu0 0
          %2291 = vmatprep.subr.bf16.mxu0 0
          %2292 = vmatpush1.bf16.msra.mxu0 0
          %2293 = vmatprep.subr.bf16.mxu0 0
          %2294 = vmatpush1.bf16.msra.mxu0 0
          %2295 = vmatprep.subr.bf16.mxu0 0
          %2296 = vmatpush1.bf16.msra.mxu0 0
          %2297 = vmatprep.subr.bf16.mxu0 0
          %2298 = vmatpush1.bf16.msra.mxu0 0
          %2299 = vmatprep.subr.bf16.mxu0 0
          %2300 = vmatpush1.bf16.msra.mxu0 0
          %2301 = vmatprep.subr.bf16.mxu0 0
          %2302 = vmatpush1.bf16.msra.mxu0 0
          %2303 = vmatprep.subr.bf16.mxu0 0
          %2304 = vmatpush1.bf16.msra.mxu0 0
          %2305 = vmatprep.subr.bf16.mxu0 0
          %2306 = vmatpush1.bf16.msra.mxu0 0
          %2307 = vmatprep.subr.bf16.mxu0 0
          %2308 = vmatpush1.bf16.msra.mxu0 0
          %2309 = vmatprep.subr.bf16.mxu0 0
          %2310 = vmatpush1.bf16.msra.mxu0 0
          %2311 = vmatprep.subr.bf16.mxu0 0
          %2312 = vmatpush1.bf16.msra.mxu0 0
          %2313 = vmatprep.mubr.bf16.mxu0 0
          %2314 = vmatmul.mubr.bf16.gmra.mrb[0].mxu0 %v2193
          %v2315 = vpop.f32.mrb[0].mxu0
          %v2316 = vadd.f32 0.0, %v2315
          %v2317 = vpop.f32.mrb[0].mxu0
          %v2318 = vadd.f32 0.0, %v2317
          %v2319 = vpop.f32.mrb[0].mxu0
          %v2320 = vadd.f32 0.0, %v2319
          %v2321 = vpop.f32.mrb[0].mxu0
          %v2322 = vadd.f32 0.0, %v2321
          %2323 = vdwg.mxu0
          %2324 = vst [vmem:[%s879] sm:$0xff] %v2230
          %2325 = vst [vmem:[%s879 + $0x8] sm:$0xff] %v2232
          %2326 = vst [vmem:[%s879 + $0x10] sm:$0xff] %v2273
          %2327 = vst [vmem:[%s879 + $0x18] sm:$0xff] %v2275
          %2328 = vst [vmem:[%s879 + $0x20] sm:$0xff] %v2316
          %2329 = vst [vmem:[%s879 + $0x28] sm:$0xff] %v2318
          %2330 = vst [vmem:[%s879 + $0x30] sm:$0xff] %v2234
          %2331 = vst [vmem:[%s879 + $0x38] sm:$0xff] %v2236
          %2332 = vst [vmem:[%s879 + $0x40] sm:$0xff] %v2277
          %2333 = vst [vmem:[%s879 + $0x48] sm:$0xff] %v2279
          %2334 = vst [vmem:[%s879 + $0x50] sm:$0xff] %v2320
          %2335 = vst [vmem:[%s879 + $0x58] sm:$0xff] %v2322
        $region148: #{tpu_custom_call.1} parent=79 // pred_fallthru
          _
        %s2336 = sand.u32 %s415, 1
        %s2337 = scalar_lea.sflag [#allocation9], %s2336
        %s2338 = sand.u32 %s415, 1
        %s2339 = smul.addr %s2338, 96
        %s2340 = scalar_lea.vmem [#allocation27], %s2339
        // Predicated region
        $region149: #{tpu_custom_call.1} parent=79 // pred_check
          %p2341 = pneg %p425
        $region150: #{tpu_custom_call.1} parent=79 // pred_check_branch
          %2343 = sbr.rel (%p2341) target = $region152
        $region151: #{tpu_custom_call.1} parent=79 // pred_region
          %s2345 = ssub.s32 1536, 1536
          %2346 = vsyncadd %s2337, %s2345
          %s2347 = smul.addr %s39, 12
          %s2348 = smul.addr %s2347, 128
          %s2349 = scalar_lea.hbm %s15, %s2348
          %s2350 = sshll.u32 %s2340, 4
          %s2351 = int_to_ptr.vmem [resolvable:$true] %s2350
          %2356 = dma.vmem_to_hbm [thread:$0]  %s2351, 1536, %s2349, %s2337, 768, 768, 48
        $region152: #{tpu_custom_call.1} parent=79 // pred_fallthru
          _
      $region80: #{tpu_custom_call.1} parent=5 // pred_fallthru
        _
      %p2357 = scmp.le.s32.totalorder 2, %s30
      // Predicated region
      $region153: #{tpu_custom_call.1} parent=5 // pred_check
        %p2358 = pneg %p2357
      $region154: #{tpu_custom_call.1} parent=5 // pred_check_branch
        %2360 = sbr.rel (%p2358) target = $region156
      $region155: #{tpu_custom_call.1} parent=5 // pred_region
        %s2361 = ssub.s32 %s30, 2
        // Predicated region
        $region157: #{tpu_custom_call.1} parent=155 // pred_check
          %p2362 = pneg %p431
        $region158: #{tpu_custom_call.1} parent=155 // pred_check_branch
          %2364 = sbr.rel (%p2362) target = $region160
        $region159: #{tpu_custom_call.1} parent=155 // pred_region
          %s2365 = sand.u32 %s416, 1
          %s2366 = scalar_lea.sflag [#allocation9], %s2365
          %s2367 = sand.u32 %s416, 1
          %s2368 = smul.addr %s2367, 96
          %s2369 = scalar_lea.vmem [#allocation27], %s2368
          %2370 = dma.done %s2366, 1536
        $region160: #{tpu_custom_call.1} parent=155 // pred_fallthru
          _
      $region156: #{tpu_custom_call.1} parent=5 // pred_fallthru
        _
    $region6: #{tpu_custom_call.1} parent=1 // loop_footer
      %s34 = sadd.s32 1, %s30
    $region7: #{tpu_custom_call.1} parent=1 // loop_footer_branch
      %29 = sbr.rel target = $region3
    $region8: #{tpu_custom_call.1} parent=1 // loop_exit
      _
    %2371 = vsyncpa [#allocation8], 1
    %s2372 = scalar_lea.sflag [#allocation8], 1
    %2373 = vsyncpa %s2372, 1
    %2374 = vsyncpa [#allocation11], 1
    %2375 = vsyncpa [#allocation14], 1
    %2376 = vsyncpa [#allocation26], 1
    %2377 = vsyncpa [#allocation9], 1
    %s2378 = scalar_lea.sflag [#allocation9], 1
    %2379 = vsyncpa %s2378, 1

</llo_original>
